<compile_context>
chip_gen: v6e
topology: v6e:2x2x1
jax: 0.10.0
libtpu: 0.0.40
codegen_flags: <defaults>
</compile_context>

<pallas_src>
import functools
import math

import jax
import jax.numpy as jnp
from jax.experimental import pallas as pl
from jax.experimental.pallas import tpu as pltpu


LAYER_NORM_EPS = 1e-12


def _erf(x):
    # Abramowitz & Stegun 7.1.26 rational approximation, |error| < 1.5e-7.
    a1, a2, a3, a4, a5 = (0.254829592, -0.284496736, 1.421413741,
                          -1.453152027, 1.061405429)
    p = 0.3275911
    ax = jnp.abs(x)
    t = 1.0 / (1.0 + p * ax)
    poly = ((((a5 * t + a4) * t + a3) * t + a2) * t + a1) * t
    y = 1.0 - poly * jnp.exp(-ax * ax)
    return jnp.where(x >= 0.0, y, -y)


def _gelu(x):
    # x * 0.5 * (1 + erf(x / sqrt(2)))  -- matches the module's `gelu`.
    return x * 0.5 * (1.0 + _erf(x * (1.0 / math.sqrt(2.0))))


def _layer_norm(x, w, b):
    u = jnp.mean(x, axis=-1, keepdims=True)
    s = jnp.mean((x - u) * (x - u), axis=-1, keepdims=True)
    return (x - u) * jax.lax.rsqrt(s + LAYER_NORM_EPS) * w + b


# ----------------------------------------------------------------------------
# Fused encoder kernel.  Grid = (L,); the running hidden state is carried in a
# VMEM scratch across layer iterations (init from s1 at l == 0).
#   s1_ref   : (B, S1, H)       query-side hidden states (used only at l==0)
#   s2_ref   : (B, S2, H)       key/value-side hidden states
#   mask_ref : (B, 1,  S2)      additive attention mask (0 valid / -1e4 padded)
#   weights  : layer-indexed blocks (1, in, out) bf16; biases/LN (1, 1, out) f32
#   out_ref      : (1, B, S1, H)   this layer's output
#   attn_map_ref : (1, B, S1, S2)  mean-over-heads masked scores
#   hid_scr  : (B*S1, H) f32    running hidden state (carried across layers)
# ----------------------------------------------------------------------------
def fused_encoder_kernel(
    s1_ref, s2_ref, mask_ref,
    wq_ref, bq_ref, wk_ref, bk_ref, wv_ref, bv_ref,
    wo_ref, bo_ref, ln1w_ref, ln1b_ref,
    wi_ref, bi_ref, wo2_ref, bo2_ref, ln2w_ref, ln2b_ref,
    out_ref, attn_map_ref, hid_scr,
    *, num_heads):
    B, S1, H = s1_ref.shape
    S2 = s2_ref.shape[1]
    hs = H // num_heads
    scale = 1.0 / math.sqrt(hs)

    @pl.when(pl.program_id(0) == 0)
    def _():
        hid_scr[...] = s1_ref[...].reshape(B * S1, H)

    hid = hid_scr[...]                                   # (B*S1, H) f32 residual
    hid_bf = hid.astype(jnp.bfloat16)
    s2_bf = s2_ref[...].reshape(B * S2, H).astype(jnp.bfloat16)

    # QKV projections: batch folded into MXU M dimension, bf16 in / f32 acc.
    q = jnp.dot(hid_bf, wq_ref[0], preferred_element_type=jnp.float32) + bq_ref[0]
    k = jnp.dot(s2_bf, wk_ref[0], preferred_element_type=jnp.float32) + bk_ref[0]
    v = jnp.dot(s2_bf, wv_ref[0], preferred_element_type=jnp.float32) + bv_ref[0]

    q3 = q.reshape(B, S1, H).astype(jnp.bfloat16)
    k3 = k.reshape(B, S2, H).astype(jnp.bfloat16)
    v3 = v.reshape(B, S2, H).astype(jnp.bfloat16)
    mask = jnp.broadcast_to(mask_ref[...], (B, S1, S2))  # hoisted (no per-head bcast)

    wo = wo_ref[0]                                       # (H, H) bf16
    score_sum = None
    attn_dense = None
    for h in range(num_heads):                           # static, 128-aligned slices
        qh = q3[:, :, h * hs:(h + 1) * hs]
        kh = k3[:, :, h * hs:(h + 1) * hs]
        vh = v3[:, :, h * hs:(h + 1) * hs]
        sc = jnp.einsum('bqd,bkd->bqk', qh, kh,
                        preferred_element_type=jnp.float32)
        sc = sc * scale + mask                           # (B, S1, S2) f32
        score_sum = sc if score_sum is None else score_sum + sc
        m = jnp.max(sc, axis=-1, keepdims=True)
        e = jnp.exp(sc - m)
        p_attn = e * pl.reciprocal(jnp.sum(e, axis=-1, keepdims=True),
                                   approx=True)
        # TODO(synk): attention-probs dropout omitted (inference semantics).
        ctx_h = jnp.einsum('bqk,bkd->bqd', p_attn.astype(jnp.bfloat16), vh,
                           preferred_element_type=jnp.float32)   # (B, S1, hs)
        # concat_h(ctx_h) @ Wo  ==  sum_h ctx_h @ Wo[h*hs:(h+1)*hs, :]
        part = jnp.dot(ctx_h.reshape(B * S1, hs).astype(jnp.bfloat16),
                       wo[h * hs:(h + 1) * hs, :],
                       preferred_element_type=jnp.float32)
        attn_dense = part if attn_dense is None else attn_dense + part

    attn_map_ref[0] = (score_sum * (1.0 / num_heads)).reshape(B, S1, S2)

    # BertSelfOutput: dense + residual + LayerNorm  (dropout = identity).
    attn_dense = attn_dense + bo_ref[0]
    attn_out = _layer_norm(attn_dense + hid, ln1w_ref[0], ln1b_ref[0])

    # BertIntermediate: dense + gelu.
    inter = _gelu(jnp.dot(attn_out.astype(jnp.bfloat16), wi_ref[0],
                          preferred_element_type=jnp.float32) + bi_ref[0])

    # BertOutput: dense + residual + LayerNorm  (dropout = identity).
    out_dense = jnp.dot(inter.astype(jnp.bfloat16), wo2_ref[0],
                        preferred_element_type=jnp.float32) + bo2_ref[0]
    layer_out = _layer_norm(out_dense + attn_out, ln2w_ref[0], ln2b_ref[0])

    hid_scr[...] = layer_out                             # carry to next layer
    out_ref[0] = layer_out.reshape(B, S1, H)


def bert_cross_encoder_pallas(s1, s2, mask, stacked_params, *, num_heads):
    """Single fused pallas_call over all layers.  Returns stacked
    (layer_outputs (L,B,S1,H), attn_maps (L,B,S1,S2))."""
    L = stacked_params[0].shape[0]
    B, S1, H = s1.shape
    S2 = s2.shape[1]

    in_specs = [
        pl.BlockSpec((B, S1, H), lambda l: (0, 0, 0)),    # grid-invariant
        pl.BlockSpec((B, S2, H), lambda l: (0, 0, 0)),    # grid-invariant
        pl.BlockSpec((B, 1, S2), lambda l: (0, 0, 0)),    # grid-invariant
    ] + [pl.BlockSpec((1,) + p.shape[1:], lambda l: (l, 0, 0))  # layer-indexed
         for p in stacked_params]

    out_specs = (
        pl.BlockSpec((1, B, S1, H), lambda l: (l, 0, 0, 0)),
        pl.BlockSpec((1, B, S1, S2), lambda l: (l, 0, 0, 0)),
    )
    out_shape = (
        jax.ShapeDtypeStruct((L, B, S1, H), jnp.float32),
        jax.ShapeDtypeStruct((L, B, S1, S2), jnp.float32),
    )

    kernel = functools.partial(fused_encoder_kernel, num_heads=num_heads)
    return pl.pallas_call(
        kernel,
        grid=(L,),
        in_specs=in_specs,
        out_specs=out_specs,
        out_shape=out_shape,
        scratch_shapes=[pltpu.VMEM((B * S1, H), jnp.float32)],
        compiler_params=pltpu.CompilerParams(
            dimension_semantics=("arbitrary",),   # layer axis carries state
            vmem_limit_bytes=32 * 1024 * 1024,
        ),
    )(s1, s2, mask, *stacked_params)


@functools.partial(jax.jit, static_argnames=("num_heads",))
def bert_cross_encoder_attn_map(s1_hidden_states, s2_hidden_states,
                                s2_attention_mask, stacked_params, *,
                                num_heads):
    layer_outs, attn_maps = bert_cross_encoder_pallas(
        s1_hidden_states, s2_hidden_states, s2_attention_mask, stacked_params,
        num_heads=num_heads)
    L = layer_outs.shape[0]
    return (tuple(layer_outs[l] for l in range(L)),
            tuple(attn_maps[l] for l in range(L)))


# ----------------------------------------------------------------------------
# Parameters.  Weight matrices pre-transposed (in, out) and stored in bf16;
# biases / LayerNorm params as (1, out) f32 rows.
# ----------------------------------------------------------------------------
def init_layer_params(key, hidden, intermediate):
    def dense(k, fan_in, fan_out):
        w = (jax.random.normal(k, (fan_in, fan_out), jnp.float32) * 0.02
             ).astype(jnp.bfloat16)
        b = jnp.zeros((1, fan_out), jnp.float32)
        return w, b

    keys = jax.random.split(key, 6)
    wq, bq = dense(keys[0], hidden, hidden)
    wk, bk = dense(keys[1], hidden, hidden)
    wv, bv = dense(keys[2], hidden, hidden)
    wo, bo = dense(keys[3], hidden, hidden)
    wi, bi = dense(keys[4], hidden, intermediate)
    wo2, bo2 = dense(keys[5], intermediate, hidden)
    ln1w = jnp.ones((1, hidden), jnp.float32)
    ln1b = jnp.zeros((1, hidden), jnp.float32)
    ln2w = jnp.ones((1, hidden), jnp.float32)
    ln2b = jnp.zeros((1, hidden), jnp.float32)
    return (wq, bq, wk, bk, wv, bv, wo, bo, ln1w, ln1b,
            wi, bi, wo2, bo2, ln2w, ln2b)


def stack_layer_params(per_layer_params):
    n = len(per_layer_params[0])
    return tuple(jnp.stack([lp[i] for lp in per_layer_params], axis=0)
                 for i in range(n))


# ----------------------------------------------------------------------------
# Pure-JAX reference (mirrors the kernel's bf16-matmul / f32-accumulate math).
# ----------------------------------------------------------------------------
def _reference_encoder(s1, s2, mask, per_layer_params, num_heads):
    def bf(x):
        return x.astype(jnp.bfloat16)

    def mm(a, w):
        return jnp.dot(bf(a), bf(w), preferred_element_type=jnp.float32)

    B, S1, H = s1.shape
    S2 = s2.shape[1]
    hs = H // num_heads
    hidden = s1
    outs, maps = [], []
    for (wq, bq, wk, bk, wv, bv, wo, bo, ln1w, ln1b,
         wi, bi, wo2, bo2, ln2w, ln2b) in per_layer_params:
        q = (mm(hidden, wq) + bq).reshape(B, S1, num_heads, hs).transpose(0, 2, 1, 3)
        k = (mm(s2, wk) + bk).reshape(B, S2, num_heads, hs).transpose(0, 2, 1, 3)
        v = (mm(s2, wv) + bv).reshape(B, S2, num_heads, hs).transpose(0, 2, 1, 3)
        sc = jnp.einsum('bhqd,bhkd->bhqk', bf(q), bf(k),
                        preferred_element_type=jnp.float32) / math.sqrt(hs)
        sc = sc + mask[:, None, :, :]
        maps.append(jnp.mean(sc, axis=1))
        p = jax.nn.softmax(sc, axis=-1)
        ctx = jnp.einsum('bhqk,bhkd->bhqd', bf(p), bf(v),
                         preferred_element_type=jnp.float32)
        ctx = ctx.transpose(0, 2, 1, 3).reshape(B, S1, H)
        attn_out = _layer_norm(mm(ctx, wo) + bo + hidden, ln1w, ln1b)
        x = mm(attn_out, wi) + bi
        inter = x * 0.5 * (1.0 + jax.lax.erf(x / math.sqrt(2.0)))
        layer_out = _layer_norm(mm(inter, wo2) + bo2 + attn_out, ln2w, ln2b)
        outs.append(layer_out)
        hidden = layer_out
    return outs, maps


if __name__ == "__main__":
    # Small, lane-dense shapes consistent with the module's forward.
    batch, s1_len, s2_len = 2, 8, 8
    hidden, num_heads, intermediate = 256, 2, 1024   # head_size = 128
    layer_num = 2

    key = jax.random.PRNGKey(0)
    key, k1, k2, kp = jax.random.split(key, 4)
    s1 = jax.random.normal(k1, (batch, s1_len, hidden), jnp.float32)
    s2 = jax.random.normal(k2, (batch, s2_len, hidden), jnp.float32)

    # BERT-style additive "extended" mask: 0 for valid, -10000 for padded.
    s2_valid_lens = jnp.array([s2_len, s2_len - 2], dtype=jnp.int32)
    valid = jnp.arange(s2_len)[None, :] < s2_valid_lens[:, None]
    s2_attention_mask = jnp.where(valid, 0.0, -10000.0).astype(
        jnp.float32)[:, None, :]                     # (B, 1, S2)

    layer_keys = jax.random.split(kp, layer_num)
    per_layer_params = [init_layer_params(layer_keys[i], hidden, intermediate)
                        for i in range(layer_num)]
    stacked_params = stack_layer_params(per_layer_params)

    all_layers, all_maps = bert_cross_encoder_attn_map(
        s1, s2, s2_attention_mask, stacked_params, num_heads=num_heads)
    jax.block_until_ready((all_layers, all_maps))

    ref_layers, ref_maps = _reference_encoder(
        s1, s2, s2_attention_mask, per_layer_params, num_heads)

    assert len(all_layers) == layer_num and len(all_maps) == layer_num
    for layer_out, attn_map, ref_out, ref_map in zip(
            all_layers, all_maps, ref_layers, ref_maps):
        assert layer_out.shape == (batch, s1_len, hidden)
        assert attn_map.shape == (batch, s1_len, s2_len)
        assert bool(jnp.all(jnp.isfinite(layer_out)))
        assert bool(jnp.all(jnp.isfinite(attn_map)))
        assert bool(jnp.allclose(layer_out, ref_out, rtol=5e-2, atol=5e-2))
        assert bool(jnp.allclose(attn_map, ref_map, rtol=5e-2, atol=5e-2))
    print("KERNEL_OK")
</pallas_src>

<mosaic_0001>
module attributes {stable_mosaic.version = 11 : i64} {
  func.func @fused_encoder_kernel(%arg0: i32, %arg1: memref<2x8x256xf32, #tpu.memory_space<vmem>>, %arg2: memref<2x8x256xf32, #tpu.memory_space<vmem>>, %arg3: memref<2x1x8xf32, #tpu.memory_space<vmem>>, %arg4: memref<1x256x256xbf16, #tpu.memory_space<vmem>>, %arg5: memref<1x1x256xf32, #tpu.memory_space<vmem>>, %arg6: memref<1x256x256xbf16, #tpu.memory_space<vmem>>, %arg7: memref<1x1x256xf32, #tpu.memory_space<vmem>>, %arg8: memref<1x256x256xbf16, #tpu.memory_space<vmem>>, %arg9: memref<1x1x256xf32, #tpu.memory_space<vmem>>, %arg10: memref<1x256x256xbf16, #tpu.memory_space<vmem>>, %arg11: memref<1x1x256xf32, #tpu.memory_space<vmem>>, %arg12: memref<1x1x256xf32, #tpu.memory_space<vmem>>, %arg13: memref<1x1x256xf32, #tpu.memory_space<vmem>>, %arg14: memref<1x256x1024xbf16, #tpu.memory_space<vmem>>, %arg15: memref<1x1x1024xf32, #tpu.memory_space<vmem>>, %arg16: memref<1x1024x256xbf16, #tpu.memory_space<vmem>>, %arg17: memref<1x1x256xf32, #tpu.memory_space<vmem>>, %arg18: memref<1x1x256xf32, #tpu.memory_space<vmem>>, %arg19: memref<1x1x256xf32, #tpu.memory_space<vmem>>, %arg20: memref<1x2x8x256xf32, #tpu.memory_space<vmem>>, %arg21: memref<1x2x8x8xf32, #tpu.memory_space<vmem>>, %arg22: memref<16x256xf32, #tpu.memory_space<vmem>>) attributes {dimension_semantics = [#tpu.dimension_semantics<arbitrary>], iteration_bounds = array<i64: 2>, scalar_prefetch = 0 : i64, scratch_operands = 1 : i64, tpu.core_type = #tpu.core_type<tc>, window_params = [{pipeline_mode = #tpu.pipeline_mode<synchronous>, transform_indices = @transform_0, window_bounds = array<i64: 2, 8, 256>}, {pipeline_mode = #tpu.pipeline_mode<synchronous>, transform_indices = @transform_1, window_bounds = array<i64: 2, 8, 256>}, {pipeline_mode = #tpu.pipeline_mode<synchronous>, transform_indices = @transform_2, window_bounds = array<i64: 2, 1, 8>}, {transform_indices = @transform_3, window_bounds = array<i64: 1, 256, 256>}, {transform_indices = @transform_4, window_bounds = array<i64: 1, 1, 256>}, {transform_indices = @transform_5, window_bounds = array<i64: 1, 256, 256>}, {transform_indices = @transform_6, window_bounds = array<i64: 1, 1, 256>}, {transform_indices = @transform_7, window_bounds = array<i64: 1, 256, 256>}, {transform_indices = @transform_8, window_bounds = array<i64: 1, 1, 256>}, {transform_indices = @transform_9, window_bounds = array<i64: 1, 256, 256>}, {transform_indices = @transform_10, window_bounds = array<i64: 1, 1, 256>}, {transform_indices = @transform_11, window_bounds = array<i64: 1, 1, 256>}, {transform_indices = @transform_12, window_bounds = array<i64: 1, 1, 256>}, {transform_indices = @transform_13, window_bounds = array<i64: 1, 256, 1024>}, {transform_indices = @transform_14, window_bounds = array<i64: 1, 1, 1024>}, {transform_indices = @transform_15, window_bounds = array<i64: 1, 1024, 256>}, {transform_indices = @transform_16, window_bounds = array<i64: 1, 1, 256>}, {transform_indices = @transform_17, window_bounds = array<i64: 1, 1, 256>}, {transform_indices = @transform_18, window_bounds = array<i64: 1, 1, 256>}, {transform_indices = @transform_19, window_bounds = array<i64: 1, 2, 8, 256>}, {transform_indices = @transform_20, window_bounds = array<i64: 1, 2, 8, 8>}]} {
    %c0_i32 = arith.constant 0 : i32
    %0 = arith.cmpi eq, %arg0, %c0_i32 : i32
    %1 = arith.extui %0 : i1 to i32
    %c0_i32_0 = arith.constant 0 : i32
    %2 = arith.cmpi ne, %1, %c0_i32_0 : i32
    scf.if %2 {
      %c0_108 = arith.constant 0 : index
      %c0_109 = arith.constant 0 : index
      %c0_110 = arith.constant 0 : index
      %216 = vector.load %arg1[%c0_108, %c0_109, %c0_110] : memref<2x8x256xf32, #tpu.memory_space<vmem>>, vector<2x8x256xf32>
      %217 = vector.shape_cast %216 : vector<2x8x256xf32> to vector<16x256xf32>
      %c0_111 = arith.constant 0 : index
      %c0_112 = arith.constant 0 : index
      %218 = vector.load %arg22[%c0_111, %c0_112] : memref<16x256xf32, #tpu.memory_space<vmem>>, vector<16x256xf32>
      tpu.vector_store %arg22[%c0_111, %c0_112], %217 {strides = array<i32>} : memref<16x256xf32, #tpu.memory_space<vmem>>, vector<16x256xf32>,
    } else {
    }
    %c0 = arith.constant 0 : index
    %c0_1 = arith.constant 0 : index
    %3 = vector.load %arg22[%c0, %c0_1] : memref<16x256xf32, #tpu.memory_space<vmem>>, vector<16x256xf32>
    %4 = arith.truncf %3 : vector<16x256xf32> to vector<16x256xbf16>
    %c0_2 = arith.constant 0 : index
    %c0_3 = arith.constant 0 : index
    %c0_4 = arith.constant 0 : index
    %5 = vector.load %arg2[%c0_2, %c0_3, %c0_4] : memref<2x8x256xf32, #tpu.memory_space<vmem>>, vector<2x8x256xf32>
    %6 = vector.shape_cast %5 : vector<2x8x256xf32> to vector<16x256xf32>
    %7 = arith.truncf %6 : vector<16x256xf32> to vector<16x256xbf16>
    %c0_5 = arith.constant 0 : index
    %c0_6 = arith.constant 0 : index
    %c0_7 = arith.constant 0 : index
    %8 = vector.load %arg4[%c0_5, %c0_6, %c0_7] : memref<1x256x256xbf16, #tpu.memory_space<vmem>>, vector<1x256x256xbf16>
    %9 = vector.shape_cast %8 : vector<1x256x256xbf16> to vector<256x256xbf16>
    %cst = arith.constant dense<0.000000e+00> : vector<16x256xf32>
    %10 = tpu.matmul %4, %9, %cst {dimension_numbers = #tpu.dot_dimension_numbers<[1], [0], [0], [1], [0, 0, 1, 1], [], []>} : vector<16x256xbf16>, vector<256x256xbf16>, vector<16x256xf32> -> vector<16x256xf32>
    %c0_8 = arith.constant 0 : index
    %c0_9 = arith.constant 0 : index
    %c0_10 = arith.constant 0 : index
    %11 = vector.load %arg5[%c0_8, %c0_9, %c0_10] : memref<1x1x256xf32, #tpu.memory_space<vmem>>, vector<1x1x256xf32>
    %12 = vector.shape_cast %11 : vector<1x1x256xf32> to vector<1x256xf32>
    %13 = vector.broadcast %12 : vector<1x256xf32> to vector<16x256xf32>
    %14 = arith.addf %10, %13 : vector<16x256xf32>
    %c0_11 = arith.constant 0 : index
    %c0_12 = arith.constant 0 : index
    %c0_13 = arith.constant 0 : index
    %15 = vector.load %arg6[%c0_11, %c0_12, %c0_13] : memref<1x256x256xbf16, #tpu.memory_space<vmem>>, vector<1x256x256xbf16>
    %16 = vector.shape_cast %15 : vector<1x256x256xbf16> to vector<256x256xbf16>
    %cst_14 = arith.constant dense<0.000000e+00> : vector<16x256xf32>
    %17 = tpu.matmul %7, %16, %cst_14 {dimension_numbers = #tpu.dot_dimension_numbers<[1], [0], [0], [1], [0, 0, 1, 1], [], []>} : vector<16x256xbf16>, vector<256x256xbf16>, vector<16x256xf32> -> vector<16x256xf32>
    %c0_15 = arith.constant 0 : index
    %c0_16 = arith.constant 0 : index
    %c0_17 = arith.constant 0 : index
    %18 = vector.load %arg7[%c0_15, %c0_16, %c0_17] : memref<1x1x256xf32, #tpu.memory_space<vmem>>, vector<1x1x256xf32>
    %19 = vector.shape_cast %18 : vector<1x1x256xf32> to vector<1x256xf32>
    %20 = vector.broadcast %19 : vector<1x256xf32> to vector<16x256xf32>
    %21 = arith.addf %17, %20 : vector<16x256xf32>
    %c0_18 = arith.constant 0 : index
    %c0_19 = arith.constant 0 : index
    %c0_20 = arith.constant 0 : index
    %22 = vector.load %arg8[%c0_18, %c0_19, %c0_20] : memref<1x256x256xbf16, #tpu.memory_space<vmem>>, vector<1x256x256xbf16>
    %23 = vector.shape_cast %22 : vector<1x256x256xbf16> to vector<256x256xbf16>
    %cst_21 = arith.constant dense<0.000000e+00> : vector<16x256xf32>
    %24 = tpu.matmul %7, %23, %cst_21 {dimension_numbers = #tpu.dot_dimension_numbers<[1], [0], [0], [1], [0, 0, 1, 1], [], []>} : vector<16x256xbf16>, vector<256x256xbf16>, vector<16x256xf32> -> vector<16x256xf32>
    %c0_22 = arith.constant 0 : index
    %c0_23 = arith.constant 0 : index
    %c0_24 = arith.constant 0 : index
    %25 = vector.load %arg9[%c0_22, %c0_23, %c0_24] : memref<1x1x256xf32, #tpu.memory_space<vmem>>, vector<1x1x256xf32>
    %26 = vector.shape_cast %25 : vector<1x1x256xf32> to vector<1x256xf32>
    %27 = vector.broadcast %26 : vector<1x256xf32> to vector<16x256xf32>
    %28 = arith.addf %24, %27 : vector<16x256xf32>
    %29 = vector.shape_cast %14 : vector<16x256xf32> to vector<2x8x256xf32>
    %30 = arith.truncf %29 : vector<2x8x256xf32> to vector<2x8x256xbf16>
    %31 = vector.shape_cast %21 : vector<16x256xf32> to vector<2x8x256xf32>
    %32 = arith.truncf %31 : vector<2x8x256xf32> to vector<2x8x256xbf16>
    %33 = vector.shape_cast %28 : vector<16x256xf32> to vector<2x8x256xf32>
    %34 = arith.truncf %33 : vector<2x8x256xf32> to vector<2x8x256xbf16>
    %c0_25 = arith.constant 0 : index
    %c0_26 = arith.constant 0 : index
    %c0_27 = arith.constant 0 : index
    %35 = vector.load %arg3[%c0_25, %c0_26, %c0_27] : memref<2x1x8xf32, #tpu.memory_space<vmem>>, vector<2x1x8xf32>
    %36 = vector.shape_cast %35 : vector<2x1x8xf32> to vector<2x1x8xf32>
    %37 = vector.broadcast %36 : vector<2x1x8xf32> to vector<2x8x8xf32>
    %c0_28 = arith.constant 0 : index
    %c0_29 = arith.constant 0 : index
    %c0_30 = arith.constant 0 : index
    %38 = vector.load %arg10[%c0_28, %c0_29, %c0_30] : memref<1x256x256xbf16, #tpu.memory_space<vmem>>, vector<1x256x256xbf16>
    %39 = vector.shape_cast %38 : vector<1x256x256xbf16> to vector<256x256xbf16>
    %40 = vector.extract_strided_slice %30 {offsets = [0, 0, 0], sizes = [2, 8, 128], strides = [1, 1, 1]} : vector<2x8x256xbf16> to vector<2x8x128xbf16>
    %41 = vector.extract_strided_slice %32 {offsets = [0, 0, 0], sizes = [2, 8, 128], strides = [1, 1, 1]} : vector<2x8x256xbf16> to vector<2x8x128xbf16>
    %42 = vector.extract_strided_slice %34 {offsets = [0, 0, 0], sizes = [2, 8, 128], strides = [1, 1, 1]} : vector<2x8x256xbf16> to vector<2x8x128xbf16>
    "tpu.trace_start"() <{level = 10 : i32, message = "bqd,bkd->bqk"}> : () -> ()
    %cst_31 = arith.constant dense<0.000000e+00> : vector<2x8x8xf32>
    %43 = tpu.matmul %40, %41, %cst_31 {dimension_numbers = #tpu.dot_dimension_numbers<[2], [2], [1], [1], [0, 0, 0, 1, 1, 1], [0], [0]>} : vector<2x8x128xbf16>, vector<2x8x128xbf16>, vector<2x8x8xf32> -> vector<2x8x8xf32>
    "tpu.trace_stop"() : () -> ()
    %cst_32 = arith.constant 0.0883883461 : f32
    %44 = vector.broadcast %cst_32 : f32 to vector<2x8x8xf32>
    %45 = arith.mulf %43, %44 : vector<2x8x8xf32>
    %46 = arith.addf %45, %37 : vector<2x8x8xf32>
    %cst_33 = arith.constant dense<0xFF800000> : vector<2x8xf32>
    %47 = vector.multi_reduction <maximumf>, %46, %cst_33 [2] : vector<2x8x8xf32> to vector<2x8xf32>
    %48 = vector.shape_cast %47 : vector<2x8xf32> to vector<2x8x1xf32>
    %49 = vector.broadcast %48 : vector<2x8x1xf32> to vector<2x8x8xf32>
    %50 = arith.subf %46, %49 : vector<2x8x8xf32>
    %51 = math.exp %50 : vector<2x8x8xf32>
    %cst_34 = arith.constant dense<0.000000e+00> : vector<2x8xf32>
    %52 = vector.multi_reduction <add>, %51, %cst_34 [2] : vector<2x8x8xf32> to vector<2x8xf32>
    %53 = vector.shape_cast %52 : vector<2x8xf32> to vector<2x8x1xf32>
    %54 = tpu.reciprocal %53 {approx = true} : vector<2x8x1xf32> -> vector<2x8x1xf32>
    %55 = vector.broadcast %54 : vector<2x8x1xf32> to vector<2x8x8xf32>
    %56 = arith.mulf %51, %55 : vector<2x8x8xf32>
    %57 = arith.truncf %56 : vector<2x8x8xf32> to vector<2x8x8xbf16>
    "tpu.trace_start"() <{level = 10 : i32, message = "bqk,bkd->bqd"}> : () -> ()
    %cst_35 = arith.constant dense<0.000000e+00> : vector<2x8x128xf32>
    %58 = tpu.matmul %57, %42, %cst_35 {dimension_numbers = #tpu.dot_dimension_numbers<[2], [1], [1], [2], [0, 0, 0, 1, 1, 2], [0], [0]>} : vector<2x8x8xbf16>, vector<2x8x128xbf16>, vector<2x8x128xf32> -> vector<2x8x128xf32>
    "tpu.trace_stop"() : () -> ()
    %59 = vector.shape_cast %58 : vector<2x8x128xf32> to vector<16x128xf32>
    %60 = arith.truncf %59 : vector<16x128xf32> to vector<16x128xbf16>
    %61 = vector.extract_strided_slice %39 {offsets = [0, 0], sizes = [128, 256], strides = [1, 1]} : vector<256x256xbf16> to vector<128x256xbf16>
    %cst_36 = arith.constant dense<0.000000e+00> : vector<16x256xf32>
    %62 = tpu.matmul %60, %61, %cst_36 {dimension_numbers = #tpu.dot_dimension_numbers<[1], [0], [0], [1], [0, 0, 1, 1], [], []>} : vector<16x128xbf16>, vector<128x256xbf16>, vector<16x256xf32> -> vector<16x256xf32>
    %63 = vector.extract_strided_slice %30 {offsets = [0, 0, 128], sizes = [2, 8, 128], strides = [1, 1, 1]} : vector<2x8x256xbf16> to vector<2x8x128xbf16>
    %64 = vector.extract_strided_slice %32 {offsets = [0, 0, 128], sizes = [2, 8, 128], strides = [1, 1, 1]} : vector<2x8x256xbf16> to vector<2x8x128xbf16>
    %65 = vector.extract_strided_slice %34 {offsets = [0, 0, 128], sizes = [2, 8, 128], strides = [1, 1, 1]} : vector<2x8x256xbf16> to vector<2x8x128xbf16>
    "tpu.trace_start"() <{level = 10 : i32, message = "bqd,bkd->bqk"}> : () -> ()
    %cst_37 = arith.constant dense<0.000000e+00> : vector<2x8x8xf32>
    %66 = tpu.matmul %63, %64, %cst_37 {dimension_numbers = #tpu.dot_dimension_numbers<[2], [2], [1], [1], [0, 0, 0, 1, 1, 1], [0], [0]>} : vector<2x8x128xbf16>, vector<2x8x128xbf16>, vector<2x8x8xf32> -> vector<2x8x8xf32>
    "tpu.trace_stop"() : () -> ()
    %cst_38 = arith.constant 0.0883883461 : f32
    %67 = vector.broadcast %cst_38 : f32 to vector<2x8x8xf32>
    %68 = arith.mulf %66, %67 : vector<2x8x8xf32>
    %69 = arith.addf %68, %37 : vector<2x8x8xf32>
    %70 = arith.addf %46, %69 : vector<2x8x8xf32>
    %cst_39 = arith.constant dense<0xFF800000> : vector<2x8xf32>
    %71 = vector.multi_reduction <maximumf>, %69, %cst_39 [2] : vector<2x8x8xf32> to vector<2x8xf32>
    %72 = vector.shape_cast %71 : vector<2x8xf32> to vector<2x8x1xf32>
    %73 = vector.broadcast %72 : vector<2x8x1xf32> to vector<2x8x8xf32>
    %74 = arith.subf %69, %73 : vector<2x8x8xf32>
    %75 = math.exp %74 : vector<2x8x8xf32>
    %cst_40 = arith.constant dense<0.000000e+00> : vector<2x8xf32>
    %76 = vector.multi_reduction <add>, %75, %cst_40 [2] : vector<2x8x8xf32> to vector<2x8xf32>
    %77 = vector.shape_cast %76 : vector<2x8xf32> to vector<2x8x1xf32>
    %78 = tpu.reciprocal %77 {approx = true} : vector<2x8x1xf32> -> vector<2x8x1xf32>
    %79 = vector.broadcast %78 : vector<2x8x1xf32> to vector<2x8x8xf32>
    %80 = arith.mulf %75, %79 : vector<2x8x8xf32>
    %81 = arith.truncf %80 : vector<2x8x8xf32> to vector<2x8x8xbf16>
    "tpu.trace_start"() <{level = 10 : i32, message = "bqk,bkd->bqd"}> : () -> ()
    %cst_41 = arith.constant dense<0.000000e+00> : vector<2x8x128xf32>
    %82 = tpu.matmul %81, %65, %cst_41 {dimension_numbers = #tpu.dot_dimension_numbers<[2], [1], [1], [2], [0, 0, 0, 1, 1, 2], [0], [0]>} : vector<2x8x8xbf16>, vector<2x8x128xbf16>, vector<2x8x128xf32> -> vector<2x8x128xf32>
    "tpu.trace_stop"() : () -> ()
    %83 = vector.shape_cast %82 : vector<2x8x128xf32> to vector<16x128xf32>
    %84 = arith.truncf %83 : vector<16x128xf32> to vector<16x128xbf16>
    %85 = vector.extract_strided_slice %39 {offsets = [128, 0], sizes = [128, 256], strides = [1, 1]} : vector<256x256xbf16> to vector<128x256xbf16>
    %cst_42 = arith.constant dense<0.000000e+00> : vector<16x256xf32>
    %86 = tpu.matmul %84, %85, %cst_42 {dimension_numbers = #tpu.dot_dimension_numbers<[1], [0], [0], [1], [0, 0, 1, 1], [], []>} : vector<16x128xbf16>, vector<128x256xbf16>, vector<16x256xf32> -> vector<16x256xf32>
    %87 = arith.addf %62, %86 : vector<16x256xf32>
    %cst_43 = arith.constant 5.000000e-01 : f32
    %88 = vector.broadcast %cst_43 : f32 to vector<2x8x8xf32>
    %89 = arith.mulf %70, %88 : vector<2x8x8xf32>
    %c0_44 = arith.constant 0 : index
    %c0_45 = arith.constant 0 : index
    %c0_46 = arith.constant 0 : index
    %c0_47 = arith.constant 0 : index
    %90 = vector.load %arg21[%c0_44, %c0_45, %c0_46, %c0_47] : memref<1x2x8x8xf32, #tpu.memory_space<vmem>>, vector<1x2x8x8xf32>
    %91 = vector.shape_cast %90 : vector<1x2x8x8xf32> to vector<2x8x8xf32>
    %92 = vector.shape_cast %89 : vector<2x8x8xf32> to vector<1x2x8x8xf32>
    tpu.vector_store %arg21[%c0_44, %c0_45, %c0_46, %c0_47], %92 {strides = array<i32>} : memref<1x2x8x8xf32, #tpu.memory_space<vmem>>, vector<1x2x8x8xf32>,
    %c0_48 = arith.constant 0 : index
    %c0_49 = arith.constant 0 : index
    %c0_50 = arith.constant 0 : index
    %93 = vector.load %arg11[%c0_48, %c0_49, %c0_50] : memref<1x1x256xf32, #tpu.memory_space<vmem>>, vector<1x1x256xf32>
    %94 = vector.shape_cast %93 : vector<1x1x256xf32> to vector<1x256xf32>
    %95 = vector.broadcast %94 : vector<1x256xf32> to vector<16x256xf32>
    %96 = arith.addf %87, %95 : vector<16x256xf32>
    %97 = arith.addf %96, %3 : vector<16x256xf32>
    %c0_51 = arith.constant 0 : index
    %c0_52 = arith.constant 0 : index
    %c0_53 = arith.constant 0 : index
    %98 = vector.load %arg12[%c0_51, %c0_52, %c0_53] : memref<1x1x256xf32, #tpu.memory_space<vmem>>, vector<1x1x256xf32>
    %99 = vector.shape_cast %98 : vector<1x1x256xf32> to vector<1x256xf32>
    %c0_54 = arith.constant 0 : index
    %c0_55 = arith.constant 0 : index
    %c0_56 = arith.constant 0 : index
    %100 = vector.load %arg13[%c0_54, %c0_55, %c0_56] : memref<1x1x256xf32, #tpu.memory_space<vmem>>, vector<1x1x256xf32>
    %101 = vector.shape_cast %100 : vector<1x1x256xf32> to vector<1x256xf32>
    %cst_57 = arith.constant dense<0.000000e+00> : vector<16xf32>
    %102 = vector.multi_reduction <add>, %97, %cst_57 [1] : vector<16x256xf32> to vector<16xf32>
    %103 = vector.shape_cast %102 : vector<16xf32> to vector<16x1xf32>
    %cst_58 = arith.constant 2.560000e+02 : f32
    %104 = vector.broadcast %cst_58 : f32 to vector<16x1xf32>
    %105 = arith.divf %103, %104 : vector<16x1xf32>
    %106 = vector.broadcast %105 : vector<16x1xf32> to vector<16x256xf32>
    %107 = arith.subf %97, %106 : vector<16x256xf32>
    %108 = vector.broadcast %105 : vector<16x1xf32> to vector<16x256xf32>
    %109 = arith.subf %97, %108 : vector<16x256xf32>
    %110 = arith.mulf %107, %109 : vector<16x256xf32>
    %cst_59 = arith.constant dense<0.000000e+00> : vector<16xf32>
    %111 = vector.multi_reduction <add>, %110, %cst_59 [1] : vector<16x256xf32> to vector<16xf32>
    %112 = vector.shape_cast %111 : vector<16xf32> to vector<16x1xf32>
    %cst_60 = arith.constant 2.560000e+02 : f32
    %113 = vector.broadcast %cst_60 : f32 to vector<16x1xf32>
    %114 = arith.divf %112, %113 : vector<16x1xf32>
    %115 = vector.broadcast %105 : vector<16x1xf32> to vector<16x256xf32>
    %116 = arith.subf %97, %115 : vector<16x256xf32>
    %cst_61 = arith.constant 9.99999996E-13 : f32
    %117 = vector.broadcast %cst_61 : f32 to vector<16x1xf32>
    %118 = arith.addf %114, %117 : vector<16x1xf32>
    %119 = math.rsqrt %118 : vector<16x1xf32>
    %120 = vector.broadcast %119 : vector<16x1xf32> to vector<16x256xf32>
    %121 = arith.mulf %116, %120 : vector<16x256xf32>
    %122 = vector.broadcast %99 : vector<1x256xf32> to vector<16x256xf32>
    %123 = arith.mulf %121, %122 : vector<16x256xf32>
    %124 = vector.broadcast %101 : vector<1x256xf32> to vector<16x256xf32>
    %125 = arith.addf %123, %124 : vector<16x256xf32>
    %126 = arith.truncf %125 : vector<16x256xf32> to vector<16x256xbf16>
    %c0_62 = arith.constant 0 : index
    %c0_63 = arith.constant 0 : index
    %c0_64 = arith.constant 0 : index
    %127 = vector.load %arg14[%c0_62, %c0_63, %c0_64] : memref<1x256x1024xbf16, #tpu.memory_space<vmem>>, vector<1x256x1024xbf16>
    %128 = vector.shape_cast %127 : vector<1x256x1024xbf16> to vector<256x1024xbf16>
    %cst_65 = arith.constant dense<0.000000e+00> : vector<16x1024xf32>
    %129 = tpu.matmul %126, %128, %cst_65 {dimension_numbers = #tpu.dot_dimension_numbers<[1], [0], [0], [1], [0, 0, 1, 1], [], []>} : vector<16x256xbf16>, vector<256x1024xbf16>, vector<16x1024xf32> -> vector<16x1024xf32>
    %c0_66 = arith.constant 0 : index
    %c0_67 = arith.constant 0 : index
    %c0_68 = arith.constant 0 : index
    %130 = vector.load %arg15[%c0_66, %c0_67, %c0_68] : memref<1x1x1024xf32, #tpu.memory_space<vmem>>, vector<1x1x1024xf32>
    %131 = vector.shape_cast %130 : vector<1x1x1024xf32> to vector<1x1024xf32>
    %132 = vector.broadcast %131 : vector<1x1024xf32> to vector<16x1024xf32>
    %133 = arith.addf %129, %132 : vector<16x1024xf32>
    %cst_69 = arith.constant 5.000000e-01 : f32
    %134 = vector.broadcast %cst_69 : f32 to vector<16x1024xf32>
    %135 = arith.mulf %133, %134 : vector<16x1024xf32>
    %cst_70 = arith.constant 0.707106769 : f32
    %136 = vector.broadcast %cst_70 : f32 to vector<16x1024xf32>
    %137 = arith.mulf %133, %136 : vector<16x1024xf32>
    %138 = math.absf %137 : vector<16x1024xf32>
    %cst_71 = arith.constant 0.327591091 : f32
    %139 = vector.broadcast %cst_71 : f32 to vector<16x1024xf32>
    %140 = arith.mulf %139, %138 : vector<16x1024xf32>
    %cst_72 = arith.constant 1.000000e+00 : f32
    %141 = vector.broadcast %cst_72 : f32 to vector<16x1024xf32>
    %142 = arith.addf %141, %140 : vector<16x1024xf32>
    %cst_73 = arith.constant 1.000000e+00 : f32
    %143 = vector.broadcast %cst_73 : f32 to vector<16x1024xf32>
    %144 = arith.divf %143, %142 : vector<16x1024xf32>
    %cst_74 = arith.constant 1.06140542 : f32
    %145 = vector.broadcast %cst_74 : f32 to vector<16x1024xf32>
    %146 = arith.mulf %145, %144 : vector<16x1024xf32>
    %cst_75 = arith.constant -1.45315206 : f32
    %147 = vector.broadcast %cst_75 : f32 to vector<16x1024xf32>
    %148 = arith.addf %146, %147 : vector<16x1024xf32>
    %149 = arith.mulf %148, %144 : vector<16x1024xf32>
    %cst_76 = arith.constant 1.42141378 : f32
    %150 = vector.broadcast %cst_76 : f32 to vector<16x1024xf32>
    %151 = arith.addf %149, %150 : vector<16x1024xf32>
    %152 = arith.mulf %151, %144 : vector<16x1024xf32>
    %cst_77 = arith.constant -0.284496725 : f32
    %153 = vector.broadcast %cst_77 : f32 to vector<16x1024xf32>
    %154 = arith.addf %152, %153 : vector<16x1024xf32>
    %155 = arith.mulf %154, %144 : vector<16x1024xf32>
    %cst_78 = arith.constant 0.254829586 : f32
    %156 = vector.broadcast %cst_78 : f32 to vector<16x1024xf32>
    %157 = arith.addf %155, %156 : vector<16x1024xf32>
    %158 = arith.mulf %157, %144 : vector<16x1024xf32>
    %cst_79 = arith.constant 0.000000e+00 : f32
    %159 = vector.broadcast %cst_79 : f32 to vector<16x1024xf32>
    %160 = arith.subf %159, %138 : vector<16x1024xf32>
    %161 = arith.mulf %160, %138 : vector<16x1024xf32>
    %162 = math.exp %161 : vector<16x1024xf32>
    %163 = arith.mulf %158, %162 : vector<16x1024xf32>
    %cst_80 = arith.constant 1.000000e+00 : f32
    %164 = vector.broadcast %cst_80 : f32 to vector<16x1024xf32>
    %165 = arith.subf %164, %163 : vector<16x1024xf32>
    %cst_81 = arith.constant 0.000000e+00 : f32
    %166 = vector.broadcast %cst_81 : f32 to vector<16x1024xf32>
    %167 = arith.cmpf oge, %137, %166 : vector<16x1024xf32>
    %cst_82 = arith.constant 0.000000e+00 : f32
    %168 = vector.broadcast %cst_82 : f32 to vector<16x1024xf32>
    %169 = arith.subf %168, %165 : vector<16x1024xf32>
    %170 = arith.select %167, %165, %169 : vector<16x1024xi1>, vector<16x1024xf32>
    %cst_83 = arith.constant 1.000000e+00 : f32
    %171 = vector.broadcast %cst_83 : f32 to vector<16x1024xf32>
    %172 = arith.addf %171, %170 : vector<16x1024xf32>
    %173 = arith.mulf %135, %172 : vector<16x1024xf32>
    %174 = arith.truncf %173 : vector<16x1024xf32> to vector<16x1024xbf16>
    %c0_84 = arith.constant 0 : index
    %c0_85 = arith.constant 0 : index
    %c0_86 = arith.constant 0 : index
    %175 = vector.load %arg16[%c0_84, %c0_85, %c0_86] : memref<1x1024x256xbf16, #tpu.memory_space<vmem>>, vector<1x1024x256xbf16>
    %176 = vector.shape_cast %175 : vector<1x1024x256xbf16> to vector<1024x256xbf16>
    %cst_87 = arith.constant dense<0.000000e+00> : vector<16x256xf32>
    %177 = tpu.matmul %174, %176, %cst_87 {dimension_numbers = #tpu.dot_dimension_numbers<[1], [0], [0], [1], [0, 0, 1, 1], [], []>} : vector<16x1024xbf16>, vector<1024x256xbf16>, vector<16x256xf32> -> vector<16x256xf32>
    %c0_88 = arith.constant 0 : index
    %c0_89 = arith.constant 0 : index
    %c0_90 = arith.constant 0 : index
    %178 = vector.load %arg17[%c0_88, %c0_89, %c0_90] : memref<1x1x256xf32, #tpu.memory_space<vmem>>, vector<1x1x256xf32>
    %179 = vector.shape_cast %178 : vector<1x1x256xf32> to vector<1x256xf32>
    %180 = vector.broadcast %179 : vector<1x256xf32> to vector<16x256xf32>
    %181 = arith.addf %177, %180 : vector<16x256xf32>
    %182 = arith.addf %181, %125 : vector<16x256xf32>
    %c0_91 = arith.constant 0 : index
    %c0_92 = arith.constant 0 : index
    %c0_93 = arith.constant 0 : index
    %183 = vector.load %arg18[%c0_91, %c0_92, %c0_93] : memref<1x1x256xf32, #tpu.memory_space<vmem>>, vector<1x1x256xf32>
    %184 = vector.shape_cast %183 : vector<1x1x256xf32> to vector<1x256xf32>
    %c0_94 = arith.constant 0 : index
    %c0_95 = arith.constant 0 : index
    %c0_96 = arith.constant 0 : index
    %185 = vector.load %arg19[%c0_94, %c0_95, %c0_96] : memref<1x1x256xf32, #tpu.memory_space<vmem>>, vector<1x1x256xf32>
    %186 = vector.shape_cast %185 : vector<1x1x256xf32> to vector<1x256xf32>
    %cst_97 = arith.constant dense<0.000000e+00> : vector<16xf32>
    %187 = vector.multi_reduction <add>, %182, %cst_97 [1] : vector<16x256xf32> to vector<16xf32>
    %188 = vector.shape_cast %187 : vector<16xf32> to vector<16x1xf32>
    %cst_98 = arith.constant 2.560000e+02 : f32
    %189 = vector.broadcast %cst_98 : f32 to vector<16x1xf32>
    %190 = arith.divf %188, %189 : vector<16x1xf32>
    %191 = vector.broadcast %190 : vector<16x1xf32> to vector<16x256xf32>
    %192 = arith.subf %182, %191 : vector<16x256xf32>
    %193 = vector.broadcast %190 : vector<16x1xf32> to vector<16x256xf32>
    %194 = arith.subf %182, %193 : vector<16x256xf32>
    %195 = arith.mulf %192, %194 : vector<16x256xf32>
    %cst_99 = arith.constant dense<0.000000e+00> : vector<16xf32>
    %196 = vector.multi_reduction <add>, %195, %cst_99 [1] : vector<16x256xf32> to vector<16xf32>
    %197 = vector.shape_cast %196 : vector<16xf32> to vector<16x1xf32>
    %cst_100 = arith.constant 2.560000e+02 : f32
    %198 = vector.broadcast %cst_100 : f32 to vector<16x1xf32>
    %199 = arith.divf %197, %198 : vector<16x1xf32>
    %200 = vector.broadcast %190 : vector<16x1xf32> to vector<16x256xf32>
    %201 = arith.subf %182, %200 : vector<16x256xf32>
    %cst_101 = arith.constant 9.99999996E-13 : f32
    %202 = vector.broadcast %cst_101 : f32 to vector<16x1xf32>
    %203 = arith.addf %199, %202 : vector<16x1xf32>
    %204 = math.rsqrt %203 : vector<16x1xf32>
    %205 = vector.broadcast %204 : vector<16x1xf32> to vector<16x256xf32>
    %206 = arith.mulf %201, %205 : vector<16x256xf32>
    %207 = vector.broadcast %184 : vector<1x256xf32> to vector<16x256xf32>
    %208 = arith.mulf %206, %207 : vector<16x256xf32>
    %209 = vector.broadcast %186 : vector<1x256xf32> to vector<16x256xf32>
    %210 = arith.addf %208, %209 : vector<16x256xf32>
    %c0_102 = arith.constant 0 : index
    %c0_103 = arith.constant 0 : index
    %211 = vector.load %arg22[%c0_102, %c0_103] : memref<16x256xf32, #tpu.memory_space<vmem>>, vector<16x256xf32>
    tpu.vector_store %arg22[%c0_102, %c0_103], %210 {strides = array<i32>} : memref<16x256xf32, #tpu.memory_space<vmem>>, vector<16x256xf32>,
    %212 = vector.shape_cast %210 : vector<16x256xf32> to vector<2x8x256xf32>
    %c0_104 = arith.constant 0 : index
    %c0_105 = arith.constant 0 : index
    %c0_106 = arith.constant 0 : index
    %c0_107 = arith.constant 0 : index
    %213 = vector.load %arg20[%c0_104, %c0_105, %c0_106, %c0_107] : memref<1x2x8x256xf32, #tpu.memory_space<vmem>>, vector<1x2x8x256xf32>
    %214 = vector.shape_cast %213 : vector<1x2x8x256xf32> to vector<2x8x256xf32>
    %215 = vector.shape_cast %212 : vector<2x8x256xf32> to vector<1x2x8x256xf32>
    tpu.vector_store %arg20[%c0_104, %c0_105, %c0_106, %c0_107], %215 {strides = array<i32>} : memref<1x2x8x256xf32, #tpu.memory_space<vmem>>, vector<1x2x8x256xf32>,
    return
  }
  func.func @transform_0(%arg0: i32) -> (i32, i32, i32) {
    %c0_i32 = arith.constant 0 : i32
    %c0_i32_0 = arith.constant 0 : i32
    %c0_i32_1 = arith.constant 0 : i32
    %c0_i32_2 = arith.constant 0 : i32
    return %c0_i32, %c0_i32_0, %c0_i32_1 : i32, i32, i32
  }
  func.func @transform_1(%arg0: i32) -> (i32, i32, i32) {
    %c0_i32 = arith.constant 0 : i32
    %c0_i32_0 = arith.constant 0 : i32
    %c0_i32_1 = arith.constant 0 : i32
    %c0_i32_2 = arith.constant 0 : i32
    return %c0_i32, %c0_i32_0, %c0_i32_1 : i32, i32, i32
  }
  func.func @transform_2(%arg0: i32) -> (i32, i32, i32) {
    %c0_i32 = arith.constant 0 : i32
    %c0_i32_0 = arith.constant 0 : i32
    %c0_i32_1 = arith.constant 0 : i32
    %c0_i32_2 = arith.constant 0 : i32
    return %c0_i32, %c0_i32_0, %c0_i32_1 : i32, i32, i32
  }
  func.func @transform_3(%arg0: i32) -> (i32, i32, i32) {
    %c0_i32 = arith.constant 0 : i32
    %c0_i32_0 = arith.constant 0 : i32
    %c0_i32_1 = arith.constant 0 : i32
    return %arg0, %c0_i32, %c0_i32_0 : i32, i32, i32
  }
  func.func @transform_4(%arg0: i32) -> (i32, i32, i32) {
    %c0_i32 = arith.constant 0 : i32
    %c0_i32_0 = arith.constant 0 : i32
    %c0_i32_1 = arith.constant 0 : i32
    return %arg0, %c0_i32, %c0_i32_0 : i32, i32, i32
  }
  func.func @transform_5(%arg0: i32) -> (i32, i32, i32) {
    %c0_i32 = arith.constant 0 : i32
    %c0_i32_0 = arith.constant 0 : i32
    %c0_i32_1 = arith.constant 0 : i32
    return %arg0, %c0_i32, %c0_i32_0 : i32, i32, i32
  }
  func.func @transform_6(%arg0: i32) -> (i32, i32, i32) {
    %c0_i32 = arith.constant 0 : i32
    %c0_i32_0 = arith.constant 0 : i32
    %c0_i32_1 = arith.constant 0 : i32
    return %arg0, %c0_i32, %c0_i32_0 : i32, i32, i32
  }
  func.func @transform_7(%arg0: i32) -> (i32, i32, i32) {
    %c0_i32 = arith.constant 0 : i32
    %c0_i32_0 = arith.constant 0 : i32
    %c0_i32_1 = arith.constant 0 : i32
    return %arg0, %c0_i32, %c0_i32_0 : i32, i32, i32
  }
  func.func @transform_8(%arg0: i32) -> (i32, i32, i32) {
    %c0_i32 = arith.constant 0 : i32
    %c0_i32_0 = arith.constant 0 : i32
    %c0_i32_1 = arith.constant 0 : i32
    return %arg0, %c0_i32, %c0_i32_0 : i32, i32, i32
  }
  func.func @transform_9(%arg0: i32) -> (i32, i32, i32) {
    %c0_i32 = arith.constant 0 : i32
    %c0_i32_0 = arith.constant 0 : i32
    %c0_i32_1 = arith.constant 0 : i32
    return %arg0, %c0_i32, %c0_i32_0 : i32, i32, i32
  }
  func.func @transform_10(%arg0: i32) -> (i32, i32, i32) {
    %c0_i32 = arith.constant 0 : i32
    %c0_i32_0 = arith.constant 0 : i32
    %c0_i32_1 = arith.constant 0 : i32
    return %arg0, %c0_i32, %c0_i32_0 : i32, i32, i32
  }
  func.func @transform_11(%arg0: i32) -> (i32, i32, i32) {
    %c0_i32 = arith.constant 0 : i32
    %c0_i32_0 = arith.constant 0 : i32
    %c0_i32_1 = arith.constant 0 : i32
    return %arg0, %c0_i32, %c0_i32_0 : i32, i32, i32
  }
  func.func @transform_12(%arg0: i32) -> (i32, i32, i32) {
    %c0_i32 = arith.constant 0 : i32
    %c0_i32_0 = arith.constant 0 : i32
    %c0_i32_1 = arith.constant 0 : i32
    return %arg0, %c0_i32, %c0_i32_0 : i32, i32, i32
  }
  func.func @transform_13(%arg0: i32) -> (i32, i32, i32) {
    %c0_i32 = arith.constant 0 : i32
    %c0_i32_0 = arith.constant 0 : i32
    %c0_i32_1 = arith.constant 0 : i32
    return %arg0, %c0_i32, %c0_i32_0 : i32, i32, i32
  }
  func.func @transform_14(%arg0: i32) -> (i32, i32, i32) {
    %c0_i32 = arith.constant 0 : i32
    %c0_i32_0 = arith.constant 0 : i32
    %c0_i32_1 = arith.constant 0 : i32
    return %arg0, %c0_i32, %c0_i32_0 : i32, i32, i32
  }
  func.func @transform_15(%arg0: i32) -> (i32, i32, i32) {
    %c0_i32 = arith.constant 0 : i32
    %c0_i32_0 = arith.constant 0 : i32
    %c0_i32_1 = arith.constant 0 : i32
    return %arg0, %c0_i32, %c0_i32_0 : i32, i32, i32
  }
  func.func @transform_16(%arg0: i32) -> (i32, i32, i32) {
    %c0_i32 = arith.constant 0 : i32
    %c0_i32_0 = arith.constant 0 : i32
    %c0_i32_1 = arith.constant 0 : i32
    return %arg0, %c0_i32, %c0_i32_0 : i32, i32, i32
  }
  func.func @transform_17(%arg0: i32) -> (i32, i32, i32) {
    %c0_i32 = arith.constant 0 : i32
    %c0_i32_0 = arith.constant 0 : i32
    %c0_i32_1 = arith.constant 0 : i32
    return %arg0, %c0_i32, %c0_i32_0 : i32, i32, i32
  }
  func.func @transform_18(%arg0: i32) -> (i32, i32, i32) {
    %c0_i32 = arith.constant 0 : i32
    %c0_i32_0 = arith.constant 0 : i32
    %c0_i32_1 = arith.constant 0 : i32
    return %arg0, %c0_i32, %c0_i32_0 : i32, i32, i32
  }
  func.func @transform_19(%arg0: i32) -> (i32, i32, i32, i32) {
    %c0_i32 = arith.constant 0 : i32
    %c0_i32_0 = arith.constant 0 : i32
    %c0_i32_1 = arith.constant 0 : i32
    %c0_i32_2 = arith.constant 0 : i32
    return %arg0, %c0_i32, %c0_i32_0, %c0_i32_1 : i32, i32, i32, i32
  }
  func.func @transform_20(%arg0: i32) -> (i32, i32, i32, i32) {
    %c0_i32 = arith.constant 0 : i32
    %c0_i32_0 = arith.constant 0 : i32
    %c0_i32_1 = arith.constant 0 : i32
    %c0_i32_2 = arith.constant 0 : i32
    return %arg0, %c0_i32, %c0_i32_0, %c0_i32_1 : i32, i32, i32, i32
  }
}

</mosaic_0001>

<llo_original>
// kernel: bert_cross_encoder_attn_map.1
$region0: #{bert_cross_encoder_attn_map.1}
  #allocation0 [shape = 'u32[]', space=smem, size = 0x4, offset = 0x4, fixed_abs, tag = 'smem constant byte address 0x4 - core index']
  #allocation1 [shape = 'u32[144,128]{1,0:T(1,128)}', space=vmem, size = 0x12000, scoped, tag = 'internal scratch']
  #allocation2 [shape = 'f32[16,256]{1,0:T(8,128)}', space=vmem, size = 0x4000, scoped, tag = 'scratch operand']
  %s0 = inlined_call_operand.hbm [shape: f32[2,8,256], index: 0, kind: input, shape index: {}]
  %s1 = inlined_call_operand.hbm [shape: f32[2,8,256], index: 1, kind: input, shape index: {}]
  %s2 = inlined_call_operand.hbm [shape: f32[2,1,8], index: 2, kind: input, shape index: {}]
  %s3 = inlined_call_operand.hbm [shape: bf16[2,256,256], index: 3, kind: input, shape index: {}]
  %s4 = inlined_call_operand.vmem [shape: f32[2,1,256], index: 4, kind: input, shape index: {}]
  %s5 = inlined_call_operand.hbm [shape: bf16[2,256,256], index: 5, kind: input, shape index: {}]
  %s6 = inlined_call_operand.vmem [shape: f32[2,1,256], index: 6, kind: input, shape index: {}]
  %s7 = inlined_call_operand.hbm [shape: bf16[2,256,256], index: 7, kind: input, shape index: {}]
  %s8 = inlined_call_operand.hbm [shape: f32[2,1,256], index: 8, kind: input, shape index: {}]
  %s9 = inlined_call_operand.hbm [shape: bf16[2,256,256], index: 9, kind: input, shape index: {}]
  %s10 = inlined_call_operand.hbm [shape: f32[2,1,256], index: 10, kind: input, shape index: {}]
  %s11 = inlined_call_operand.hbm [shape: f32[2,1,256], index: 11, kind: input, shape index: {}]
  %s12 = inlined_call_operand.hbm [shape: f32[2,1,256], index: 12, kind: input, shape index: {}]
  %s13 = inlined_call_operand.hbm [shape: bf16[2,256,1024], index: 13, kind: input, shape index: {}]
  %s14 = inlined_call_operand.vmem [shape: f32[2,1,1024], index: 14, kind: input, shape index: {}]
  %s15 = inlined_call_operand.hbm [shape: bf16[2,1024,256], index: 15, kind: input, shape index: {}]
  %s16 = inlined_call_operand.vmem [shape: f32[2,1,256], index: 16, kind: input, shape index: {}]
  %s17 = inlined_call_operand.hbm [shape: f32[2,1,256], index: 17, kind: input, shape index: {}]
  %s18 = inlined_call_operand.vmem [shape: f32[2,1,256], index: 18, kind: input, shape index: {}]
  %s19 = inlined_call_operand.vmem [shape: f32[2,2,8,256], index: 19, kind: output, shape index: {0}]
  %s20 = inlined_call_operand.vmem [shape: f32[2,2,8,8], index: 20, kind: output, shape index: {1}]
  %21 = xla_tuple %s19, %s20
  %s22 = sld [smem:[#allocation0]]
  $region177: #{bert_cross_encoder_attn_map.1} parent=0
    _
  %s24 = ssub.s32 1, %s22
  %s25 = scalar_select 0, %s24, %s22
  $region1: #{bert_cross_encoder_attn_map.1} parent=0
    #allocation3 [shape = 'u8[16384]{0}', space=vmem, size = 0x4000, scoped, tag = 'input window, operand 0, single buffered']
    #allocation4 [shape = 's32[2]{0}', space=sflag, size = 0x8, scoped, tag = 'scoped memory for bert_cross_encoder_attn_map.1']
    #allocation5 [shape = 'u8[16384]{0}', space=vmem, size = 0x4000, scoped, tag = 'input window, operand 1, single buffered']
    #allocation6 [shape = 's32[1]{0}', space=sflag, size = 0x4, scoped, tag = 'scoped memory for bert_cross_encoder_attn_map.1']
    #allocation7 [shape = 'u8[1024]{0}', space=vmem, size = 0x400, scoped, tag = 'input window, operand 2, single buffered']
    #allocation8 [shape = 'u8[262144]{0}', space=vmem, size = 0x40000, scoped, tag = 'input window, operand 3']
    #allocation9 [shape = 's32[2]{0}', space=sflag, size = 0x8, scoped, tag = 'scoped memory for bert_cross_encoder_attn_map.1']
    #allocation10 [shape = 'u8[262144]{0}', space=vmem, size = 0x40000, scoped, tag = 'input window, operand 5']
    #allocation11 [shape = 'u8[262144]{0}', space=vmem, size = 0x40000, scoped, tag = 'input window, operand 7']
    #allocation12 [shape = 's32[2]{0}', space=sflag, size = 0x8, scoped, tag = 'scoped memory for bert_cross_encoder_attn_map.1']
    #allocation13 [shape = 'u8[2048]{0}', space=vmem, size = 0x800, scoped, tag = 'input window, operand 8']
    #allocation14 [shape = 'u8[262144]{0}', space=vmem, size = 0x40000, scoped, tag = 'input window, operand 9']
    #allocation15 [shape = 's32[2]{0}', space=sflag, size = 0x8, scoped, tag = 'scoped memory for bert_cross_encoder_attn_map.1']
    #allocation16 [shape = 'u8[2048]{0}', space=vmem, size = 0x800, scoped, tag = 'input window, operand 10']
    #allocation17 [shape = 'u8[2048]{0}', space=vmem, size = 0x800, scoped, tag = 'input window, operand 11']
    #allocation18 [shape = 's32[2]{0}', space=sflag, size = 0x8, scoped, tag = 'scoped memory for bert_cross_encoder_attn_map.1']
    #allocation19 [shape = 'u8[2048]{0}', space=vmem, size = 0x800, scoped, tag = 'input window, operand 12']
    #allocation20 [shape = 'u8[1048576]{0}', space=vmem, size = 0x100000, scoped, tag = 'input window, operand 13']
    #allocation21 [shape = 's32[2]{0}', space=sflag, size = 0x8, scoped, tag = 'scoped memory for bert_cross_encoder_attn_map.1']
    #allocation22 [shape = 'u8[1048576]{0}', space=vmem, size = 0x100000, scoped, tag = 'input window, operand 15']
    #allocation23 [shape = 'u8[2048]{0}', space=vmem, size = 0x800, scoped, tag = 'input window, operand 17']
    #allocation24 [shape = 's32[2]{0}', space=sflag, size = 0x8, scoped, tag = 'scoped memory for bert_cross_encoder_attn_map.1']
    %26 = vsyncpa [#allocation4], 0
    %27 = vsyncpa [#allocation6], 0
    %28 = vsyncpa [#allocation9], 0
    %s29 = scalar_lea.sflag [#allocation9], 1
    %30 = vsyncpa %s29, 0
    %31 = vsyncpa [#allocation12], 0
    %s32 = scalar_lea.sflag [#allocation12], 1
    %33 = vsyncpa %s32, 0
    %34 = vsyncpa [#allocation15], 0
    %s35 = scalar_lea.sflag [#allocation15], 1
    %36 = vsyncpa %s35, 0
    %37 = vsyncpa [#allocation18], 0
    %s38 = scalar_lea.sflag [#allocation18], 1
    %39 = vsyncpa %s38, 0
    %40 = vsyncpa [#allocation21], 0
    %s41 = scalar_lea.sflag [#allocation21], 1
    %42 = vsyncpa %s41, 0
    %43 = vsyncpa [#allocation24], 0
    %s44 = scalar_lea.sflag [#allocation24], 1
    %45 = vsyncpa %s44, 0
    loop: start=0, step=1, limit=4
    $region2: #{bert_cross_encoder_attn_map.1} parent=1 // loop_pre_header
      _
    $region3: #{bert_cross_encoder_attn_map.1} parent=1 // loop_header
      %s47 = sphi 0, %s51
      %p48 = scmp.ge.s32.totalorder %s47, 4
      %s55 = sphi 0, %s55
      %s57 = sphi 0, %s55
      %s58 = sphi 0, %s57
      %s72 = sphi 0, %s58
      %s76 = sphi 0, %s76
      %s78 = sphi 0, %s76
      %s79 = sphi 0, %s78
      %s93 = sphi 0, %s79
      %s97 = sphi 0, %s97
      %s99 = sphi 0, %s97
      %s100 = sphi 0, %s99
      %s114 = sphi 0, %s100
      %s120 = sphi 0, %s122
      %s123 = sphi 0, %s120
      %s124 = sphi 0, %s123
      %s140 = sphi 0, %s124
      %s146 = sphi 0, %s148
      %s149 = sphi 0, %s146
      %s150 = sphi 0, %s149
      %s166 = sphi 0, %s150
      %s172 = sphi 0, %s174
      %s175 = sphi 0, %s172
      %s176 = sphi 0, %s175
      %s192 = sphi 0, %s176
      %s198 = sphi 0, %s200
      %s201 = sphi 0, %s198
      %s202 = sphi 0, %s201
      %s218 = sphi 0, %s202
      %s224 = sphi 0, %s226
      %s227 = sphi 0, %s224
      %s228 = sphi 0, %s227
      %s244 = sphi 0, %s228
      %s250 = sphi 0, %s252
      %s253 = sphi 0, %s250
      %s254 = sphi 0, %s253
      %s270 = sphi 0, %s254
      %s276 = sphi 0, %s278
      %s279 = sphi 0, %s276
      %s280 = sphi 0, %s279
      %s296 = sphi 0, %s280
      %s302 = sphi 0, %s304
      %s305 = sphi 0, %s302
      %s306 = sphi 0, %s305
      %s322 = sphi 0, %s306
      %s328 = sphi 0, %s330
      %s331 = sphi 0, %s328
      %s332 = sphi 0, %s331
      %s348 = sphi 0, %s332
      %s354 = sphi 0, %s356
      %s357 = sphi 0, %s354
      %s358 = sphi 0, %s357
      %s374 = sphi 0, %s358
      %s380 = sphi 0, %s382
      %s383 = sphi 0, %s380
      %s384 = sphi 0, %s383
      %s400 = sphi 0, %s384
      %s406 = sphi 0, %s408
      %s409 = sphi 0, %s406
      %s410 = sphi 0, %s409
      %s426 = sphi 0, %s410
      %s432 = sphi 0, %s434
      %s435 = sphi 0, %s432
      %s436 = sphi 0, %s435
      %s452 = sphi 0, %s436
      %s458 = sphi 0, %s460
      %s461 = sphi 0, %s458
      %s462 = sphi 0, %s461
      %s478 = sphi 0, %s462
      %s484 = sphi 0, %s486
      %s487 = sphi 0, %s484
      %s488 = sphi 0, %s487
      %s504 = sphi 0, %s488
      %s510 = sphi 0, %s512
      %s513 = sphi 0, %s510
      %s514 = sphi 0, %s513
      %s530 = sphi 0, %s514
      %s536 = sphi 0, %s538
      %s539 = sphi 0, %s536
      %s540 = sphi 0, %s539
      %s556 = sphi 0, %s540
      %s562 = sphi 0, %s564
      %s565 = sphi 0, %s562
      %s566 = sphi 0, %s565
      %s582 = sphi 0, %s566
    $region4: #{bert_cross_encoder_attn_map.1} parent=1 // loop_header_branch
      %50 = sbr.rel (%p48) target = $region8
    $region5: #{bert_cross_encoder_attn_map.1} parent=1 // loop_body
      %s52 = ssub.s32 %s47, 1
      %s53 = ssub.s32 %s47, 2
      %s54 = sadd.s32 %s47, 1
      %s56 = sadd.s32 %s55, 1
      %p59 = scmp.eq.s32.totalorder %s47, 1
      %p60 = scmp.ne.s32.totalorder %s55, %s57
      %p61 = scmp.eq.s32.totalorder %s47, 0
      %p62 = por %p60, %p61
      %p63 = scmp.ne.s32.totalorder %s55, %s57
      %p64 = scmp.eq.s32.totalorder %s52, 1
      %p65 = por %p63, %p64
      %p66 = scmp.ne.s32.totalorder %s57, %s58
      %p67 = scmp.eq.s32.totalorder %s52, 0
      %p68 = por %p66, %p67
      %p69 = scmp.ne.s32.totalorder %s57, %s58
      %p70 = scmp.eq.s32.totalorder %s53, 1
      %p71 = por %p69, %p70
      %p73 = scmp.ne.s32.totalorder %s58, %s72
      %p74 = scmp.eq.s32.totalorder %s53, 0
      %p75 = por %p73, %p74
      %s77 = sadd.s32 %s76, 1
      %p80 = scmp.eq.s32.totalorder %s47, 1
      %p81 = scmp.ne.s32.totalorder %s76, %s78
      %p82 = scmp.eq.s32.totalorder %s47, 0
      %p83 = por %p81, %p82
      %p84 = scmp.ne.s32.totalorder %s76, %s78
      %p85 = scmp.eq.s32.totalorder %s52, 1
      %p86 = por %p84, %p85
      %p87 = scmp.ne.s32.totalorder %s78, %s79
      %p88 = scmp.eq.s32.totalorder %s52, 0
      %p89 = por %p87, %p88
      %p90 = scmp.ne.s32.totalorder %s78, %s79
      %p91 = scmp.eq.s32.totalorder %s53, 1
      %p92 = por %p90, %p91
      %p94 = scmp.ne.s32.totalorder %s79, %s93
      %p95 = scmp.eq.s32.totalorder %s53, 0
      %p96 = por %p94, %p95
      %s98 = sadd.s32 %s97, 1
      %p101 = scmp.eq.s32.totalorder %s47, 1
      %p102 = scmp.ne.s32.totalorder %s97, %s99
      %p103 = scmp.eq.s32.totalorder %s47, 0
      %p104 = por %p102, %p103
      %p105 = scmp.ne.s32.totalorder %s97, %s99
      %p106 = scmp.eq.s32.totalorder %s52, 1
      %p107 = por %p105, %p106
      %p108 = scmp.ne.s32.totalorder %s99, %s100
      %p109 = scmp.eq.s32.totalorder %s52, 0
      %p110 = por %p108, %p109
      %p111 = scmp.ne.s32.totalorder %s99, %s100
      %p112 = scmp.eq.s32.totalorder %s53, 1
      %p113 = por %p111, %p112
      %p115 = scmp.ne.s32.totalorder %s100, %s114
      %p116 = scmp.eq.s32.totalorder %s53, 0
      %p117 = por %p115, %p116
      %s118 = ssub.s32 %s47, %s54
      %p119 = scmp.eq.s32.totalorder %s118, 0
      %s121 = sadd.s32 %s120, 1
      %s122 = scalar_select %p119, %s120, %s121
      %p125 = pneg %p119
      %p126 = scmp.eq.s32.totalorder %s47, 1
      %p127 = por %p125, %p126
      %p128 = scmp.ne.s32.totalorder %s120, %s123
      %p129 = scmp.eq.s32.totalorder %s47, 0
      %p130 = por %p128, %p129
      %p131 = scmp.ne.s32.totalorder %s120, %s123
      %p132 = scmp.eq.s32.totalorder %s52, 1
      %p133 = por %p131, %p132
      %p134 = scmp.ne.s32.totalorder %s123, %s124
      %p135 = scmp.eq.s32.totalorder %s52, 0
      %p136 = por %p134, %p135
      %p137 = scmp.ne.s32.totalorder %s123, %s124
      %p138 = scmp.eq.s32.totalorder %s53, 1
      %p139 = por %p137, %p138
      %p141 = scmp.ne.s32.totalorder %s124, %s140
      %p142 = scmp.eq.s32.totalorder %s53, 0
      %p143 = por %p141, %p142
      %s144 = ssub.s32 %s47, %s54
      %p145 = scmp.eq.s32.totalorder %s144, 0
      %s147 = sadd.s32 %s146, 1
      %s148 = scalar_select %p145, %s146, %s147
      %p151 = pneg %p145
      %p152 = scmp.eq.s32.totalorder %s47, 1
      %p153 = por %p151, %p152
      %p154 = scmp.ne.s32.totalorder %s146, %s149
      %p155 = scmp.eq.s32.totalorder %s47, 0
      %p156 = por %p154, %p155
      %p157 = scmp.ne.s32.totalorder %s146, %s149
      %p158 = scmp.eq.s32.totalorder %s52, 1
      %p159 = por %p157, %p158
      %p160 = scmp.ne.s32.totalorder %s149, %s150
      %p161 = scmp.eq.s32.totalorder %s52, 0
      %p162 = por %p160, %p161
      %p163 = scmp.ne.s32.totalorder %s149, %s150
      %p164 = scmp.eq.s32.totalorder %s53, 1
      %p165 = por %p163, %p164
      %p167 = scmp.ne.s32.totalorder %s150, %s166
      %p168 = scmp.eq.s32.totalorder %s53, 0
      %p169 = por %p167, %p168
      %s170 = ssub.s32 %s47, %s54
      %p171 = scmp.eq.s32.totalorder %s170, 0
      %s173 = sadd.s32 %s172, 1
      %s174 = scalar_select %p171, %s172, %s173
      %p177 = pneg %p171
      %p178 = scmp.eq.s32.totalorder %s47, 1
      %p179 = por %p177, %p178
      %p180 = scmp.ne.s32.totalorder %s172, %s175
      %p181 = scmp.eq.s32.totalorder %s47, 0
      %p182 = por %p180, %p181
      %p183 = scmp.ne.s32.totalorder %s172, %s175
      %p184 = scmp.eq.s32.totalorder %s52, 1
      %p185 = por %p183, %p184
      %p186 = scmp.ne.s32.totalorder %s175, %s176
      %p187 = scmp.eq.s32.totalorder %s52, 0
      %p188 = por %p186, %p187
      %p189 = scmp.ne.s32.totalorder %s175, %s176
      %p190 = scmp.eq.s32.totalorder %s53, 1
      %p191 = por %p189, %p190
      %p193 = scmp.ne.s32.totalorder %s176, %s192
      %p194 = scmp.eq.s32.totalorder %s53, 0
      %p195 = por %p193, %p194
      %s196 = ssub.s32 %s47, %s54
      %p197 = scmp.eq.s32.totalorder %s196, 0
      %s199 = sadd.s32 %s198, 1
      %s200 = scalar_select %p197, %s198, %s199
      %p203 = pneg %p197
      %p204 = scmp.eq.s32.totalorder %s47, 1
      %p205 = por %p203, %p204
      %p206 = scmp.ne.s32.totalorder %s198, %s201
      %p207 = scmp.eq.s32.totalorder %s47, 0
      %p208 = por %p206, %p207
      %p209 = scmp.ne.s32.totalorder %s198, %s201
      %p210 = scmp.eq.s32.totalorder %s52, 1
      %p211 = por %p209, %p210
      %p212 = scmp.ne.s32.totalorder %s201, %s202
      %p213 = scmp.eq.s32.totalorder %s52, 0
      %p214 = por %p212, %p213
      %p215 = scmp.ne.s32.totalorder %s201, %s202
      %p216 = scmp.eq.s32.totalorder %s53, 1
      %p217 = por %p215, %p216
      %p219 = scmp.ne.s32.totalorder %s202, %s218
      %p220 = scmp.eq.s32.totalorder %s53, 0
      %p221 = por %p219, %p220
      %s222 = ssub.s32 %s47, %s54
      %p223 = scmp.eq.s32.totalorder %s222, 0
      %s225 = sadd.s32 %s224, 1
      %s226 = scalar_select %p223, %s224, %s225
      %p229 = pneg %p223
      %p230 = scmp.eq.s32.totalorder %s47, 1
      %p231 = por %p229, %p230
      %p232 = scmp.ne.s32.totalorder %s224, %s227
      %p233 = scmp.eq.s32.totalorder %s47, 0
      %p234 = por %p232, %p233
      %p235 = scmp.ne.s32.totalorder %s224, %s227
      %p236 = scmp.eq.s32.totalorder %s52, 1
      %p237 = por %p235, %p236
      %p238 = scmp.ne.s32.totalorder %s227, %s228
      %p239 = scmp.eq.s32.totalorder %s52, 0
      %p240 = por %p238, %p239
      %p241 = scmp.ne.s32.totalorder %s227, %s228
      %p242 = scmp.eq.s32.totalorder %s53, 1
      %p243 = por %p241, %p242
      %p245 = scmp.ne.s32.totalorder %s228, %s244
      %p246 = scmp.eq.s32.totalorder %s53, 0
      %p247 = por %p245, %p246
      %s248 = ssub.s32 %s47, %s54
      %p249 = scmp.eq.s32.totalorder %s248, 0
      %s251 = sadd.s32 %s250, 1
      %s252 = scalar_select %p249, %s250, %s251
      %p255 = pneg %p249
      %p256 = scmp.eq.s32.totalorder %s47, 1
      %p257 = por %p255, %p256
      %p258 = scmp.ne.s32.totalorder %s250, %s253
      %p259 = scmp.eq.s32.totalorder %s47, 0
      %p260 = por %p258, %p259
      %p261 = scmp.ne.s32.totalorder %s250, %s253
      %p262 = scmp.eq.s32.totalorder %s52, 1
      %p263 = por %p261, %p262
      %p264 = scmp.ne.s32.totalorder %s253, %s254
      %p265 = scmp.eq.s32.totalorder %s52, 0
      %p266 = por %p264, %p265
      %p267 = scmp.ne.s32.totalorder %s253, %s254
      %p268 = scmp.eq.s32.totalorder %s53, 1
      %p269 = por %p267, %p268
      %p271 = scmp.ne.s32.totalorder %s254, %s270
      %p272 = scmp.eq.s32.totalorder %s53, 0
      %p273 = por %p271, %p272
      %s274 = ssub.s32 %s47, %s54
      %p275 = scmp.eq.s32.totalorder %s274, 0
      %s277 = sadd.s32 %s276, 1
      %s278 = scalar_select %p275, %s276, %s277
      %p281 = pneg %p275
      %p282 = scmp.eq.s32.totalorder %s47, 1
      %p283 = por %p281, %p282
      %p284 = scmp.ne.s32.totalorder %s276, %s279
      %p285 = scmp.eq.s32.totalorder %s47, 0
      %p286 = por %p284, %p285
      %p287 = scmp.ne.s32.totalorder %s276, %s279
      %p288 = scmp.eq.s32.totalorder %s52, 1
      %p289 = por %p287, %p288
      %p290 = scmp.ne.s32.totalorder %s279, %s280
      %p291 = scmp.eq.s32.totalorder %s52, 0
      %p292 = por %p290, %p291
      %p293 = scmp.ne.s32.totalorder %s279, %s280
      %p294 = scmp.eq.s32.totalorder %s53, 1
      %p295 = por %p293, %p294
      %p297 = scmp.ne.s32.totalorder %s280, %s296
      %p298 = scmp.eq.s32.totalorder %s53, 0
      %p299 = por %p297, %p298
      %s300 = ssub.s32 %s47, %s54
      %p301 = scmp.eq.s32.totalorder %s300, 0
      %s303 = sadd.s32 %s302, 1
      %s304 = scalar_select %p301, %s302, %s303
      %p307 = pneg %p301
      %p308 = scmp.eq.s32.totalorder %s47, 1
      %p309 = por %p307, %p308
      %p310 = scmp.ne.s32.totalorder %s302, %s305
      %p311 = scmp.eq.s32.totalorder %s47, 0
      %p312 = por %p310, %p311
      %p313 = scmp.ne.s32.totalorder %s302, %s305
      %p314 = scmp.eq.s32.totalorder %s52, 1
      %p315 = por %p313, %p314
      %p316 = scmp.ne.s32.totalorder %s305, %s306
      %p317 = scmp.eq.s32.totalorder %s52, 0
      %p318 = por %p316, %p317
      %p319 = scmp.ne.s32.totalorder %s305, %s306
      %p320 = scmp.eq.s32.totalorder %s53, 1
      %p321 = por %p319, %p320
      %p323 = scmp.ne.s32.totalorder %s306, %s322
      %p324 = scmp.eq.s32.totalorder %s53, 0
      %p325 = por %p323, %p324
      %s326 = ssub.s32 %s47, %s54
      %p327 = scmp.eq.s32.totalorder %s326, 0
      %s329 = sadd.s32 %s328, 1
      %s330 = scalar_select %p327, %s328, %s329
      %p333 = pneg %p327
      %p334 = scmp.eq.s32.totalorder %s47, 1
      %p335 = por %p333, %p334
      %p336 = scmp.ne.s32.totalorder %s328, %s331
      %p337 = scmp.eq.s32.totalorder %s47, 0
      %p338 = por %p336, %p337
      %p339 = scmp.ne.s32.totalorder %s328, %s331
      %p340 = scmp.eq.s32.totalorder %s52, 1
      %p341 = por %p339, %p340
      %p342 = scmp.ne.s32.totalorder %s331, %s332
      %p343 = scmp.eq.s32.totalorder %s52, 0
      %p344 = por %p342, %p343
      %p345 = scmp.ne.s32.totalorder %s331, %s332
      %p346 = scmp.eq.s32.totalorder %s53, 1
      %p347 = por %p345, %p346
      %p349 = scmp.ne.s32.totalorder %s332, %s348
      %p350 = scmp.eq.s32.totalorder %s53, 0
      %p351 = por %p349, %p350
      %s352 = ssub.s32 %s47, %s54
      %p353 = scmp.eq.s32.totalorder %s352, 0
      %s355 = sadd.s32 %s354, 1
      %s356 = scalar_select %p353, %s354, %s355
      %p359 = pneg %p353
      %p360 = scmp.eq.s32.totalorder %s47, 1
      %p361 = por %p359, %p360
      %p362 = scmp.ne.s32.totalorder %s354, %s357
      %p363 = scmp.eq.s32.totalorder %s47, 0
      %p364 = por %p362, %p363
      %p365 = scmp.ne.s32.totalorder %s354, %s357
      %p366 = scmp.eq.s32.totalorder %s52, 1
      %p367 = por %p365, %p366
      %p368 = scmp.ne.s32.totalorder %s357, %s358
      %p369 = scmp.eq.s32.totalorder %s52, 0
      %p370 = por %p368, %p369
      %p371 = scmp.ne.s32.totalorder %s357, %s358
      %p372 = scmp.eq.s32.totalorder %s53, 1
      %p373 = por %p371, %p372
      %p375 = scmp.ne.s32.totalorder %s358, %s374
      %p376 = scmp.eq.s32.totalorder %s53, 0
      %p377 = por %p375, %p376
      %s378 = ssub.s32 %s47, %s54
      %p379 = scmp.eq.s32.totalorder %s378, 0
      %s381 = sadd.s32 %s380, 1
      %s382 = scalar_select %p379, %s380, %s381
      %p385 = pneg %p379
      %p386 = scmp.eq.s32.totalorder %s47, 1
      %p387 = por %p385, %p386
      %p388 = scmp.ne.s32.totalorder %s380, %s383
      %p389 = scmp.eq.s32.totalorder %s47, 0
      %p390 = por %p388, %p389
      %p391 = scmp.ne.s32.totalorder %s380, %s383
      %p392 = scmp.eq.s32.totalorder %s52, 1
      %p393 = por %p391, %p392
      %p394 = scmp.ne.s32.totalorder %s383, %s384
      %p395 = scmp.eq.s32.totalorder %s52, 0
      %p396 = por %p394, %p395
      %p397 = scmp.ne.s32.totalorder %s383, %s384
      %p398 = scmp.eq.s32.totalorder %s53, 1
      %p399 = por %p397, %p398
      %p401 = scmp.ne.s32.totalorder %s384, %s400
      %p402 = scmp.eq.s32.totalorder %s53, 0
      %p403 = por %p401, %p402
      %s404 = ssub.s32 %s47, %s54
      %p405 = scmp.eq.s32.totalorder %s404, 0
      %s407 = sadd.s32 %s406, 1
      %s408 = scalar_select %p405, %s406, %s407
      %p411 = pneg %p405
      %p412 = scmp.eq.s32.totalorder %s47, 1
      %p413 = por %p411, %p412
      %p414 = scmp.ne.s32.totalorder %s406, %s409
      %p415 = scmp.eq.s32.totalorder %s47, 0
      %p416 = por %p414, %p415
      %p417 = scmp.ne.s32.totalorder %s406, %s409
      %p418 = scmp.eq.s32.totalorder %s52, 1
      %p419 = por %p417, %p418
      %p420 = scmp.ne.s32.totalorder %s409, %s410
      %p421 = scmp.eq.s32.totalorder %s52, 0
      %p422 = por %p420, %p421
      %p423 = scmp.ne.s32.totalorder %s409, %s410
      %p424 = scmp.eq.s32.totalorder %s53, 1
      %p425 = por %p423, %p424
      %p427 = scmp.ne.s32.totalorder %s410, %s426
      %p428 = scmp.eq.s32.totalorder %s53, 0
      %p429 = por %p427, %p428
      %s430 = ssub.s32 %s47, %s54
      %p431 = scmp.eq.s32.totalorder %s430, 0
      %s433 = sadd.s32 %s432, 1
      %s434 = scalar_select %p431, %s432, %s433
      %p437 = pneg %p431
      %p438 = scmp.eq.s32.totalorder %s47, 1
      %p439 = por %p437, %p438
      %p440 = scmp.ne.s32.totalorder %s432, %s435
      %p441 = scmp.eq.s32.totalorder %s47, 0
      %p442 = por %p440, %p441
      %p443 = scmp.ne.s32.totalorder %s432, %s435
      %p444 = scmp.eq.s32.totalorder %s52, 1
      %p445 = por %p443, %p444
      %p446 = scmp.ne.s32.totalorder %s435, %s436
      %p447 = scmp.eq.s32.totalorder %s52, 0
      %p448 = por %p446, %p447
      %p449 = scmp.ne.s32.totalorder %s435, %s436
      %p450 = scmp.eq.s32.totalorder %s53, 1
      %p451 = por %p449, %p450
      %p453 = scmp.ne.s32.totalorder %s436, %s452
      %p454 = scmp.eq.s32.totalorder %s53, 0
      %p455 = por %p453, %p454
      %s456 = ssub.s32 %s47, %s54
      %p457 = scmp.eq.s32.totalorder %s456, 0
      %s459 = sadd.s32 %s458, 1
      %s460 = scalar_select %p457, %s458, %s459
      %p463 = pneg %p457
      %p464 = scmp.eq.s32.totalorder %s47, 1
      %p465 = por %p463, %p464
      %p466 = scmp.ne.s32.totalorder %s458, %s461
      %p467 = scmp.eq.s32.totalorder %s47, 0
      %p468 = por %p466, %p467
      %p469 = scmp.ne.s32.totalorder %s458, %s461
      %p470 = scmp.eq.s32.totalorder %s52, 1
      %p471 = por %p469, %p470
      %p472 = scmp.ne.s32.totalorder %s461, %s462
      %p473 = scmp.eq.s32.totalorder %s52, 0
      %p474 = por %p472, %p473
      %p475 = scmp.ne.s32.totalorder %s461, %s462
      %p476 = scmp.eq.s32.totalorder %s53, 1
      %p477 = por %p475, %p476
      %p479 = scmp.ne.s32.totalorder %s462, %s478
      %p480 = scmp.eq.s32.totalorder %s53, 0
      %p481 = por %p479, %p480
      %s482 = ssub.s32 %s47, %s54
      %p483 = scmp.eq.s32.totalorder %s482, 0
      %s485 = sadd.s32 %s484, 1
      %s486 = scalar_select %p483, %s484, %s485
      %p489 = pneg %p483
      %p490 = scmp.eq.s32.totalorder %s47, 1
      %p491 = por %p489, %p490
      %p492 = scmp.ne.s32.totalorder %s484, %s487
      %p493 = scmp.eq.s32.totalorder %s47, 0
      %p494 = por %p492, %p493
      %p495 = scmp.ne.s32.totalorder %s484, %s487
      %p496 = scmp.eq.s32.totalorder %s52, 1
      %p497 = por %p495, %p496
      %p498 = scmp.ne.s32.totalorder %s487, %s488
      %p499 = scmp.eq.s32.totalorder %s52, 0
      %p500 = por %p498, %p499
      %p501 = scmp.ne.s32.totalorder %s487, %s488
      %p502 = scmp.eq.s32.totalorder %s53, 1
      %p503 = por %p501, %p502
      %p505 = scmp.ne.s32.totalorder %s488, %s504
      %p506 = scmp.eq.s32.totalorder %s53, 0
      %p507 = por %p505, %p506
      %s508 = ssub.s32 %s47, %s54
      %p509 = scmp.eq.s32.totalorder %s508, 0
      %s511 = sadd.s32 %s510, 1
      %s512 = scalar_select %p509, %s510, %s511
      %p515 = pneg %p509
      %p516 = scmp.eq.s32.totalorder %s47, 1
      %p517 = por %p515, %p516
      %p518 = scmp.ne.s32.totalorder %s510, %s513
      %p519 = scmp.eq.s32.totalorder %s47, 0
      %p520 = por %p518, %p519
      %p521 = scmp.ne.s32.totalorder %s510, %s513
      %p522 = scmp.eq.s32.totalorder %s52, 1
      %p523 = por %p521, %p522
      %p524 = scmp.ne.s32.totalorder %s513, %s514
      %p525 = scmp.eq.s32.totalorder %s52, 0
      %p526 = por %p524, %p525
      %p527 = scmp.ne.s32.totalorder %s513, %s514
      %p528 = scmp.eq.s32.totalorder %s53, 1
      %p529 = por %p527, %p528
      %p531 = scmp.ne.s32.totalorder %s514, %s530
      %p532 = scmp.eq.s32.totalorder %s53, 0
      %p533 = por %p531, %p532
      %s534 = ssub.s32 %s47, %s54
      %p535 = scmp.eq.s32.totalorder %s534, 0
      %s537 = sadd.s32 %s536, 1
      %s538 = scalar_select %p535, %s536, %s537
      %p541 = pneg %p535
      %p542 = scmp.eq.s32.totalorder %s47, 1
      %p543 = por %p541, %p542
      %p544 = scmp.ne.s32.totalorder %s536, %s539
      %p545 = scmp.eq.s32.totalorder %s47, 0
      %p546 = por %p544, %p545
      %p547 = scmp.ne.s32.totalorder %s536, %s539
      %p548 = scmp.eq.s32.totalorder %s52, 1
      %p549 = por %p547, %p548
      %p550 = scmp.ne.s32.totalorder %s539, %s540
      %p551 = scmp.eq.s32.totalorder %s52, 0
      %p552 = por %p550, %p551
      %p553 = scmp.ne.s32.totalorder %s539, %s540
      %p554 = scmp.eq.s32.totalorder %s53, 1
      %p555 = por %p553, %p554
      %p557 = scmp.ne.s32.totalorder %s540, %s556
      %p558 = scmp.eq.s32.totalorder %s53, 0
      %p559 = por %p557, %p558
      %s560 = ssub.s32 %s47, %s54
      %p561 = scmp.eq.s32.totalorder %s560, 0
      %s563 = sadd.s32 %s562, 1
      %s564 = scalar_select %p561, %s562, %s563
      %p567 = pneg %p561
      %p568 = scmp.eq.s32.totalorder %s47, 1
      %p569 = por %p567, %p568
      %p570 = scmp.ne.s32.totalorder %s562, %s565
      %p571 = scmp.eq.s32.totalorder %s47, 0
      %p572 = por %p570, %p571
      %p573 = scmp.ne.s32.totalorder %s562, %s565
      %p574 = scmp.eq.s32.totalorder %s52, 1
      %p575 = por %p573, %p574
      %p576 = scmp.ne.s32.totalorder %s565, %s566
      %p577 = scmp.eq.s32.totalorder %s52, 0
      %p578 = por %p576, %p577
      %p579 = scmp.ne.s32.totalorder %s565, %s566
      %p580 = scmp.eq.s32.totalorder %s53, 1
      %p581 = por %p579, %p580
      %p583 = scmp.ne.s32.totalorder %s566, %s582
      %p584 = scmp.eq.s32.totalorder %s53, 0
      %p585 = por %p583, %p584
      %p586 = scmp.le.s32.totalorder 1, %s47
      %p587 = scmp.lt.s32.totalorder %s47, 3
      %p588 = pnand %p586, %p587
      %p589 = pneg %p588
      // Predicated region
      $region9: #{bert_cross_encoder_attn_map.1} parent=5 // pred_check
        _
      $region10: #{bert_cross_encoder_attn_map.1} parent=5 // pred_check_branch
        %591 = sbr.rel (%p588) target = $region12
      $region11: #{bert_cross_encoder_attn_map.1} parent=5 // pred_region
        %s592 = ssub.s32 %s47, 1
        // Predicated region
        $region13: #{bert_cross_encoder_attn_map.1} parent=11 // pred_check
          %p593 = pneg %p68
        $region14: #{bert_cross_encoder_attn_map.1} parent=11 // pred_check_branch
          %595 = sbr.rel (%p593) target = $region16
        $region15: #{bert_cross_encoder_attn_map.1} parent=11 // pred_region
          %s597 = ssub.s32 512, 512
          %598 = vsyncadd [#allocation4], %s597
          %s599 = sshll.u32 [#allocation3], 4
          %s600 = int_to_ptr.vmem [resolvable:$true] %s599
          %605 = dma.hbm_to_vmem [thread:$0]  %s0, 512, %s600, [#allocation4], 256, 256, 16
        $region16: #{bert_cross_encoder_attn_map.1} parent=11 // pred_fallthru
          _
        // Predicated region
        $region17: #{bert_cross_encoder_attn_map.1} parent=11 // pred_check
          %p606 = pneg %p89
        $region18: #{bert_cross_encoder_attn_map.1} parent=11 // pred_check_branch
          %608 = sbr.rel (%p606) target = $region20
        $region19: #{bert_cross_encoder_attn_map.1} parent=11 // pred_region
          %s610 = ssub.s32 512, 512
          %611 = vsyncadd [#allocation6], %s610
          %s612 = sshll.u32 [#allocation5], 4
          %s613 = int_to_ptr.vmem [resolvable:$true] %s612
          %618 = dma.hbm_to_vmem [thread:$0]  %s1, 512, %s613, [#allocation6], 256, 256, 16
        $region20: #{bert_cross_encoder_attn_map.1} parent=11 // pred_fallthru
          _
        // Predicated region
        $region21: #{bert_cross_encoder_attn_map.1} parent=11 // pred_check
          %p619 = pneg %p110
        $region22: #{bert_cross_encoder_attn_map.1} parent=11 // pred_check_branch
          %621 = sbr.rel (%p619) target = $region24
        $region23: #{bert_cross_encoder_attn_map.1} parent=11 // pred_region
          %s623 = ssub.s32 32, 32
          %624 = vsyncadd [#allocation6], %s623
          %s625 = sshll.u32 [#allocation7], 4
          %s626 = int_to_ptr.vmem [resolvable:$true] %s625
          %631 = dma.hbm_to_vmem [thread:$0]  %s2, 32, %s626, [#allocation6], 16, 16, 1
        $region24: #{bert_cross_encoder_attn_map.1} parent=11 // pred_fallthru
          _
      $region12: #{bert_cross_encoder_attn_map.1} parent=5 // pred_fallthru
        _
      %p632 = scmp.lt.s32.totalorder %s47, 2
      // Predicated region
      $region25: #{bert_cross_encoder_attn_map.1} parent=5 // pred_check
        %p633 = pneg %p632
      $region26: #{bert_cross_encoder_attn_map.1} parent=5 // pred_check_branch
        %635 = sbr.rel (%p633) target = $region28
      $region27: #{bert_cross_encoder_attn_map.1} parent=5 // pred_region
        // Predicated region
        $region29: #{bert_cross_encoder_attn_map.1} parent=27 // pred_check
          %p636 = pneg %p130
        $region30: #{bert_cross_encoder_attn_map.1} parent=27 // pred_check_branch
          %638 = sbr.rel (%p636) target = $region32
        $region31: #{bert_cross_encoder_attn_map.1} parent=27 // pred_region
          %s639 = sand.u32 %s47, 1
          %s640 = scalar_lea.sflag [#allocation9], %s639
          %s641 = sand.u32 %s120, 1
          %s642 = smul.addr %s641, 256
          %s643 = scalar_lea.vmem [#allocation8], %s642
          %s645 = ssub.s32 4096, 4096
          %646 = vsyncadd %s640, %s645
          %s647 = smul.addr %s47, 64
          %s648 = smul.addr %s647, 64
          %s649 = scalar_lea.hbm %s3, %s648
          %s650 = sshll.u32 %s643, 4
          %s651 = int_to_ptr.vmem [resolvable:$true] %s650
          %656 = dma.hbm_to_vmem [thread:$0]  %s649, 4096, %s651, %s640, 128, 128, 8
        $region32: #{bert_cross_encoder_attn_map.1} parent=27 // pred_fallthru
          _
        // Predicated region
        $region33: #{bert_cross_encoder_attn_map.1} parent=27 // pred_check
          %p657 = pneg %p156
        $region34: #{bert_cross_encoder_attn_map.1} parent=27 // pred_check_branch
          %659 = sbr.rel (%p657) target = $region36
        $region35: #{bert_cross_encoder_attn_map.1} parent=27 // pred_region
          %p660 = scmp.lt.s32.totalorder %s47, 1
          %s661 = scalar_select %p660, %s47, 1
          %s662 = smul.addr %s661, 2
          %s663 = scalar_lea.vmem %s4, %s662
        $region36: #{bert_cross_encoder_attn_map.1} parent=27 // pred_fallthru
          _
        // Predicated region
        $region37: #{bert_cross_encoder_attn_map.1} parent=27 // pred_check
          %p664 = pneg %p182
        $region38: #{bert_cross_encoder_attn_map.1} parent=27 // pred_check_branch
          %666 = sbr.rel (%p664) target = $region40
        $region39: #{bert_cross_encoder_attn_map.1} parent=27 // pred_region
          %s667 = sand.u32 %s47, 1
          %s668 = scalar_lea.sflag [#allocation9], %s667
          %s669 = sand.u32 %s172, 1
          %s670 = smul.addr %s669, 256
          %s671 = scalar_lea.vmem [#allocation10], %s670
          %s673 = ssub.s32 4096, 4096
          %674 = vsyncadd %s668, %s673
          %s675 = smul.addr %s47, 64
          %s676 = smul.addr %s675, 64
          %s677 = scalar_lea.hbm %s5, %s676
          %s678 = sshll.u32 %s671, 4
          %s679 = int_to_ptr.vmem [resolvable:$true] %s678
          %684 = dma.hbm_to_vmem [thread:$0]  %s677, 4096, %s679, %s668, 128, 128, 8
        $region40: #{bert_cross_encoder_attn_map.1} parent=27 // pred_fallthru
          _
        // Predicated region
        $region41: #{bert_cross_encoder_attn_map.1} parent=27 // pred_check
          %p685 = pneg %p208
        $region42: #{bert_cross_encoder_attn_map.1} parent=27 // pred_check_branch
          %687 = sbr.rel (%p685) target = $region44
        $region43: #{bert_cross_encoder_attn_map.1} parent=27 // pred_region
          %p688 = scmp.lt.s32.totalorder %s47, 1
          %s689 = scalar_select %p688, %s47, 1
          %s690 = smul.addr %s689, 2
          %s691 = scalar_lea.vmem %s6, %s690
        $region44: #{bert_cross_encoder_attn_map.1} parent=27 // pred_fallthru
          _
        // Predicated region
        $region45: #{bert_cross_encoder_attn_map.1} parent=27 // pred_check
          %p692 = pneg %p234
        $region46: #{bert_cross_encoder_attn_map.1} parent=27 // pred_check_branch
          %694 = sbr.rel (%p692) target = $region48
        $region47: #{bert_cross_encoder_attn_map.1} parent=27 // pred_region
          %s695 = sand.u32 %s47, 1
          %s696 = scalar_lea.sflag [#allocation12], %s695
          %s697 = sand.u32 %s224, 1
          %s698 = smul.addr %s697, 256
          %s699 = scalar_lea.vmem [#allocation11], %s698
          %s701 = ssub.s32 4096, 4096
          %702 = vsyncadd %s696, %s701
          %s703 = smul.addr %s47, 64
          %s704 = smul.addr %s703, 64
          %s705 = scalar_lea.hbm %s7, %s704
          %s706 = sshll.u32 %s699, 4
          %s707 = int_to_ptr.vmem [resolvable:$true] %s706
          %712 = dma.hbm_to_vmem [thread:$0]  %s705, 4096, %s707, %s696, 128, 128, 8
        $region48: #{bert_cross_encoder_attn_map.1} parent=27 // pred_fallthru
          _
        // Predicated region
        $region49: #{bert_cross_encoder_attn_map.1} parent=27 // pred_check
          %p713 = pneg %p260
        $region50: #{bert_cross_encoder_attn_map.1} parent=27 // pred_check_branch
          %715 = sbr.rel (%p713) target = $region52
        $region51: #{bert_cross_encoder_attn_map.1} parent=27 // pred_region
          %s716 = sand.u32 %s47, 1
          %s717 = scalar_lea.sflag [#allocation12], %s716
          %s718 = sand.u32 %s250, 1
          %s719 = smul.addr %s718, 2
          %s720 = scalar_lea.vmem [#allocation13], %s719
          %s722 = ssub.s32 32, 32
          %723 = vsyncadd %s717, %s722
          %s724 = smul.addr %s47, 2
          %s725 = smul.addr %s724, 16
          %s726 = scalar_lea.hbm %s8, %s725
          %s728 = sshll.u32 %s720, 4
          %s729 = int_to_ptr.vmem [resolvable:$true] %s728
          %731 = dma.hbm_to_vmem [thread:$0]  %s726, 32, %s729, %s717
        $region52: #{bert_cross_encoder_attn_map.1} parent=27 // pred_fallthru
          _
        // Predicated region
        $region53: #{bert_cross_encoder_attn_map.1} parent=27 // pred_check
          %p732 = pneg %p286
        $region54: #{bert_cross_encoder_attn_map.1} parent=27 // pred_check_branch
          %734 = sbr.rel (%p732) target = $region56
        $region55: #{bert_cross_encoder_attn_map.1} parent=27 // pred_region
          %s735 = sand.u32 %s47, 1
          %s736 = scalar_lea.sflag [#allocation15], %s735
          %s737 = sand.u32 %s276, 1
          %s738 = smul.addr %s737, 256
          %s739 = scalar_lea.vmem [#allocation14], %s738
          %s741 = ssub.s32 4096, 4096
          %742 = vsyncadd %s736, %s741
          %s743 = smul.addr %s47, 64
          %s744 = smul.addr %s743, 64
          %s745 = scalar_lea.hbm %s9, %s744
          %s746 = sshll.u32 %s739, 4
          %s747 = int_to_ptr.vmem [resolvable:$true] %s746
          %752 = dma.hbm_to_vmem [thread:$0]  %s745, 4096, %s747, %s736, 128, 128, 8
        $region56: #{bert_cross_encoder_attn_map.1} parent=27 // pred_fallthru
          _
        // Predicated region
        $region57: #{bert_cross_encoder_attn_map.1} parent=27 // pred_check
          %p753 = pneg %p312
        $region58: #{bert_cross_encoder_attn_map.1} parent=27 // pred_check_branch
          %755 = sbr.rel (%p753) target = $region60
        $region59: #{bert_cross_encoder_attn_map.1} parent=27 // pred_region
          %s756 = sand.u32 %s47, 1
          %s757 = scalar_lea.sflag [#allocation15], %s756
          %s758 = sand.u32 %s302, 1
          %s759 = smul.addr %s758, 2
          %s760 = scalar_lea.vmem [#allocation16], %s759
          %s762 = ssub.s32 32, 32
          %763 = vsyncadd %s757, %s762
          %s764 = smul.addr %s47, 2
          %s765 = smul.addr %s764, 16
          %s766 = scalar_lea.hbm %s10, %s765
          %s768 = sshll.u32 %s760, 4
          %s769 = int_to_ptr.vmem [resolvable:$true] %s768
          %771 = dma.hbm_to_vmem [thread:$0]  %s766, 32, %s769, %s757
        $region60: #{bert_cross_encoder_attn_map.1} parent=27 // pred_fallthru
          _
        // Predicated region
        $region61: #{bert_cross_encoder_attn_map.1} parent=27 // pred_check
          %p772 = pneg %p338
        $region62: #{bert_cross_encoder_attn_map.1} parent=27 // pred_check_branch
          %774 = sbr.rel (%p772) target = $region64
        $region63: #{bert_cross_encoder_attn_map.1} parent=27 // pred_region
          %s775 = sand.u32 %s47, 1
          %s776 = scalar_lea.sflag [#allocation18], %s775
          %s777 = sand.u32 %s328, 1
          %s778 = smul.addr %s777, 2
          %s779 = scalar_lea.vmem [#allocation17], %s778
          %s781 = ssub.s32 32, 32
          %782 = vsyncadd %s776, %s781
          %s783 = smul.addr %s47, 2
          %s784 = smul.addr %s783, 16
          %s785 = scalar_lea.hbm %s11, %s784
          %s787 = sshll.u32 %s779, 4
          %s788 = int_to_ptr.vmem [resolvable:$true] %s787
          %790 = dma.hbm_to_vmem [thread:$0]  %s785, 32, %s788, %s776
        $region64: #{bert_cross_encoder_attn_map.1} parent=27 // pred_fallthru
          _
        // Predicated region
        $region65: #{bert_cross_encoder_attn_map.1} parent=27 // pred_check
          %p791 = pneg %p364
        $region66: #{bert_cross_encoder_attn_map.1} parent=27 // pred_check_branch
          %793 = sbr.rel (%p791) target = $region68
        $region67: #{bert_cross_encoder_attn_map.1} parent=27 // pred_region
          %s794 = sand.u32 %s47, 1
          %s795 = scalar_lea.sflag [#allocation18], %s794
          %s796 = sand.u32 %s354, 1
          %s797 = smul.addr %s796, 2
          %s798 = scalar_lea.vmem [#allocation19], %s797
          %s800 = ssub.s32 32, 32
          %801 = vsyncadd %s795, %s800
          %s802 = smul.addr %s47, 2
          %s803 = smul.addr %s802, 16
          %s804 = scalar_lea.hbm %s12, %s803
          %s806 = sshll.u32 %s798, 4
          %s807 = int_to_ptr.vmem [resolvable:$true] %s806
          %809 = dma.hbm_to_vmem [thread:$0]  %s804, 32, %s807, %s795
        $region68: #{bert_cross_encoder_attn_map.1} parent=27 // pred_fallthru
          _
        // Predicated region
        $region69: #{bert_cross_encoder_attn_map.1} parent=27 // pred_check
          %p810 = pneg %p390
        $region70: #{bert_cross_encoder_attn_map.1} parent=27 // pred_check_branch
          %812 = sbr.rel (%p810) target = $region72
        $region71: #{bert_cross_encoder_attn_map.1} parent=27 // pred_region
          %s813 = sand.u32 %s47, 1
          %s814 = scalar_lea.sflag [#allocation21], %s813
          %s815 = sand.u32 %s380, 1
          %s816 = smul.addr %s815, 1024
          %s817 = scalar_lea.vmem [#allocation20], %s816
          %s819 = ssub.s32 16384, 16384
          %820 = vsyncadd %s814, %s819
          %s821 = smul.addr %s47, 256
          %s822 = smul.addr %s821, 64
          %s823 = scalar_lea.hbm %s13, %s822
          %s824 = sshll.u32 %s817, 4
          %s825 = int_to_ptr.vmem [resolvable:$true] %s824
          %830 = dma.hbm_to_vmem [thread:$0]  %s823, 16384, %s825, %s814, 512, 512, 32
        $region72: #{bert_cross_encoder_attn_map.1} parent=27 // pred_fallthru
          _
        // Predicated region
        $region73: #{bert_cross_encoder_attn_map.1} parent=27 // pred_check
          %p831 = pneg %p416
        $region74: #{bert_cross_encoder_attn_map.1} parent=27 // pred_check_branch
          %833 = sbr.rel (%p831) target = $region76
        $region75: #{bert_cross_encoder_attn_map.1} parent=27 // pred_region
          %p834 = scmp.lt.s32.totalorder %s47, 1
          %s835 = scalar_select %p834, %s47, 1
          %s836 = smul.addr %s835, 8
          %s837 = scalar_lea.vmem %s14, %s836
        $region76: #{bert_cross_encoder_attn_map.1} parent=27 // pred_fallthru
          _
        // Predicated region
        $region77: #{bert_cross_encoder_attn_map.1} parent=27 // pred_check
          %p838 = pneg %p442
        $region78: #{bert_cross_encoder_attn_map.1} parent=27 // pred_check_branch
          %840 = sbr.rel (%p838) target = $region80
        $region79: #{bert_cross_encoder_attn_map.1} parent=27 // pred_region
          %s841 = sand.u32 %s47, 1
          %s842 = scalar_lea.sflag [#allocation21], %s841
          %s843 = sand.u32 %s432, 1
          %s844 = smul.addr %s843, 1024
          %s845 = scalar_lea.vmem [#allocation22], %s844
          %s847 = ssub.s32 16384, 16384
          %848 = vsyncadd %s842, %s847
          %s849 = smul.addr %s47, 256
          %s850 = smul.addr %s849, 64
          %s851 = scalar_lea.hbm %s15, %s850
          %s852 = sshll.u32 %s845, 4
          %s853 = int_to_ptr.vmem [resolvable:$true] %s852
          %858 = dma.hbm_to_vmem [thread:$0]  %s851, 16384, %s853, %s842, 128, 128, 8
        $region80: #{bert_cross_encoder_attn_map.1} parent=27 // pred_fallthru
          _
        // Predicated region
        $region81: #{bert_cross_encoder_attn_map.1} parent=27 // pred_check
          %p859 = pneg %p468
        $region82: #{bert_cross_encoder_attn_map.1} parent=27 // pred_check_branch
          %861 = sbr.rel (%p859) target = $region84
        $region83: #{bert_cross_encoder_attn_map.1} parent=27 // pred_region
          %p862 = scmp.lt.s32.totalorder %s47, 1
          %s863 = scalar_select %p862, %s47, 1
          %s864 = smul.addr %s863, 2
          %s865 = scalar_lea.vmem %s16, %s864
        $region84: #{bert_cross_encoder_attn_map.1} parent=27 // pred_fallthru
          _
        // Predicated region
        $region85: #{bert_cross_encoder_attn_map.1} parent=27 // pred_check
          %p866 = pneg %p494
        $region86: #{bert_cross_encoder_attn_map.1} parent=27 // pred_check_branch
          %868 = sbr.rel (%p866) target = $region88
        $region87: #{bert_cross_encoder_attn_map.1} parent=27 // pred_region
          %s869 = sand.u32 %s484, 1
          %s870 = scalar_lea.sflag [#allocation24], %s869
          %s871 = sand.u32 %s484, 1
          %s872 = smul.addr %s871, 2
          %s873 = scalar_lea.vmem [#allocation23], %s872
          %s875 = ssub.s32 32, 32
          %876 = vsyncadd %s870, %s875
          %s877 = smul.addr %s47, 2
          %s878 = smul.addr %s877, 16
          %s879 = scalar_lea.hbm %s17, %s878
          %s881 = sshll.u32 %s873, 4
          %s882 = int_to_ptr.vmem [resolvable:$true] %s881
          %884 = dma.hbm_to_vmem [thread:$0]  %s879, 32, %s882, %s870
        $region88: #{bert_cross_encoder_attn_map.1} parent=27 // pred_fallthru
          _
        // Predicated region
        $region89: #{bert_cross_encoder_attn_map.1} parent=27 // pred_check
          %p885 = pneg %p520
        $region90: #{bert_cross_encoder_attn_map.1} parent=27 // pred_check_branch
          %887 = sbr.rel (%p885) target = $region92
        $region91: #{bert_cross_encoder_attn_map.1} parent=27 // pred_region
          %p888 = scmp.lt.s32.totalorder %s47, 1
          %s889 = scalar_select %p888, %s47, 1
          %s890 = smul.addr %s889, 2
          %s891 = scalar_lea.vmem %s18, %s890
        $region92: #{bert_cross_encoder_attn_map.1} parent=27 // pred_fallthru
          _
      $region28: #{bert_cross_encoder_attn_map.1} parent=5 // pred_fallthru
        _
      %p892 = scmp.le.s32.totalorder 1, %s47
      %p893 = scmp.lt.s32.totalorder %s47, 3
      %p894 = pnand %p892, %p893
      %p895 = pneg %p894
      // Predicated region
      $region93: #{bert_cross_encoder_attn_map.1} parent=5 // pred_check
        _
      $region94: #{bert_cross_encoder_attn_map.1} parent=5 // pred_check_branch
        %897 = sbr.rel (%p894) target = $region96
      $region95: #{bert_cross_encoder_attn_map.1} parent=5 // pred_region
        %s898 = ssub.s32 %s47, 1
        // Predicated region
        $region97: #{bert_cross_encoder_attn_map.1} parent=95 // pred_check
          %p899 = pneg %p68
        $region98: #{bert_cross_encoder_attn_map.1} parent=95 // pred_check_branch
          %901 = sbr.rel (%p899) target = $region100
        $region99: #{bert_cross_encoder_attn_map.1} parent=95 // pred_region
          %902 = dma.done [#allocation4], 512
        $region100: #{bert_cross_encoder_attn_map.1} parent=95 // pred_fallthru
          _
        // Predicated region
        $region101: #{bert_cross_encoder_attn_map.1} parent=95 // pred_check
          %p903 = pneg %p89
        $region102: #{bert_cross_encoder_attn_map.1} parent=95 // pred_check_branch
          %905 = sbr.rel (%p903) target = $region104
        $region103: #{bert_cross_encoder_attn_map.1} parent=95 // pred_region
          %906 = dma.done [#allocation6], 512
        $region104: #{bert_cross_encoder_attn_map.1} parent=95 // pred_fallthru
          _
        // Predicated region
        $region105: #{bert_cross_encoder_attn_map.1} parent=95 // pred_check
          %p907 = pneg %p110
        $region106: #{bert_cross_encoder_attn_map.1} parent=95 // pred_check_branch
          %909 = sbr.rel (%p907) target = $region108
        $region107: #{bert_cross_encoder_attn_map.1} parent=95 // pred_region
          %910 = dma.done [#allocation6], 32
        $region108: #{bert_cross_encoder_attn_map.1} parent=95 // pred_fallthru
          _
        %s911 = sand.u32 %s52, 1
        %s912 = scalar_lea.sflag [#allocation9], %s911
        %s913 = sand.u32 %s123, 1
        %s914 = smul.addr %s913, 256
        %s915 = scalar_lea.vmem [#allocation8], %s914
        // Predicated region
        $region109: #{bert_cross_encoder_attn_map.1} parent=95 // pred_check
          %p916 = pneg %p136
        $region110: #{bert_cross_encoder_attn_map.1} parent=95 // pred_check_branch
          %918 = sbr.rel (%p916) target = $region112
        $region111: #{bert_cross_encoder_attn_map.1} parent=95 // pred_region
          %919 = dma.done %s912, 4096
        $region112: #{bert_cross_encoder_attn_map.1} parent=95 // pred_fallthru
          _
        %s920 = sand.u32 %s52, 1
        %s921 = scalar_lea.sflag [#allocation9], %s920
        %s922 = sand.u32 %s175, 1
        %s923 = smul.addr %s922, 256
        %s924 = scalar_lea.vmem [#allocation10], %s923
        // Predicated region
        $region113: #{bert_cross_encoder_attn_map.1} parent=95 // pred_check
          %p925 = pneg %p188
        $region114: #{bert_cross_encoder_attn_map.1} parent=95 // pred_check_branch
          %927 = sbr.rel (%p925) target = $region116
        $region115: #{bert_cross_encoder_attn_map.1} parent=95 // pred_region
          %928 = dma.done %s921, 4096
        $region116: #{bert_cross_encoder_attn_map.1} parent=95 // pred_fallthru
          _
        %s929 = sand.u32 %s52, 1
        %s930 = scalar_lea.sflag [#allocation12], %s929
        %s931 = sand.u32 %s227, 1
        %s932 = smul.addr %s931, 256
        %s933 = scalar_lea.vmem [#allocation11], %s932
        // Predicated region
        $region117: #{bert_cross_encoder_attn_map.1} parent=95 // pred_check
          %p934 = pneg %p240
        $region118: #{bert_cross_encoder_attn_map.1} parent=95 // pred_check_branch
          %936 = sbr.rel (%p934) target = $region120
        $region119: #{bert_cross_encoder_attn_map.1} parent=95 // pred_region
          %937 = dma.done %s930, 4096
        $region120: #{bert_cross_encoder_attn_map.1} parent=95 // pred_fallthru
          _
        %s938 = sand.u32 %s52, 1
        %s939 = scalar_lea.sflag [#allocation12], %s938
        %s940 = sand.u32 %s253, 1
        %s941 = smul.addr %s940, 2
        %s942 = scalar_lea.vmem [#allocation13], %s941
        // Predicated region
        $region121: #{bert_cross_encoder_attn_map.1} parent=95 // pred_check
          %p943 = pneg %p266
        $region122: #{bert_cross_encoder_attn_map.1} parent=95 // pred_check_branch
          %945 = sbr.rel (%p943) target = $region124
        $region123: #{bert_cross_encoder_attn_map.1} parent=95 // pred_region
          %946 = dma.done %s939, 32
        $region124: #{bert_cross_encoder_attn_map.1} parent=95 // pred_fallthru
          _
        %s947 = sand.u32 %s52, 1
        %s948 = scalar_lea.sflag [#allocation15], %s947
        %s949 = sand.u32 %s279, 1
        %s950 = smul.addr %s949, 256
        %s951 = scalar_lea.vmem [#allocation14], %s950
        // Predicated region
        $region125: #{bert_cross_encoder_attn_map.1} parent=95 // pred_check
          %p952 = pneg %p292
        $region126: #{bert_cross_encoder_attn_map.1} parent=95 // pred_check_branch
          %954 = sbr.rel (%p952) target = $region128
        $region127: #{bert_cross_encoder_attn_map.1} parent=95 // pred_region
          %955 = dma.done %s948, 4096
        $region128: #{bert_cross_encoder_attn_map.1} parent=95 // pred_fallthru
          _
        %s956 = sand.u32 %s52, 1
        %s957 = scalar_lea.sflag [#allocation15], %s956
        %s958 = sand.u32 %s305, 1
        %s959 = smul.addr %s958, 2
        %s960 = scalar_lea.vmem [#allocation16], %s959
        // Predicated region
        $region129: #{bert_cross_encoder_attn_map.1} parent=95 // pred_check
          %p961 = pneg %p318
        $region130: #{bert_cross_encoder_attn_map.1} parent=95 // pred_check_branch
          %963 = sbr.rel (%p961) target = $region132
        $region131: #{bert_cross_encoder_attn_map.1} parent=95 // pred_region
          %964 = dma.done %s957, 32
        $region132: #{bert_cross_encoder_attn_map.1} parent=95 // pred_fallthru
          _
        %s965 = sand.u32 %s52, 1
        %s966 = scalar_lea.sflag [#allocation18], %s965
        %s967 = sand.u32 %s331, 1
        %s968 = smul.addr %s967, 2
        %s969 = scalar_lea.vmem [#allocation17], %s968
        // Predicated region
        $region133: #{bert_cross_encoder_attn_map.1} parent=95 // pred_check
          %p970 = pneg %p344
        $region134: #{bert_cross_encoder_attn_map.1} parent=95 // pred_check_branch
          %972 = sbr.rel (%p970) target = $region136
        $region135: #{bert_cross_encoder_attn_map.1} parent=95 // pred_region
          %973 = dma.done %s966, 32
        $region136: #{bert_cross_encoder_attn_map.1} parent=95 // pred_fallthru
          _
        %s974 = sand.u32 %s52, 1
        %s975 = scalar_lea.sflag [#allocation18], %s974
        %s976 = sand.u32 %s357, 1
        %s977 = smul.addr %s976, 2
        %s978 = scalar_lea.vmem [#allocation19], %s977
        // Predicated region
        $region137: #{bert_cross_encoder_attn_map.1} parent=95 // pred_check
          %p979 = pneg %p370
        $region138: #{bert_cross_encoder_attn_map.1} parent=95 // pred_check_branch
          %981 = sbr.rel (%p979) target = $region140
        $region139: #{bert_cross_encoder_attn_map.1} parent=95 // pred_region
          %982 = dma.done %s975, 32
        $region140: #{bert_cross_encoder_attn_map.1} parent=95 // pred_fallthru
          _
        %s983 = sand.u32 %s52, 1
        %s984 = scalar_lea.sflag [#allocation21], %s983
        %s985 = sand.u32 %s383, 1
        %s986 = smul.addr %s985, 1024
        %s987 = scalar_lea.vmem [#allocation20], %s986
        // Predicated region
        $region141: #{bert_cross_encoder_attn_map.1} parent=95 // pred_check
          %p988 = pneg %p396
        $region142: #{bert_cross_encoder_attn_map.1} parent=95 // pred_check_branch
          %990 = sbr.rel (%p988) target = $region144
        $region143: #{bert_cross_encoder_attn_map.1} parent=95 // pred_region
          %991 = dma.done %s984, 16384
        $region144: #{bert_cross_encoder_attn_map.1} parent=95 // pred_fallthru
          _
        %s992 = sand.u32 %s52, 1
        %s993 = scalar_lea.sflag [#allocation21], %s992
        %s994 = sand.u32 %s435, 1
        %s995 = smul.addr %s994, 1024
        %s996 = scalar_lea.vmem [#allocation22], %s995
        // Predicated region
        $region145: #{bert_cross_encoder_attn_map.1} parent=95 // pred_check
          %p997 = pneg %p448
        $region146: #{bert_cross_encoder_attn_map.1} parent=95 // pred_check_branch
          %999 = sbr.rel (%p997) target = $region148
        $region147: #{bert_cross_encoder_attn_map.1} parent=95 // pred_region
          %1000 = dma.done %s993, 16384
        $region148: #{bert_cross_encoder_attn_map.1} parent=95 // pred_fallthru
          _
        %s1001 = sand.u32 %s487, 1
        %s1002 = scalar_lea.sflag [#allocation24], %s1001
        %s1003 = sand.u32 %s487, 1
        %s1004 = smul.addr %s1003, 2
        %s1005 = scalar_lea.vmem [#allocation23], %s1004
        // Predicated region
        $region149: #{bert_cross_encoder_attn_map.1} parent=95 // pred_check
          %p1006 = pneg %p500
        $region150: #{bert_cross_encoder_attn_map.1} parent=95 // pred_check_branch
          %1008 = sbr.rel (%p1006) target = $region152
        $region151: #{bert_cross_encoder_attn_map.1} parent=95 // pred_region
          %1009 = dma.done %s1002, 32
        $region152: #{bert_cross_encoder_attn_map.1} parent=95 // pred_fallthru
          _
        %p1010 = pneg %p68
        %p1011 = pneg %p65
        %p1012 = pneg %p89
        %p1013 = pneg %p86
        %p1014 = pneg %p110
        %p1015 = pneg %p107
        %s1016 = sand.u32 %s52, 1
        %s1017 = scalar_lea.sflag [#allocation9], %s1016
        %s1018 = sand.u32 %s123, 1
        %s1019 = smul.addr %s1018, 256
        %s1020 = scalar_lea.vmem [#allocation8], %s1019
        %p1021 = pneg %p136
        %p1022 = pneg %p133
        %p1023 = scmp.lt.s32.totalorder %s52, 1
        %s1024 = scalar_select %p1023, %s52, 1
        %s1025 = smul.addr %s1024, 2
        %s1026 = scalar_lea.vmem %s4, %s1025
        %p1027 = pneg %p162
        %p1028 = pneg %p159
        %s1029 = sand.u32 %s52, 1
        %s1030 = scalar_lea.sflag [#allocation9], %s1029
        %s1031 = sand.u32 %s175, 1
        %s1032 = smul.addr %s1031, 256
        %s1033 = scalar_lea.vmem [#allocation10], %s1032
        %p1034 = pneg %p188
        %p1035 = pneg %p185
        %p1036 = scmp.lt.s32.totalorder %s52, 1
        %s1037 = scalar_select %p1036, %s52, 1
        %s1038 = smul.addr %s1037, 2
        %s1039 = scalar_lea.vmem %s6, %s1038
        %p1040 = pneg %p214
        %p1041 = pneg %p211
        %s1042 = sand.u32 %s52, 1
        %s1043 = scalar_lea.sflag [#allocation12], %s1042
        %s1044 = sand.u32 %s227, 1
        %s1045 = smul.addr %s1044, 256
        %s1046 = scalar_lea.vmem [#allocation11], %s1045
        %p1047 = pneg %p240
        %p1048 = pneg %p237
        %s1049 = sand.u32 %s52, 1
        %s1050 = scalar_lea.sflag [#allocation12], %s1049
        %s1051 = sand.u32 %s253, 1
        %s1052 = smul.addr %s1051, 2
        %s1053 = scalar_lea.vmem [#allocation13], %s1052
        %p1054 = pneg %p266
        %p1055 = pneg %p263
        %s1056 = sand.u32 %s52, 1
        %s1057 = scalar_lea.sflag [#allocation15], %s1056
        %s1058 = sand.u32 %s279, 1
        %s1059 = smul.addr %s1058, 256
        %s1060 = scalar_lea.vmem [#allocation14], %s1059
        %p1061 = pneg %p292
        %p1062 = pneg %p289
        %s1063 = sand.u32 %s52, 1
        %s1064 = scalar_lea.sflag [#allocation15], %s1063
        %s1065 = sand.u32 %s305, 1
        %s1066 = smul.addr %s1065, 2
        %s1067 = scalar_lea.vmem [#allocation16], %s1066
        %p1068 = pneg %p318
        %p1069 = pneg %p315
        %s1070 = sand.u32 %s52, 1
        %s1071 = scalar_lea.sflag [#allocation18], %s1070
        %s1072 = sand.u32 %s331, 1
        %s1073 = smul.addr %s1072, 2
        %s1074 = scalar_lea.vmem [#allocation17], %s1073
        %p1075 = pneg %p344
        %p1076 = pneg %p341
        %s1077 = sand.u32 %s52, 1
        %s1078 = scalar_lea.sflag [#allocation18], %s1077
        %s1079 = sand.u32 %s357, 1
        %s1080 = smul.addr %s1079, 2
        %s1081 = scalar_lea.vmem [#allocation19], %s1080
        %p1082 = pneg %p370
        %p1083 = pneg %p367
        %s1084 = sand.u32 %s52, 1
        %s1085 = scalar_lea.sflag [#allocation21], %s1084
        %s1086 = sand.u32 %s383, 1
        %s1087 = smul.addr %s1086, 1024
        %s1088 = scalar_lea.vmem [#allocation20], %s1087
        %p1089 = pneg %p396
        %p1090 = pneg %p393
        %p1091 = scmp.lt.s32.totalorder %s52, 1
        %s1092 = scalar_select %p1091, %s52, 1
        %s1093 = smul.addr %s1092, 8
        %s1094 = scalar_lea.vmem %s14, %s1093
        %p1095 = pneg %p422
        %p1096 = pneg %p419
        %s1097 = sand.u32 %s52, 1
        %s1098 = scalar_lea.sflag [#allocation21], %s1097
        %s1099 = sand.u32 %s435, 1
        %s1100 = smul.addr %s1099, 1024
        %s1101 = scalar_lea.vmem [#allocation22], %s1100
        %p1102 = pneg %p448
        %p1103 = pneg %p445
        %p1104 = scmp.lt.s32.totalorder %s52, 1
        %s1105 = scalar_select %p1104, %s52, 1
        %s1106 = smul.addr %s1105, 2
        %s1107 = scalar_lea.vmem %s16, %s1106
        %p1108 = pneg %p474
        %p1109 = pneg %p471
        %s1110 = sand.u32 %s487, 1
        %s1111 = scalar_lea.sflag [#allocation24], %s1110
        %s1112 = sand.u32 %s487, 1
        %s1113 = smul.addr %s1112, 2
        %s1114 = scalar_lea.vmem [#allocation23], %s1113
        %p1115 = pneg %p500
        %p1116 = pneg %p497
        %p1117 = scmp.lt.s32.totalorder %s52, 1
        %s1118 = scalar_select %p1117, %s52, 1
        %s1119 = smul.addr %s1118, 2
        %s1120 = scalar_lea.vmem %s18, %s1119
        %p1121 = pneg %p526
        %p1122 = pneg %p523
        %p1123 = pneg %p552
        %p1124 = pneg %p549
        %p1125 = scmp.lt.s32.totalorder %s52, 1
        %s1126 = scalar_select %p1125, %s52, 1
        %s1127 = smul.addr %s1126, 4
        %s1128 = smul.addr %s1127, 8
        %s1129 = scalar_lea.vmem %s19, %s1128
        %p1130 = pneg %p578
        %p1131 = pneg %p575
        %p1132 = scmp.lt.s32.totalorder %s52, 1
        %s1133 = scalar_select %p1132, %s52, 1
        %s1134 = smul.addr %s1133, 2
        %s1135 = smul.addr %s1134, 8
        %s1136 = scalar_lea.vmem %s20, %s1135
        %p1137 = scmp.lt.s32.totalorder %s52, 1
        %s1138 = scalar_select %p1137, %s52, 1
        %s1139 = smul.addr %s1138, 2
        %s1140 = scalar_lea.vmem %s4, %s1139
        %p1141 = scmp.lt.s32.totalorder %s52, 1
        %s1142 = scalar_select %p1141, %s52, 1
        %s1143 = smul.addr %s1142, 2
        %s1144 = scalar_lea.vmem %s6, %s1143
        %p1145 = scmp.lt.s32.totalorder %s52, 1
        %s1146 = scalar_select %p1145, %s52, 1
        %s1147 = smul.addr %s1146, 8
        %s1148 = scalar_lea.vmem %s14, %s1147
        %p1149 = scmp.lt.s32.totalorder %s52, 1
        %s1150 = scalar_select %p1149, %s52, 1
        %s1151 = smul.addr %s1150, 2
        %s1152 = scalar_lea.vmem %s16, %s1151
        %p1153 = scmp.lt.s32.totalorder %s52, 1
        %s1154 = scalar_select %p1153, %s52, 1
        %s1155 = smul.addr %s1154, 2
        %s1156 = scalar_lea.vmem %s18, %s1155
        %p1157 = scmp.lt.s32.totalorder %s52, 1
        %s1158 = scalar_select %p1157, %s52, 1
        %s1159 = smul.addr %s1158, 4
        %s1160 = smul.addr %s1159, 8
        %s1161 = scalar_lea.vmem %s19, %s1160
        %p1162 = scmp.lt.s32.totalorder %s52, 1
        %s1163 = scalar_select %p1162, %s52, 1
        %s1164 = smul.addr %s1163, 2
        %s1165 = smul.addr %s1164, 8
        %s1166 = scalar_lea.vmem %s20, %s1165
        %p1168 = scmp.eq.s32.totalorder %s52, 0
        // Predicated region
        $region153: #{bert_cross_encoder_attn_map.1} parent=95 // pred_check
          %p1169 = pneg %p1168
        $region154: #{bert_cross_encoder_attn_map.1} parent=95 // pred_check_branch
          %1171 = sbr.rel (%p1169) target = $region156
        $region155: #{bert_cross_encoder_attn_map.1} parent=95 // pred_region
          %v1172 = vld [vmem:[#allocation3] sm:$0xff]
          %v1173 = vld [vmem:[#allocation3 + $0x8] sm:$0xff]
          %v1174 = vld [vmem:[#allocation3 + $0x10] sm:$0xff]
          %v1175 = vld [vmem:[#allocation3 + $0x18] sm:$0xff]
          %1176 = vst [vmem:[#allocation2] sm:$0xff] %v1172
          %1177 = vst [vmem:[#allocation2 + $0x8] sm:$0xff] %v1173
          %1178 = vst [vmem:[#allocation2 + $0x10] sm:$0xff] %v1174
          %1179 = vst [vmem:[#allocation2 + $0x18] sm:$0xff] %v1175
        $region156: #{bert_cross_encoder_attn_map.1} parent=95 // pred_fallthru
          _
        %v1180 = vld [vmem:[#allocation2] sm:$0xff]
        %v1181 = vld [vmem:[#allocation2 + $0x8] sm:$0xff]
        %v1182 = vld [vmem:[#allocation2 + $0x10] sm:$0xff]
        %v1183 = vld [vmem:[#allocation2 + $0x18] sm:$0xff]
        %v1184 = vpack.c.bf16 %v1182, %v1180
        %v1185 = vpack.c.bf16 %v1183, %v1181
        %v1186 = vld [vmem:[#allocation5] sm:$0xff]
        %v1187 = vld [vmem:[#allocation5 + $0x8] sm:$0xff]
        %v1188 = vld [vmem:[#allocation5 + $0x10] sm:$0xff]
        %v1189 = vld [vmem:[#allocation5 + $0x18] sm:$0xff]
        %v1190 = vpack.c.bf16 %v1188, %v1186
        %v1191 = vpack.c.bf16 %v1189, %v1187
        %v1192 = vld [vmem:[%s915] sm:$0xff]
        %v1193 = vld [vmem:[%s915 + $0x8] sm:$0xff]
        %v1194 = vld [vmem:[%s915 + $0x10] sm:$0xff]
        %v1195 = vld [vmem:[%s915 + $0x18] sm:$0xff]
        %v1196 = vld [vmem:[%s915 + $0x20] sm:$0xff]
        %v1197 = vld [vmem:[%s915 + $0x28] sm:$0xff]
        %v1198 = vld [vmem:[%s915 + $0x30] sm:$0xff]
        %v1199 = vld [vmem:[%s915 + $0x38] sm:$0xff]
        %v1200 = vld [vmem:[%s915 + $0x40] sm:$0xff]
        %v1201 = vld [vmem:[%s915 + $0x48] sm:$0xff]
        %v1202 = vld [vmem:[%s915 + $0x50] sm:$0xff]
        %v1203 = vld [vmem:[%s915 + $0x58] sm:$0xff]
        %v1204 = vld [vmem:[%s915 + $0x60] sm:$0xff]
        %v1205 = vld [vmem:[%s915 + $0x68] sm:$0xff]
        %v1206 = vld [vmem:[%s915 + $0x70] sm:$0xff]
        %v1207 = vld [vmem:[%s915 + $0x78] sm:$0xff]
        %v1208 = vld [vmem:[%s915 + $0x80] sm:$0xff]
        %v1209 = vld [vmem:[%s915 + $0x88] sm:$0xff]
        %v1210 = vld [vmem:[%s915 + $0x90] sm:$0xff]
        %v1211 = vld [vmem:[%s915 + $0x98] sm:$0xff]
        %v1212 = vld [vmem:[%s915 + $0xa0] sm:$0xff]
        %v1213 = vld [vmem:[%s915 + $0xa8] sm:$0xff]
        %v1214 = vld [vmem:[%s915 + $0xb0] sm:$0xff]
        %v1215 = vld [vmem:[%s915 + $0xb8] sm:$0xff]
        %v1216 = vld [vmem:[%s915 + $0xc0] sm:$0xff]
        %v1217 = vld [vmem:[%s915 + $0xc8] sm:$0xff]
        %v1218 = vld [vmem:[%s915 + $0xd0] sm:$0xff]
        %v1219 = vld [vmem:[%s915 + $0xd8] sm:$0xff]
        %v1220 = vld [vmem:[%s915 + $0xe0] sm:$0xff]
        %v1221 = vld [vmem:[%s915 + $0xe8] sm:$0xff]
        %v1222 = vld [vmem:[%s915 + $0xf0] sm:$0xff]
        %v1223 = vld [vmem:[%s915 + $0xf8] sm:$0xff]
        %v1224 = vld [vmem:[%s1140] sm:$0x3]
        %v1226 = vlaneseq
        %v1227 = vshrl.u32 %v1226, 7
        %v1228 = vsub.s32 0, %v1227
        %v1229 = vrot.slane %v1224, %v1228
        %v1230 = vlaneseq
        %v1231 = vshrl.u32 %v1230, 7
        %v1232 = vsub.s32 1, %v1231
        %v1233 = vrot.slane %v1224, %v1232
        %v1268 = vunpack.c.l.b16 %v1192
        %v1269 = vunpack.c.h.b16 %v1192
        %v1270 = vunpack.c.l.b16 %v1193
        %v1271 = vunpack.c.h.b16 %v1193
        %v1272 = vunpack.c.l.b16 %v1194
        %v1273 = vunpack.c.h.b16 %v1194
        %v1274 = vunpack.c.l.b16 %v1195
        %v1275 = vunpack.c.h.b16 %v1195
        %v1276 = vunpack.c.l.b16 %v1196
        %v1277 = vunpack.c.h.b16 %v1196
        %v1278 = vunpack.c.l.b16 %v1197
        %v1279 = vunpack.c.h.b16 %v1197
        %v1280 = vunpack.c.l.b16 %v1198
        %v1281 = vunpack.c.h.b16 %v1198
        %v1282 = vunpack.c.l.b16 %v1199
        %v1283 = vunpack.c.h.b16 %v1199
        %v1284 = vunpack.c.l.b16 %v1200
        %v1285 = vunpack.c.h.b16 %v1200
        %v1286 = vunpack.c.l.b16 %v1201
        %v1287 = vunpack.c.h.b16 %v1201
        %v1288 = vunpack.c.l.b16 %v1202
        %v1289 = vunpack.c.h.b16 %v1202
        %v1290 = vunpack.c.l.b16 %v1203
        %v1291 = vunpack.c.h.b16 %v1203
        %v1292 = vunpack.c.l.b16 %v1204
        %v1293 = vunpack.c.h.b16 %v1204
        %v1294 = vunpack.c.l.b16 %v1205
        %v1295 = vunpack.c.h.b16 %v1205
        %v1296 = vunpack.c.l.b16 %v1206
        %v1297 = vunpack.c.h.b16 %v1206
        %v1298 = vunpack.c.l.b16 %v1207
        %v1299 = vunpack.c.h.b16 %v1207
        %v1300 = vunpack.c.l.b16 %v1208
        %v1301 = vunpack.c.h.b16 %v1208
        %v1302 = vunpack.c.l.b16 %v1209
        %v1303 = vunpack.c.h.b16 %v1209
        %v1304 = vunpack.c.l.b16 %v1210
        %v1305 = vunpack.c.h.b16 %v1210
        %v1306 = vunpack.c.l.b16 %v1211
        %v1307 = vunpack.c.h.b16 %v1211
        %v1308 = vunpack.c.l.b16 %v1212
        %v1309 = vunpack.c.h.b16 %v1212
        %v1310 = vunpack.c.l.b16 %v1213
        %v1311 = vunpack.c.h.b16 %v1213
        %v1312 = vunpack.c.l.b16 %v1214
        %v1313 = vunpack.c.h.b16 %v1214
        %v1314 = vunpack.c.l.b16 %v1215
        %v1315 = vunpack.c.h.b16 %v1215
        %v1316 = vunpack.c.l.b16 %v1216
        %v1317 = vunpack.c.h.b16 %v1216
        %v1318 = vunpack.c.l.b16 %v1217
        %v1319 = vunpack.c.h.b16 %v1217
        %v1320 = vunpack.c.l.b16 %v1218
        %v1321 = vunpack.c.h.b16 %v1218
        %v1322 = vunpack.c.l.b16 %v1219
        %v1323 = vunpack.c.h.b16 %v1219
        %v1324 = vunpack.c.l.b16 %v1220
        %v1325 = vunpack.c.h.b16 %v1220
        %v1326 = vunpack.c.l.b16 %v1221
        %v1327 = vunpack.c.h.b16 %v1221
        %v1328 = vunpack.c.l.b16 %v1222
        %v1329 = vunpack.c.h.b16 %v1222
        %v1330 = vunpack.c.l.b16 %v1223
        %v1331 = vunpack.c.h.b16 %v1223
        %v1332 = vpack.c.b16 %v1270, %v1268
        %v1333 = vpack.c.b16 %v1271, %v1269
        %v1334 = vpack.c.b16 %v1274, %v1272
        %v1335 = vpack.c.b16 %v1275, %v1273
        %v1336 = vpack.c.b16 %v1278, %v1276
        %v1337 = vpack.c.b16 %v1279, %v1277
        %v1338 = vpack.c.b16 %v1282, %v1280
        %v1339 = vpack.c.b16 %v1283, %v1281
        %v1340 = vpack.c.b16 %v1286, %v1284
        %v1341 = vpack.c.b16 %v1287, %v1285
        %v1342 = vpack.c.b16 %v1290, %v1288
        %v1343 = vpack.c.b16 %v1291, %v1289
        %v1344 = vpack.c.b16 %v1294, %v1292
        %v1345 = vpack.c.b16 %v1295, %v1293
        %v1346 = vpack.c.b16 %v1298, %v1296
        %v1347 = vpack.c.b16 %v1299, %v1297
        %v1348 = vpack.c.b16 %v1302, %v1300
        %v1349 = vpack.c.b16 %v1303, %v1301
        %v1350 = vpack.c.b16 %v1306, %v1304
        %v1351 = vpack.c.b16 %v1307, %v1305
        %v1352 = vpack.c.b16 %v1310, %v1308
        %v1353 = vpack.c.b16 %v1311, %v1309
        %v1354 = vpack.c.b16 %v1314, %v1312
        %v1355 = vpack.c.b16 %v1315, %v1313
        %v1356 = vpack.c.b16 %v1318, %v1316
        %v1357 = vpack.c.b16 %v1319, %v1317
        %v1358 = vpack.c.b16 %v1322, %v1320
        %v1359 = vpack.c.b16 %v1323, %v1321
        %v1360 = vpack.c.b16 %v1326, %v1324
        %v1361 = vpack.c.b16 %v1327, %v1325
        %v1362 = vpack.c.b16 %v1330, %v1328
        %v1363 = vpack.c.b16 %v1331, %v1329
        %1396 = vmatprep.subr.bf16.mxu0 %v1347
        %1397 = vmatpush1.bf16.msra.mxu0 %v1346
        %1398 = vmatprep.subr.bf16.mxu0 %v1345
        %1399 = vmatpush1.bf16.msra.mxu0 %v1344
        %1400 = vmatprep.subr.bf16.mxu0 %v1343
        %1401 = vmatpush1.bf16.msra.mxu0 %v1342
        %1402 = vmatprep.subr.bf16.mxu0 %v1341
        %1403 = vmatpush1.bf16.msra.mxu0 %v1340
        %1404 = vmatprep.subr.bf16.mxu0 %v1339
        %1405 = vmatpush1.bf16.msra.mxu0 %v1338
        %1406 = vmatprep.subr.bf16.mxu0 %v1337
        %1407 = vmatpush1.bf16.msra.mxu0 %v1336
        %1408 = vmatprep.subr.bf16.mxu0 %v1335
        %1409 = vmatpush1.bf16.msra.mxu0 %v1334
        %1410 = vmatprep.subr.bf16.mxu0 %v1333
        %1411 = vmatpush1.bf16.msra.mxu0 %v1332
        %1412 = vmatprep.subr.bf16.mxu0 %v1363
        %1413 = vmatpush2.bf16.msra.mxu0 %v1362
        %1414 = vmatprep.subr.bf16.mxu0 %v1361
        %1415 = vmatpush2.bf16.msra.mxu0 %v1360
        %1416 = vmatprep.subr.bf16.mxu0 %v1359
        %1417 = vmatpush2.bf16.msra.mxu0 %v1358
        %1418 = vmatprep.subr.bf16.mxu0 %v1357
        %1419 = vmatpush2.bf16.msra.mxu0 %v1356
        %1420 = vmatprep.subr.bf16.mxu0 %v1355
        %1421 = vmatpush2.bf16.msra.mxu0 %v1354
        %1422 = vmatprep.subr.bf16.mxu0 %v1353
        %1423 = vmatpush2.bf16.msra.mxu0 %v1352
        %1424 = vmatprep.subr.bf16.mxu0 %v1351
        %1425 = vmatpush2.bf16.msra.mxu0 %v1350
        %1426 = vmatprep.subr.bf16.mxu0 %v1349
        %1427 = vmatpush2.bf16.msra.mxu0 %v1348
        %1428 = vmatprep.mubr.bf16.mxu0 %v1185
        %1429 = vmatmul.mubr.bf16.gmra.mxu0 %v1184
        %v1430 = vpop.f32.mrf.mxu0
        %v1431 = vadd.f32 %v1229, %v1430
        %v1432 = vpop.f32.mrf.mxu0
        %v1433 = vadd.f32 %v1233, %v1432
        %v1434 = vpop.f32.mrf.mxu0
        %v1435 = vadd.f32 %v1229, %v1434
        %v1436 = vpop.f32.mrf.mxu0
        %v1437 = vadd.f32 %v1233, %v1436
        %1438 = vdwg.mxu0
        %v1439 = vld [vmem:[%s924] sm:$0xff]
        %v1440 = vld [vmem:[%s924 + $0x8] sm:$0xff]
        %v1441 = vld [vmem:[%s924 + $0x10] sm:$0xff]
        %v1442 = vld [vmem:[%s924 + $0x18] sm:$0xff]
        %v1443 = vld [vmem:[%s924 + $0x20] sm:$0xff]
        %v1444 = vld [vmem:[%s924 + $0x28] sm:$0xff]
        %v1445 = vld [vmem:[%s924 + $0x30] sm:$0xff]
        %v1446 = vld [vmem:[%s924 + $0x38] sm:$0xff]
        %v1447 = vld [vmem:[%s924 + $0x40] sm:$0xff]
        %v1448 = vld [vmem:[%s924 + $0x48] sm:$0xff]
        %v1449 = vld [vmem:[%s924 + $0x50] sm:$0xff]
        %v1450 = vld [vmem:[%s924 + $0x58] sm:$0xff]
        %v1451 = vld [vmem:[%s924 + $0x60] sm:$0xff]
        %v1452 = vld [vmem:[%s924 + $0x68] sm:$0xff]
        %v1453 = vld [vmem:[%s924 + $0x70] sm:$0xff]
        %v1454 = vld [vmem:[%s924 + $0x78] sm:$0xff]
        %v1455 = vld [vmem:[%s924 + $0x80] sm:$0xff]
        %v1456 = vld [vmem:[%s924 + $0x88] sm:$0xff]
        %v1457 = vld [vmem:[%s924 + $0x90] sm:$0xff]
        %v1458 = vld [vmem:[%s924 + $0x98] sm:$0xff]
        %v1459 = vld [vmem:[%s924 + $0xa0] sm:$0xff]
        %v1460 = vld [vmem:[%s924 + $0xa8] sm:$0xff]
        %v1461 = vld [vmem:[%s924 + $0xb0] sm:$0xff]
        %v1462 = vld [vmem:[%s924 + $0xb8] sm:$0xff]
        %v1463 = vld [vmem:[%s924 + $0xc0] sm:$0xff]
        %v1464 = vld [vmem:[%s924 + $0xc8] sm:$0xff]
        %v1465 = vld [vmem:[%s924 + $0xd0] sm:$0xff]
        %v1466 = vld [vmem:[%s924 + $0xd8] sm:$0xff]
        %v1467 = vld [vmem:[%s924 + $0xe0] sm:$0xff]
        %v1468 = vld [vmem:[%s924 + $0xe8] sm:$0xff]
        %v1469 = vld [vmem:[%s924 + $0xf0] sm:$0xff]
        %v1470 = vld [vmem:[%s924 + $0xf8] sm:$0xff]
        %v1471 = vld [vmem:[%s1144] sm:$0x3]
        %v1473 = vlaneseq
        %v1474 = vshrl.u32 %v1473, 7
        %v1475 = vsub.s32 0, %v1474
        %v1476 = vrot.slane %v1471, %v1475
        %v1477 = vlaneseq
        %v1478 = vshrl.u32 %v1477, 7
        %v1479 = vsub.s32 1, %v1478
        %v1480 = vrot.slane %v1471, %v1479
        %v1515 = vunpack.c.l.b16 %v1439
        %v1516 = vunpack.c.h.b16 %v1439
        %v1517 = vunpack.c.l.b16 %v1440
        %v1518 = vunpack.c.h.b16 %v1440
        %v1519 = vunpack.c.l.b16 %v1441
        %v1520 = vunpack.c.h.b16 %v1441
        %v1521 = vunpack.c.l.b16 %v1442
        %v1522 = vunpack.c.h.b16 %v1442
        %v1523 = vunpack.c.l.b16 %v1443
        %v1524 = vunpack.c.h.b16 %v1443
        %v1525 = vunpack.c.l.b16 %v1444
        %v1526 = vunpack.c.h.b16 %v1444
        %v1527 = vunpack.c.l.b16 %v1445
        %v1528 = vunpack.c.h.b16 %v1445
        %v1529 = vunpack.c.l.b16 %v1446
        %v1530 = vunpack.c.h.b16 %v1446
        %v1531 = vunpack.c.l.b16 %v1447
        %v1532 = vunpack.c.h.b16 %v1447
        %v1533 = vunpack.c.l.b16 %v1448
        %v1534 = vunpack.c.h.b16 %v1448
        %v1535 = vunpack.c.l.b16 %v1449
        %v1536 = vunpack.c.h.b16 %v1449
        %v1537 = vunpack.c.l.b16 %v1450
        %v1538 = vunpack.c.h.b16 %v1450
        %v1539 = vunpack.c.l.b16 %v1451
        %v1540 = vunpack.c.h.b16 %v1451
        %v1541 = vunpack.c.l.b16 %v1452
        %v1542 = vunpack.c.h.b16 %v1452
        %v1543 = vunpack.c.l.b16 %v1453
        %v1544 = vunpack.c.h.b16 %v1453
        %v1545 = vunpack.c.l.b16 %v1454
        %v1546 = vunpack.c.h.b16 %v1454
        %v1547 = vunpack.c.l.b16 %v1455
        %v1548 = vunpack.c.h.b16 %v1455
        %v1549 = vunpack.c.l.b16 %v1456
        %v1550 = vunpack.c.h.b16 %v1456
        %v1551 = vunpack.c.l.b16 %v1457
        %v1552 = vunpack.c.h.b16 %v1457
        %v1553 = vunpack.c.l.b16 %v1458
        %v1554 = vunpack.c.h.b16 %v1458
        %v1555 = vunpack.c.l.b16 %v1459
        %v1556 = vunpack.c.h.b16 %v1459
        %v1557 = vunpack.c.l.b16 %v1460
        %v1558 = vunpack.c.h.b16 %v1460
        %v1559 = vunpack.c.l.b16 %v1461
        %v1560 = vunpack.c.h.b16 %v1461
        %v1561 = vunpack.c.l.b16 %v1462
        %v1562 = vunpack.c.h.b16 %v1462
        %v1563 = vunpack.c.l.b16 %v1463
        %v1564 = vunpack.c.h.b16 %v1463
        %v1565 = vunpack.c.l.b16 %v1464
        %v1566 = vunpack.c.h.b16 %v1464
        %v1567 = vunpack.c.l.b16 %v1465
        %v1568 = vunpack.c.h.b16 %v1465
        %v1569 = vunpack.c.l.b16 %v1466
        %v1570 = vunpack.c.h.b16 %v1466
        %v1571 = vunpack.c.l.b16 %v1467
        %v1572 = vunpack.c.h.b16 %v1467
        %v1573 = vunpack.c.l.b16 %v1468
        %v1574 = vunpack.c.h.b16 %v1468
        %v1575 = vunpack.c.l.b16 %v1469
        %v1576 = vunpack.c.h.b16 %v1469
        %v1577 = vunpack.c.l.b16 %v1470
        %v1578 = vunpack.c.h.b16 %v1470
        %v1579 = vpack.c.b16 %v1517, %v1515
        %v1580 = vpack.c.b16 %v1518, %v1516
        %v1581 = vpack.c.b16 %v1521, %v1519
        %v1582 = vpack.c.b16 %v1522, %v1520
        %v1583 = vpack.c.b16 %v1525, %v1523
        %v1584 = vpack.c.b16 %v1526, %v1524
        %v1585 = vpack.c.b16 %v1529, %v1527
        %v1586 = vpack.c.b16 %v1530, %v1528
        %v1587 = vpack.c.b16 %v1533, %v1531
        %v1588 = vpack.c.b16 %v1534, %v1532
        %v1589 = vpack.c.b16 %v1537, %v1535
        %v1590 = vpack.c.b16 %v1538, %v1536
        %v1591 = vpack.c.b16 %v1541, %v1539
        %v1592 = vpack.c.b16 %v1542, %v1540
        %v1593 = vpack.c.b16 %v1545, %v1543
        %v1594 = vpack.c.b16 %v1546, %v1544
        %v1595 = vpack.c.b16 %v1549, %v1547
        %v1596 = vpack.c.b16 %v1550, %v1548
        %v1597 = vpack.c.b16 %v1553, %v1551
        %v1598 = vpack.c.b16 %v1554, %v1552
        %v1599 = vpack.c.b16 %v1557, %v1555
        %v1600 = vpack.c.b16 %v1558, %v1556
        %v1601 = vpack.c.b16 %v1561, %v1559
        %v1602 = vpack.c.b16 %v1562, %v1560
        %v1603 = vpack.c.b16 %v1565, %v1563
        %v1604 = vpack.c.b16 %v1566, %v1564
        %v1605 = vpack.c.b16 %v1569, %v1567
        %v1606 = vpack.c.b16 %v1570, %v1568
        %v1607 = vpack.c.b16 %v1573, %v1571
        %v1608 = vpack.c.b16 %v1574, %v1572
        %v1609 = vpack.c.b16 %v1577, %v1575
        %v1610 = vpack.c.b16 %v1578, %v1576
        %1643 = vmatprep.subr.bf16.mxu0 %v1594
        %1644 = vmatpush1.bf16.msra.mxu0 %v1593
        %1645 = vmatprep.subr.bf16.mxu0 %v1592
        %1646 = vmatpush1.bf16.msra.mxu0 %v1591
        %1647 = vmatprep.subr.bf16.mxu0 %v1590
        %1648 = vmatpush1.bf16.msra.mxu0 %v1589
        %1649 = vmatprep.subr.bf16.mxu0 %v1588
        %1650 = vmatpush1.bf16.msra.mxu0 %v1587
        %1651 = vmatprep.subr.bf16.mxu0 %v1586
        %1652 = vmatpush1.bf16.msra.mxu0 %v1585
        %1653 = vmatprep.subr.bf16.mxu0 %v1584
        %1654 = vmatpush1.bf16.msra.mxu0 %v1583
        %1655 = vmatprep.subr.bf16.mxu0 %v1582
        %1656 = vmatpush1.bf16.msra.mxu0 %v1581
        %1657 = vmatprep.subr.bf16.mxu0 %v1580
        %1658 = vmatpush1.bf16.msra.mxu0 %v1579
        %1659 = vmatprep.subr.bf16.mxu0 %v1610
        %1660 = vmatpush2.bf16.msra.mxu0 %v1609
        %1661 = vmatprep.subr.bf16.mxu0 %v1608
        %1662 = vmatpush2.bf16.msra.mxu0 %v1607
        %1663 = vmatprep.subr.bf16.mxu0 %v1606
        %1664 = vmatpush2.bf16.msra.mxu0 %v1605
        %1665 = vmatprep.subr.bf16.mxu0 %v1604
        %1666 = vmatpush2.bf16.msra.mxu0 %v1603
        %1667 = vmatprep.subr.bf16.mxu0 %v1602
        %1668 = vmatpush2.bf16.msra.mxu0 %v1601
        %1669 = vmatprep.subr.bf16.mxu0 %v1600
        %1670 = vmatpush2.bf16.msra.mxu0 %v1599
        %1671 = vmatprep.subr.bf16.mxu0 %v1598
        %1672 = vmatpush2.bf16.msra.mxu0 %v1597
        %1673 = vmatprep.subr.bf16.mxu0 %v1596
        %1674 = vmatpush2.bf16.msra.mxu0 %v1595
        %1675 = vmatprep.mubr.bf16.mxu0 %v1191
        %1676 = vmatmul.mubr.bf16.gmra.mxu0 %v1190
        %v1677 = vpop.f32.mrf.mxu0
        %v1678 = vadd.f32 %v1476, %v1677
        %v1679 = vpop.f32.mrf.mxu0
        %v1680 = vadd.f32 %v1480, %v1679
        %v1681 = vpop.f32.mrf.mxu0
        %v1682 = vadd.f32 %v1476, %v1681
        %v1683 = vpop.f32.mrf.mxu0
        %v1684 = vadd.f32 %v1480, %v1683
        %1685 = vdwg.mxu0
        %v1686 = vld [vmem:[%s933] sm:$0xff]
        %v1687 = vld [vmem:[%s933 + $0x8] sm:$0xff]
        %v1688 = vld [vmem:[%s933 + $0x10] sm:$0xff]
        %v1689 = vld [vmem:[%s933 + $0x18] sm:$0xff]
        %v1690 = vld [vmem:[%s933 + $0x20] sm:$0xff]
        %v1691 = vld [vmem:[%s933 + $0x28] sm:$0xff]
        %v1692 = vld [vmem:[%s933 + $0x30] sm:$0xff]
        %v1693 = vld [vmem:[%s933 + $0x38] sm:$0xff]
        %v1694 = vld [vmem:[%s933 + $0x40] sm:$0xff]
        %v1695 = vld [vmem:[%s933 + $0x48] sm:$0xff]
        %v1696 = vld [vmem:[%s933 + $0x50] sm:$0xff]
        %v1697 = vld [vmem:[%s933 + $0x58] sm:$0xff]
        %v1698 = vld [vmem:[%s933 + $0x60] sm:$0xff]
        %v1699 = vld [vmem:[%s933 + $0x68] sm:$0xff]
        %v1700 = vld [vmem:[%s933 + $0x70] sm:$0xff]
        %v1701 = vld [vmem:[%s933 + $0x78] sm:$0xff]
        %v1702 = vld [vmem:[%s933 + $0x80] sm:$0xff]
        %v1703 = vld [vmem:[%s933 + $0x88] sm:$0xff]
        %v1704 = vld [vmem:[%s933 + $0x90] sm:$0xff]
        %v1705 = vld [vmem:[%s933 + $0x98] sm:$0xff]
        %v1706 = vld [vmem:[%s933 + $0xa0] sm:$0xff]
        %v1707 = vld [vmem:[%s933 + $0xa8] sm:$0xff]
        %v1708 = vld [vmem:[%s933 + $0xb0] sm:$0xff]
        %v1709 = vld [vmem:[%s933 + $0xb8] sm:$0xff]
        %v1710 = vld [vmem:[%s933 + $0xc0] sm:$0xff]
        %v1711 = vld [vmem:[%s933 + $0xc8] sm:$0xff]
        %v1712 = vld [vmem:[%s933 + $0xd0] sm:$0xff]
        %v1713 = vld [vmem:[%s933 + $0xd8] sm:$0xff]
        %v1714 = vld [vmem:[%s933 + $0xe0] sm:$0xff]
        %v1715 = vld [vmem:[%s933 + $0xe8] sm:$0xff]
        %v1716 = vld [vmem:[%s933 + $0xf0] sm:$0xff]
        %v1717 = vld [vmem:[%s933 + $0xf8] sm:$0xff]
        %v1718 = vld [vmem:[%s942] sm:$0x3]
        %v1720 = vlaneseq
        %v1721 = vshrl.u32 %v1720, 7
        %v1722 = vsub.s32 0, %v1721
        %v1723 = vrot.slane %v1718, %v1722
        %v1724 = vlaneseq
        %v1725 = vshrl.u32 %v1724, 7
        %v1726 = vsub.s32 1, %v1725
        %v1727 = vrot.slane %v1718, %v1726
        %v1762 = vunpack.c.l.b16 %v1686
        %v1763 = vunpack.c.h.b16 %v1686
        %v1764 = vunpack.c.l.b16 %v1687
        %v1765 = vunpack.c.h.b16 %v1687
        %v1766 = vunpack.c.l.b16 %v1688
        %v1767 = vunpack.c.h.b16 %v1688
        %v1768 = vunpack.c.l.b16 %v1689
        %v1769 = vunpack.c.h.b16 %v1689
        %v1770 = vunpack.c.l.b16 %v1690
        %v1771 = vunpack.c.h.b16 %v1690
        %v1772 = vunpack.c.l.b16 %v1691
        %v1773 = vunpack.c.h.b16 %v1691
        %v1774 = vunpack.c.l.b16 %v1692
        %v1775 = vunpack.c.h.b16 %v1692
        %v1776 = vunpack.c.l.b16 %v1693
        %v1777 = vunpack.c.h.b16 %v1693
        %v1778 = vunpack.c.l.b16 %v1694
        %v1779 = vunpack.c.h.b16 %v1694
        %v1780 = vunpack.c.l.b16 %v1695
        %v1781 = vunpack.c.h.b16 %v1695
        %v1782 = vunpack.c.l.b16 %v1696
        %v1783 = vunpack.c.h.b16 %v1696
        %v1784 = vunpack.c.l.b16 %v1697
        %v1785 = vunpack.c.h.b16 %v1697
        %v1786 = vunpack.c.l.b16 %v1698
        %v1787 = vunpack.c.h.b16 %v1698
        %v1788 = vunpack.c.l.b16 %v1699
        %v1789 = vunpack.c.h.b16 %v1699
        %v1790 = vunpack.c.l.b16 %v1700
        %v1791 = vunpack.c.h.b16 %v1700
        %v1792 = vunpack.c.l.b16 %v1701
        %v1793 = vunpack.c.h.b16 %v1701
        %v1794 = vunpack.c.l.b16 %v1702
        %v1795 = vunpack.c.h.b16 %v1702
        %v1796 = vunpack.c.l.b16 %v1703
        %v1797 = vunpack.c.h.b16 %v1703
        %v1798 = vunpack.c.l.b16 %v1704
        %v1799 = vunpack.c.h.b16 %v1704
        %v1800 = vunpack.c.l.b16 %v1705
        %v1801 = vunpack.c.h.b16 %v1705
        %v1802 = vunpack.c.l.b16 %v1706
        %v1803 = vunpack.c.h.b16 %v1706
        %v1804 = vunpack.c.l.b16 %v1707
        %v1805 = vunpack.c.h.b16 %v1707
        %v1806 = vunpack.c.l.b16 %v1708
        %v1807 = vunpack.c.h.b16 %v1708
        %v1808 = vunpack.c.l.b16 %v1709
        %v1809 = vunpack.c.h.b16 %v1709
        %v1810 = vunpack.c.l.b16 %v1710
        %v1811 = vunpack.c.h.b16 %v1710
        %v1812 = vunpack.c.l.b16 %v1711
        %v1813 = vunpack.c.h.b16 %v1711
        %v1814 = vunpack.c.l.b16 %v1712
        %v1815 = vunpack.c.h.b16 %v1712
        %v1816 = vunpack.c.l.b16 %v1713
        %v1817 = vunpack.c.h.b16 %v1713
        %v1818 = vunpack.c.l.b16 %v1714
        %v1819 = vunpack.c.h.b16 %v1714
        %v1820 = vunpack.c.l.b16 %v1715
        %v1821 = vunpack.c.h.b16 %v1715
        %v1822 = vunpack.c.l.b16 %v1716
        %v1823 = vunpack.c.h.b16 %v1716
        %v1824 = vunpack.c.l.b16 %v1717
        %v1825 = vunpack.c.h.b16 %v1717
        %v1826 = vpack.c.b16 %v1764, %v1762
        %v1827 = vpack.c.b16 %v1765, %v1763
        %v1828 = vpack.c.b16 %v1768, %v1766
        %v1829 = vpack.c.b16 %v1769, %v1767
        %v1830 = vpack.c.b16 %v1772, %v1770
        %v1831 = vpack.c.b16 %v1773, %v1771
        %v1832 = vpack.c.b16 %v1776, %v1774
        %v1833 = vpack.c.b16 %v1777, %v1775
        %v1834 = vpack.c.b16 %v1780, %v1778
        %v1835 = vpack.c.b16 %v1781, %v1779
        %v1836 = vpack.c.b16 %v1784, %v1782
        %v1837 = vpack.c.b16 %v1785, %v1783
        %v1838 = vpack.c.b16 %v1788, %v1786
        %v1839 = vpack.c.b16 %v1789, %v1787
        %v1840 = vpack.c.b16 %v1792, %v1790
        %v1841 = vpack.c.b16 %v1793, %v1791
        %v1842 = vpack.c.b16 %v1796, %v1794
        %v1843 = vpack.c.b16 %v1797, %v1795
        %v1844 = vpack.c.b16 %v1800, %v1798
        %v1845 = vpack.c.b16 %v1801, %v1799
        %v1846 = vpack.c.b16 %v1804, %v1802
        %v1847 = vpack.c.b16 %v1805, %v1803
        %v1848 = vpack.c.b16 %v1808, %v1806
        %v1849 = vpack.c.b16 %v1809, %v1807
        %v1850 = vpack.c.b16 %v1812, %v1810
        %v1851 = vpack.c.b16 %v1813, %v1811
        %v1852 = vpack.c.b16 %v1816, %v1814
        %v1853 = vpack.c.b16 %v1817, %v1815
        %v1854 = vpack.c.b16 %v1820, %v1818
        %v1855 = vpack.c.b16 %v1821, %v1819
        %v1856 = vpack.c.b16 %v1824, %v1822
        %v1857 = vpack.c.b16 %v1825, %v1823
        %1890 = vmatprep.subr.bf16.mxu0 %v1841
        %1891 = vmatpush1.bf16.msra.mxu0 %v1840
        %1892 = vmatprep.subr.bf16.mxu0 %v1839
        %1893 = vmatpush1.bf16.msra.mxu0 %v1838
        %1894 = vmatprep.subr.bf16.mxu0 %v1837
        %1895 = vmatpush1.bf16.msra.mxu0 %v1836
        %1896 = vmatprep.subr.bf16.mxu0 %v1835
        %1897 = vmatpush1.bf16.msra.mxu0 %v1834
        %1898 = vmatprep.subr.bf16.mxu0 %v1833
        %1899 = vmatpush1.bf16.msra.mxu0 %v1832
        %1900 = vmatprep.subr.bf16.mxu0 %v1831
        %1901 = vmatpush1.bf16.msra.mxu0 %v1830
        %1902 = vmatprep.subr.bf16.mxu0 %v1829
        %1903 = vmatpush1.bf16.msra.mxu0 %v1828
        %1904 = vmatprep.subr.bf16.mxu0 %v1827
        %1905 = vmatpush1.bf16.msra.mxu0 %v1826
        %1906 = vmatprep.subr.bf16.mxu0 %v1857
        %1907 = vmatpush2.bf16.msra.mxu0 %v1856
        %1908 = vmatprep.subr.bf16.mxu0 %v1855
        %1909 = vmatpush2.bf16.msra.mxu0 %v1854
        %1910 = vmatprep.subr.bf16.mxu0 %v1853
        %1911 = vmatpush2.bf16.msra.mxu0 %v1852
        %1912 = vmatprep.subr.bf16.mxu0 %v1851
        %1913 = vmatpush2.bf16.msra.mxu0 %v1850
        %1914 = vmatprep.subr.bf16.mxu0 %v1849
        %1915 = vmatpush2.bf16.msra.mxu0 %v1848
        %1916 = vmatprep.subr.bf16.mxu0 %v1847
        %1917 = vmatpush2.bf16.msra.mxu0 %v1846
        %1918 = vmatprep.subr.bf16.mxu0 %v1845
        %1919 = vmatpush2.bf16.msra.mxu0 %v1844
        %1920 = vmatprep.subr.bf16.mxu0 %v1843
        %1921 = vmatpush2.bf16.msra.mxu0 %v1842
        %1922 = vmatprep.mubr.bf16.mxu0 %v1191
        %1923 = vmatmul.mubr.bf16.gmra.mxu0 %v1190
        %v1924 = vpop.f32.mrf.mxu0
        %v1925 = vadd.f32 %v1723, %v1924
        %v1926 = vpop.f32.mrf.mxu0
        %v1927 = vadd.f32 %v1727, %v1926
        %v1928 = vpop.f32.mrf.mxu0
        %v1929 = vadd.f32 %v1723, %v1928
        %v1930 = vpop.f32.mrf.mxu0
        %v1931 = vadd.f32 %v1727, %v1930
        %1932 = vdwg.mxu0
        %v1933 = vpack.c.bf16 %v1431, %v1431
        %v1934 = vpack.c.bf16 %v1433, %v1433
        %v1935 = vpack.c.bf16 %v1435, %v1435
        %v1936 = vpack.c.bf16 %v1437, %v1437
        %v1937 = vpack.c.bf16 %v1678, %v1678
        %v1938 = vpack.c.bf16 %v1680, %v1680
        %v1939 = vpack.c.bf16 %v1682, %v1682
        %v1940 = vpack.c.bf16 %v1684, %v1684
        %v1941 = vpack.c.bf16 %v1925, %v1925
        %v1942 = vpack.c.bf16 %v1927, %v1927
        %v1943 = vpack.c.bf16 %v1929, %v1929
        %v1944 = vpack.c.bf16 %v1931, %v1931
        %v1945 = vld [vmem:[#allocation7] sm:$0x1]
        %v1946 = vld [vmem:[#allocation7 + $0x1] sm:$0x1]
        %v1949 = vlaneseq
        %v1950 = vshrl.u32 %v1949, 7
        %v1951 = vsub.s32 0, %v1950
        %v1952 = vrot.slane %v1945, %v1951
        %v1953 = vlaneseq
        %v1954 = vshrl.u32 %v1953, 7
        %v1955 = vsub.s32 0, %v1954
        %v1956 = vrot.slane %v1946, %v1955
        %v1959 = vld [vmem:[%s951] sm:$0xff]
        %v1960 = vld [vmem:[%s951 + $0x8] sm:$0xff]
        %v1961 = vld [vmem:[%s951 + $0x10] sm:$0xff]
        %v1962 = vld [vmem:[%s951 + $0x18] sm:$0xff]
        %v1963 = vld [vmem:[%s951 + $0x20] sm:$0xff]
        %v1964 = vld [vmem:[%s951 + $0x28] sm:$0xff]
        %v1965 = vld [vmem:[%s951 + $0x30] sm:$0xff]
        %v1966 = vld [vmem:[%s951 + $0x38] sm:$0xff]
        %v1967 = vld [vmem:[%s951 + $0x40] sm:$0xff]
        %v1968 = vld [vmem:[%s951 + $0x48] sm:$0xff]
        %v1969 = vld [vmem:[%s951 + $0x50] sm:$0xff]
        %v1970 = vld [vmem:[%s951 + $0x58] sm:$0xff]
        %v1971 = vld [vmem:[%s951 + $0x60] sm:$0xff]
        %v1972 = vld [vmem:[%s951 + $0x68] sm:$0xff]
        %v1973 = vld [vmem:[%s951 + $0x70] sm:$0xff]
        %v1974 = vld [vmem:[%s951 + $0x78] sm:$0xff]
        %v1975 = vld [vmem:[%s951 + $0x80] sm:$0xff]
        %v1976 = vld [vmem:[%s951 + $0x88] sm:$0xff]
        %v1977 = vld [vmem:[%s951 + $0x90] sm:$0xff]
        %v1978 = vld [vmem:[%s951 + $0x98] sm:$0xff]
        %v1979 = vld [vmem:[%s951 + $0xa0] sm:$0xff]
        %v1980 = vld [vmem:[%s951 + $0xa8] sm:$0xff]
        %v1981 = vld [vmem:[%s951 + $0xb0] sm:$0xff]
        %v1982 = vld [vmem:[%s951 + $0xb8] sm:$0xff]
        %v1983 = vld [vmem:[%s951 + $0xc0] sm:$0xff]
        %v1984 = vld [vmem:[%s951 + $0xc8] sm:$0xff]
        %v1985 = vld [vmem:[%s951 + $0xd0] sm:$0xff]
        %v1986 = vld [vmem:[%s951 + $0xd8] sm:$0xff]
        %v1987 = vld [vmem:[%s951 + $0xe0] sm:$0xff]
        %v1988 = vld [vmem:[%s951 + $0xe8] sm:$0xff]
        %v1989 = vld [vmem:[%s951 + $0xf0] sm:$0xff]
        %v1990 = vld [vmem:[%s951 + $0xf8] sm:$0xff]
        %1991 = vmatprep.subr.bf16.mxu0 0
        %1992 = vmatpush1.bf16.xpose.msra.mxu0 0
        %1993 = vmatprep.subr.bf16.mxu0 0
        %1994 = vmatpush1.bf16.xpose.msra.mxu0 0
        %1995 = vmatprep.subr.bf16.mxu0 0
        %1996 = vmatpush1.bf16.xpose.msra.mxu0 0
        %1997 = vmatprep.subr.bf16.mxu0 0
        %1998 = vmatpush1.bf16.xpose.msra.mxu0 0
        %1999 = vmatprep.subr.bf16.mxu0 0
        %2000 = vmatpush1.bf16.xpose.msra.mxu0 0
        %2001 = vmatprep.subr.bf16.mxu0 0
        %2002 = vmatpush1.bf16.xpose.msra.mxu0 0
        %2003 = vmatprep.subr.bf16.mxu0 0
        %2004 = vmatpush1.bf16.xpose.msra.mxu0 0
        %2005 = vmatprep.subr.bf16.mxu0 0
        %2006 = vmatpush1.bf16.xpose.msra.mxu0 %v1937
        %2007 = vmatprep.subr.bf16.mxu0 0
        %2008 = vmatpush2.bf16.xpose.msra.mxu0 0
        %2009 = vmatprep.subr.bf16.mxu0 0
        %2010 = vmatpush2.bf16.xpose.msra.mxu0 0
        %2011 = vmatprep.subr.bf16.mxu0 0
        %2012 = vmatpush2.bf16.xpose.msra.mxu0 0
        %2013 = vmatprep.subr.bf16.mxu0 0
        %2014 = vmatpush2.bf16.xpose.msra.mxu0 0
        %2015 = vmatprep.subr.bf16.mxu0 0
        %2016 = vmatpush2.bf16.xpose.msra.mxu0 0
        %2017 = vmatprep.subr.bf16.mxu0 0
        %2018 = vmatpush2.bf16.xpose.msra.mxu0 0
        %2019 = vmatprep.subr.bf16.mxu0 0
        %2020 = vmatpush2.bf16.xpose.msra.mxu0 0
        %2021 = vmatprep.subr.bf16.mxu0 0
        %2022 = vmatpush2.bf16.xpose.msra.mxu0 0
        %2023 = vmatprep.mubr.bf16.mxu0 0
        %2024 = vmatmul.mubr.bf16.gmra.mxu0 %v1933
        %v2025 = vpop.f32.mrf.mxu0
        %v2026 = vadd.f32 0.0, %v2025
        %v2027 = vpop.f32.mrf.mxu0
        %v2028 = vpop.f32.mrf.mxu0
        %v2029 = vpop.f32.mrf.mxu0
        %2030 = vdwg.mxu0
        %2031 = vmatprep.subr.bf16.mxu0 0
        %2032 = vmatpush1.bf16.xpose.msra.mxu0 0
        %2033 = vmatprep.subr.bf16.mxu0 0
        %2034 = vmatpush1.bf16.xpose.msra.mxu0 0
        %2035 = vmatprep.subr.bf16.mxu0 0
        %2036 = vmatpush1.bf16.xpose.msra.mxu0 0
        %2037 = vmatprep.subr.bf16.mxu0 0
        %2038 = vmatpush1.bf16.xpose.msra.mxu0 0
        %2039 = vmatprep.subr.bf16.mxu0 0
        %2040 = vmatpush1.bf16.xpose.msra.mxu0 0
        %2041 = vmatprep.subr.bf16.mxu0 0
        %2042 = vmatpush1.bf16.xpose.msra.mxu0 0
        %2043 = vmatprep.subr.bf16.mxu0 0
        %2044 = vmatpush1.bf16.xpose.msra.mxu0 0
        %2045 = vmatprep.subr.bf16.mxu0 0
        %2046 = vmatpush1.bf16.xpose.msra.mxu0 %v1939
        %2047 = vmatprep.subr.bf16.mxu0 0
        %2048 = vmatpush2.bf16.xpose.msra.mxu0 0
        %2049 = vmatprep.subr.bf16.mxu0 0
        %2050 = vmatpush2.bf16.xpose.msra.mxu0 0
        %2051 = vmatprep.subr.bf16.mxu0 0
        %2052 = vmatpush2.bf16.xpose.msra.mxu0 0
        %2053 = vmatprep.subr.bf16.mxu0 0
        %2054 = vmatpush2.bf16.xpose.msra.mxu0 0
        %2055 = vmatprep.subr.bf16.mxu0 0
        %2056 = vmatpush2.bf16.xpose.msra.mxu0 0
        %2057 = vmatprep.subr.bf16.mxu0 0
        %2058 = vmatpush2.bf16.xpose.msra.mxu0 0
        %2059 = vmatprep.subr.bf16.mxu0 0
        %2060 = vmatpush2.bf16.xpose.msra.mxu0 0
        %2061 = vmatprep.subr.bf16.mxu0 0
        %2062 = vmatpush2.bf16.xpose.msra.mxu0 0
        %2063 = vmatprep.mubr.bf16.mxu0 0
        %2064 = vmatmul.mubr.bf16.gmra.mxu0 %v1935
        %v2065 = vpop.f32.mrf.mxu0
        %v2066 = vadd.f32 0.0, %v2065
        %v2067 = vpop.f32.mrf.mxu0
        %v2068 = vpop.f32.mrf.mxu0
        %v2069 = vpop.f32.mrf.mxu0
        %2070 = vdwg.mxu0
        %v2071 = vmul.f32 %v2026, 0.088388346
        %v2072 = vmul.f32 %v2066, 0.088388346
        %v2073 = vadd.f32 %v2071, %v1952
        %v2074 = vadd.f32 %v2072, %v1956
        %vm2075 = vcmask 64512
        %v2076 = vsel %vm2075, %v2073, -inf
        %2077 = vmax.xlane.f32.xlu0 %v2076
        %v2078 = vpop.xlane.xlu0 %2077
        %v2079 = vsel %vm2075, %v2074, -inf
        %2080 = vmax.xlane.f32.xlu0 %v2079
        %v2081 = vpop.xlane.xlu0 %2080
        %v2082 = vsub.f32 %v2073, %v2078
        %v2083 = vsub.f32 %v2074, %v2081
        %v2084 = vmul.f32 %v2082, 1.442695
        %v2085 = vpow.pop %v2084
        %v2086 = vmul.f32 %v2083, 1.442695
        %v2087 = vpow.pop %v2086
        %v2088 = vsel %vm2075, %v2085, 0.0
        %2089 = vadd.xlane.f32.xlu0 %v2088
        %v2090 = vpop.xlane.xlu0 %2089
        %v2091 = vsel %vm2075, %v2087, 0.0
        %2092 = vadd.xlane.f32.xlu0 %v2091
        %v2093 = vpop.xlane.xlu0 %2092
        %v2094 = vrcp.pop %v2090
        %v2095 = vrcp.pop %v2093
        %v2096 = vmul.f32 %v2085, %v2094
        %v2097 = vmul.f32 %v2087, %v2095
        %v2098 = vpack.c.bf16 %v2096, %v2096
        %v2099 = vpack.c.bf16 %v2097, %v2097
        %v2101 = vsel %vm2075, %v2098, 0
        %vm2103 = vcmask 1043456
        %v2105 = vsel %vm2103, %v1941, 0
        %2107 = vmatprep.subr.bf16.mxu0 0
        %2108 = vmatpush1.bf16.msra.mxu0 0
        %2109 = vmatprep.subr.bf16.mxu0 0
        %2110 = vmatpush1.bf16.msra.mxu0 0
        %2111 = vmatprep.subr.bf16.mxu0 0
        %2112 = vmatpush1.bf16.msra.mxu0 0
        %2113 = vmatprep.subr.bf16.mxu0 0
        %2114 = vmatpush1.bf16.msra.mxu0 0
        %2115 = vmatprep.subr.bf16.mxu0 0
        %2116 = vmatpush1.bf16.msra.mxu0 0
        %2117 = vmatprep.subr.bf16.mxu0 0
        %2118 = vmatpush1.bf16.msra.mxu0 0
        %2119 = vmatprep.subr.bf16.mxu0 0
        %2120 = vmatpush1.bf16.msra.mxu0 0
        %2121 = vmatprep.subr.bf16.mxu0 0
        %2122 = vmatpush1.bf16.msra.mxu0 %v2105
        %2123 = vmatprep.subr.bf16.mxu0 0
        %2124 = vmatpush2.bf16.msra.mxu0 0
        %2125 = vmatprep.subr.bf16.mxu0 0
        %2126 = vmatpush2.bf16.msra.mxu0 0
        %2127 = vmatprep.subr.bf16.mxu0 0
        %2128 = vmatpush2.bf16.msra.mxu0 0
        %2129 = vmatprep.subr.bf16.mxu0 0
        %2130 = vmatpush2.bf16.msra.mxu0 0
        %2131 = vmatprep.subr.bf16.mxu0 0
        %2132 = vmatpush2.bf16.msra.mxu0 0
        %2133 = vmatprep.subr.bf16.mxu0 0
        %2134 = vmatpush2.bf16.msra.mxu0 0
        %2135 = vmatprep.subr.bf16.mxu0 0
        %2136 = vmatpush2.bf16.msra.mxu0 0
        %2137 = vmatprep.subr.bf16.mxu0 0
        %2138 = vmatpush2.bf16.msra.mxu0 0
        %2139 = vmatprep.mubr.bf16.mxu0 0
        %2140 = vmatmul.mubr.bf16.gmra.mxu0 %v2101
        %v2141 = vpop.f32.mrf.mxu0
        %v2142 = vadd.f32 0.0, %v2141
        %v2143 = vpop.f32.mrf.mxu0
        %v2144 = vpop.f32.mrf.mxu0
        %v2145 = vpop.f32.mrf.mxu0
        %2146 = vdwg.mxu0
        %v2148 = vsel %vm2075, %v2099, 0
        %v2151 = vsel %vm2103, %v1943, 0
        %2153 = vmatprep.subr.bf16.mxu0 0
        %2154 = vmatpush1.bf16.msra.mxu0 0
        %2155 = vmatprep.subr.bf16.mxu0 0
        %2156 = vmatpush1.bf16.msra.mxu0 0
        %2157 = vmatprep.subr.bf16.mxu0 0
        %2158 = vmatpush1.bf16.msra.mxu0 0
        %2159 = vmatprep.subr.bf16.mxu0 0
        %2160 = vmatpush1.bf16.msra.mxu0 0
        %2161 = vmatprep.subr.bf16.mxu0 0
        %2162 = vmatpush1.bf16.msra.mxu0 0
        %2163 = vmatprep.subr.bf16.mxu0 0
        %2164 = vmatpush1.bf16.msra.mxu0 0
        %2165 = vmatprep.subr.bf16.mxu0 0
        %2166 = vmatpush1.bf16.msra.mxu0 0
        %2167 = vmatprep.subr.bf16.mxu0 0
        %2168 = vmatpush1.bf16.msra.mxu0 %v2151
        %2169 = vmatprep.subr.bf16.mxu0 0
        %2170 = vmatpush2.bf16.msra.mxu0 0
        %2171 = vmatprep.subr.bf16.mxu0 0
        %2172 = vmatpush2.bf16.msra.mxu0 0
        %2173 = vmatprep.subr.bf16.mxu0 0
        %2174 = vmatpush2.bf16.msra.mxu0 0
        %2175 = vmatprep.subr.bf16.mxu0 0
        %2176 = vmatpush2.bf16.msra.mxu0 0
        %2177 = vmatprep.subr.bf16.mxu0 0
        %2178 = vmatpush2.bf16.msra.mxu0 0
        %2179 = vmatprep.subr.bf16.mxu0 0
        %2180 = vmatpush2.bf16.msra.mxu0 0
        %2181 = vmatprep.subr.bf16.mxu0 0
        %2182 = vmatpush2.bf16.msra.mxu0 0
        %2183 = vmatprep.subr.bf16.mxu0 0
        %2184 = vmatpush2.bf16.msra.mxu0 0
        %2185 = vmatprep.mubr.bf16.mxu0 0
        %2186 = vmatmul.mubr.bf16.gmra.mxu0 %v2148
        %v2187 = vpop.f32.mrf.mxu0
        %v2188 = vadd.f32 0.0, %v2187
        %v2189 = vpop.f32.mrf.mxu0
        %v2190 = vpop.f32.mrf.mxu0
        %v2191 = vpop.f32.mrf.mxu0
        %2192 = vdwg.mxu0
        %v2193 = vpack.c.bf16 %v2188, %v2142
        %2194 = vmatprep.subr.bf16.mxu0 0
        %2195 = vmatpush1.bf16.xpose.msra.mxu0 0
        %2196 = vmatprep.subr.bf16.mxu0 0
        %2197 = vmatpush1.bf16.xpose.msra.mxu0 0
        %2198 = vmatprep.subr.bf16.mxu0 0
        %2199 = vmatpush1.bf16.xpose.msra.mxu0 0
        %2200 = vmatprep.subr.bf16.mxu0 0
        %2201 = vmatpush1.bf16.xpose.msra.mxu0 0
        %2202 = vmatprep.subr.bf16.mxu0 0
        %2203 = vmatpush1.bf16.xpose.msra.mxu0 0
        %2204 = vmatprep.subr.bf16.mxu0 0
        %2205 = vmatpush1.bf16.xpose.msra.mxu0 0
        %2206 = vmatprep.subr.bf16.mxu0 0
        %2207 = vmatpush1.bf16.xpose.msra.mxu0 0
        %2208 = vmatprep.subr.bf16.mxu0 0
        %2209 = vmatpush1.bf16.xpose.msra.mxu0 %v1938
        %2210 = vmatprep.subr.bf16.mxu0 0
        %2211 = vmatpush2.bf16.xpose.msra.mxu0 0
        %2212 = vmatprep.subr.bf16.mxu0 0
        %2213 = vmatpush2.bf16.xpose.msra.mxu0 0
        %2214 = vmatprep.subr.bf16.mxu0 0
        %2215 = vmatpush2.bf16.xpose.msra.mxu0 0
        %2216 = vmatprep.subr.bf16.mxu0 0
        %2217 = vmatpush2.bf16.xpose.msra.mxu0 0
        %2218 = vmatprep.subr.bf16.mxu0 0
        %2219 = vmatpush2.bf16.xpose.msra.mxu0 0
        %2220 = vmatprep.subr.bf16.mxu0 0
        %2221 = vmatpush2.bf16.xpose.msra.mxu0 0
        %2222 = vmatprep.subr.bf16.mxu0 0
        %2223 = vmatpush2.bf16.xpose.msra.mxu0 0
        %2224 = vmatprep.subr.bf16.mxu0 0
        %2225 = vmatpush2.bf16.xpose.msra.mxu0 0
        %2226 = vmatprep.mubr.bf16.mxu0 0
        %2227 = vmatmul.mubr.bf16.gmra.mxu0 %v1934
        %v2228 = vpop.f32.mrf.mxu0
        %v2229 = vadd.f32 0.0, %v2228
        %v2230 = vpop.f32.mrf.mxu0
        %v2231 = vpop.f32.mrf.mxu0
        %v2232 = vpop.f32.mrf.mxu0
        %2233 = vdwg.mxu0
        %2234 = vmatprep.subr.bf16.mxu0 0
        %2235 = vmatpush1.bf16.xpose.msra.mxu0 0
        %2236 = vmatprep.subr.bf16.mxu0 0
        %2237 = vmatpush1.bf16.xpose.msra.mxu0 0
        %2238 = vmatprep.subr.bf16.mxu0 0
        %2239 = vmatpush1.bf16.xpose.msra.mxu0 0
        %2240 = vmatprep.subr.bf16.mxu0 0
        %2241 = vmatpush1.bf16.xpose.msra.mxu0 0
        %2242 = vmatprep.subr.bf16.mxu0 0
        %2243 = vmatpush1.bf16.xpose.msra.mxu0 0
        %2244 = vmatprep.subr.bf16.mxu0 0
        %2245 = vmatpush1.bf16.xpose.msra.mxu0 0
        %2246 = vmatprep.subr.bf16.mxu0 0
        %2247 = vmatpush1.bf16.xpose.msra.mxu0 0
        %2248 = vmatprep.subr.bf16.mxu0 0
        %2249 = vmatpush1.bf16.xpose.msra.mxu0 %v1940
        %2250 = vmatprep.subr.bf16.mxu0 0
        %2251 = vmatpush2.bf16.xpose.msra.mxu0 0
        %2252 = vmatprep.subr.bf16.mxu0 0
        %2253 = vmatpush2.bf16.xpose.msra.mxu0 0
        %2254 = vmatprep.subr.bf16.mxu0 0
        %2255 = vmatpush2.bf16.xpose.msra.mxu0 0
        %2256 = vmatprep.subr.bf16.mxu0 0
        %2257 = vmatpush2.bf16.xpose.msra.mxu0 0
        %2258 = vmatprep.subr.bf16.mxu0 0
        %2259 = vmatpush2.bf16.xpose.msra.mxu0 0
        %2260 = vmatprep.subr.bf16.mxu0 0
        %2261 = vmatpush2.bf16.xpose.msra.mxu0 0
        %2262 = vmatprep.subr.bf16.mxu0 0
        %2263 = vmatpush2.bf16.xpose.msra.mxu0 0
        %2264 = vmatprep.subr.bf16.mxu0 0
        %2265 = vmatpush2.bf16.xpose.msra.mxu0 0
        %2266 = vmatprep.mubr.bf16.mxu0 0
        %2267 = vmatmul.mubr.bf16.gmra.mxu0 %v1936
        %v2268 = vpop.f32.mrf.mxu0
        %v2269 = vadd.f32 0.0, %v2268
        %v2270 = vpop.f32.mrf.mxu0
        %v2271 = vpop.f32.mrf.mxu0
        %v2272 = vpop.f32.mrf.mxu0
        %2273 = vdwg.mxu0
        %v2274 = vmul.f32 %v2229, 0.088388346
        %v2275 = vmul.f32 %v2269, 0.088388346
        %v2276 = vadd.f32 %v2274, %v1952
        %v2277 = vadd.f32 %v2275, %v1956
        %v2278 = vadd.f32 %v2073, %v2276
        %v2279 = vadd.f32 %v2074, %v2277
        %v2280 = vsel %vm2075, %v2276, -inf
        %2281 = vmax.xlane.f32.xlu0 %v2280
        %v2282 = vpop.xlane.xlu0 %2281
        %v2283 = vsel %vm2075, %v2277, -inf
        %2284 = vmax.xlane.f32.xlu0 %v2283
        %v2285 = vpop.xlane.xlu0 %2284
        %v2286 = vsub.f32 %v2276, %v2282
        %v2287 = vsub.f32 %v2277, %v2285
        %v2288 = vmul.f32 %v2286, 1.442695
        %v2289 = vpow.pop %v2288
        %v2290 = vmul.f32 %v2287, 1.442695
        %v2291 = vpow.pop %v2290
        %v2292 = vsel %vm2075, %v2289, 0.0
        %2293 = vadd.xlane.f32.xlu0 %v2292
        %v2294 = vpop.xlane.xlu0 %2293
        %v2295 = vsel %vm2075, %v2291, 0.0
        %2296 = vadd.xlane.f32.xlu0 %v2295
        %v2297 = vpop.xlane.xlu0 %2296
        %v2298 = vrcp.pop %v2294
        %v2299 = vrcp.pop %v2297
        %v2300 = vmul.f32 %v2289, %v2298
        %v2301 = vmul.f32 %v2291, %v2299
        %v2302 = vpack.c.bf16 %v2300, %v2300
        %v2303 = vpack.c.bf16 %v2301, %v2301
        %v2305 = vsel %vm2075, %v2302, 0
        %v2308 = vsel %vm2103, %v1942, 0
        %2310 = vmatprep.subr.bf16.mxu0 0
        %2311 = vmatpush1.bf16.msra.mxu0 0
        %2312 = vmatprep.subr.bf16.mxu0 0
        %2313 = vmatpush1.bf16.msra.mxu0 0
        %2314 = vmatprep.subr.bf16.mxu0 0
        %2315 = vmatpush1.bf16.msra.mxu0 0
        %2316 = vmatprep.subr.bf16.mxu0 0
        %2317 = vmatpush1.bf16.msra.mxu0 0
        %2318 = vmatprep.subr.bf16.mxu0 0
        %2319 = vmatpush1.bf16.msra.mxu0 0
        %2320 = vmatprep.subr.bf16.mxu0 0
        %2321 = vmatpush1.bf16.msra.mxu0 0
        %2322 = vmatprep.subr.bf16.mxu0 0
        %2323 = vmatpush1.bf16.msra.mxu0 0
        %2324 = vmatprep.subr.bf16.mxu0 0
        %2325 = vmatpush1.bf16.msra.mxu0 %v2308
        %2326 = vmatprep.subr.bf16.mxu0 0
        %2327 = vmatpush2.bf16.msra.mxu0 0
        %2328 = vmatprep.subr.bf16.mxu0 0
        %2329 = vmatpush2.bf16.msra.mxu0 0
        %2330 = vmatprep.subr.bf16.mxu0 0
        %2331 = vmatpush2.bf16.msra.mxu0 0
        %2332 = vmatprep.subr.bf16.mxu0 0
        %2333 = vmatpush2.bf16.msra.mxu0 0
        %2334 = vmatprep.subr.bf16.mxu0 0
        %2335 = vmatpush2.bf16.msra.mxu0 0
        %2336 = vmatprep.subr.bf16.mxu0 0
        %2337 = vmatpush2.bf16.msra.mxu0 0
        %2338 = vmatprep.subr.bf16.mxu0 0
        %2339 = vmatpush2.bf16.msra.mxu0 0
        %2340 = vmatprep.subr.bf16.mxu0 0
        %2341 = vmatpush2.bf16.msra.mxu0 0
        %2342 = vmatprep.mubr.bf16.mxu0 0
        %2343 = vmatmul.mubr.bf16.gmra.mxu0 %v2305
        %v2344 = vpop.f32.mrf.mxu0
        %v2345 = vadd.f32 0.0, %v2344
        %v2346 = vpop.f32.mrf.mxu0
        %v2347 = vpop.f32.mrf.mxu0
        %v2348 = vpop.f32.mrf.mxu0
        %2349 = vdwg.mxu0
        %v2351 = vsel %vm2075, %v2303, 0
        %v2354 = vsel %vm2103, %v1944, 0
        %2356 = vmatprep.subr.bf16.mxu0 0
        %2357 = vmatpush1.bf16.msra.mxu0 0
        %2358 = vmatprep.subr.bf16.mxu0 0
        %2359 = vmatpush1.bf16.msra.mxu0 0
        %2360 = vmatprep.subr.bf16.mxu0 0
        %2361 = vmatpush1.bf16.msra.mxu0 0
        %2362 = vmatprep.subr.bf16.mxu0 0
        %2363 = vmatpush1.bf16.msra.mxu0 0
        %2364 = vmatprep.subr.bf16.mxu0 0
        %2365 = vmatpush1.bf16.msra.mxu0 0
        %2366 = vmatprep.subr.bf16.mxu0 0
        %2367 = vmatpush1.bf16.msra.mxu0 0
        %2368 = vmatprep.subr.bf16.mxu0 0
        %2369 = vmatpush1.bf16.msra.mxu0 0
        %2370 = vmatprep.subr.bf16.mxu0 0
        %2371 = vmatpush1.bf16.msra.mxu0 %v2354
        %2372 = vmatprep.subr.bf16.mxu0 0
        %2373 = vmatpush2.bf16.msra.mxu0 0
        %2374 = vmatprep.subr.bf16.mxu0 0
        %2375 = vmatpush2.bf16.msra.mxu0 0
        %2376 = vmatprep.subr.bf16.mxu0 0
        %2377 = vmatpush2.bf16.msra.mxu0 0
        %2378 = vmatprep.subr.bf16.mxu0 0
        %2379 = vmatpush2.bf16.msra.mxu0 0
        %2380 = vmatprep.subr.bf16.mxu0 0
        %2381 = vmatpush2.bf16.msra.mxu0 0
        %2382 = vmatprep.subr.bf16.mxu0 0
        %2383 = vmatpush2.bf16.msra.mxu0 0
        %2384 = vmatprep.subr.bf16.mxu0 0
        %2385 = vmatpush2.bf16.msra.mxu0 0
        %2386 = vmatprep.subr.bf16.mxu0 0
        %2387 = vmatpush2.bf16.msra.mxu0 0
        %2388 = vmatprep.mubr.bf16.mxu0 0
        %2389 = vmatmul.mubr.bf16.gmra.mxu0 %v2351
        %v2390 = vpop.f32.mrf.mxu0
        %v2391 = vadd.f32 0.0, %v2390
        %v2392 = vpop.f32.mrf.mxu0
        %v2393 = vpop.f32.mrf.mxu0
        %v2394 = vpop.f32.mrf.mxu0
        %2395 = vdwg.mxu0
        %v2396 = vpack.c.bf16 %v2391, %v2345
        %v2413 = vunpack.c.l.b16 %v1975
        %v2414 = vunpack.c.h.b16 %v1975
        %v2415 = vunpack.c.l.b16 %v1976
        %v2416 = vunpack.c.h.b16 %v1976
        %v2417 = vunpack.c.l.b16 %v1977
        %v2418 = vunpack.c.h.b16 %v1977
        %v2419 = vunpack.c.l.b16 %v1978
        %v2420 = vunpack.c.h.b16 %v1978
        %v2421 = vunpack.c.l.b16 %v1979
        %v2422 = vunpack.c.h.b16 %v1979
        %v2423 = vunpack.c.l.b16 %v1980
        %v2424 = vunpack.c.h.b16 %v1980
        %v2425 = vunpack.c.l.b16 %v1981
        %v2426 = vunpack.c.h.b16 %v1981
        %v2427 = vunpack.c.l.b16 %v1982
        %v2428 = vunpack.c.h.b16 %v1982
        %v2429 = vunpack.c.l.b16 %v1983
        %v2430 = vunpack.c.h.b16 %v1983
        %v2431 = vunpack.c.l.b16 %v1984
        %v2432 = vunpack.c.h.b16 %v1984
        %v2433 = vunpack.c.l.b16 %v1985
        %v2434 = vunpack.c.h.b16 %v1985
        %v2435 = vunpack.c.l.b16 %v1986
        %v2436 = vunpack.c.h.b16 %v1986
        %v2437 = vunpack.c.l.b16 %v1987
        %v2438 = vunpack.c.h.b16 %v1987
        %v2439 = vunpack.c.l.b16 %v1988
        %v2440 = vunpack.c.h.b16 %v1988
        %v2441 = vunpack.c.l.b16 %v1989
        %v2442 = vunpack.c.h.b16 %v1989
        %v2443 = vunpack.c.l.b16 %v1990
        %v2444 = vunpack.c.h.b16 %v1990
        %v2445 = vpack.c.b16 %v2415, %v2413
        %v2446 = vpack.c.b16 %v2416, %v2414
        %v2447 = vpack.c.b16 %v2419, %v2417
        %v2448 = vpack.c.b16 %v2420, %v2418
        %v2449 = vpack.c.b16 %v2423, %v2421
        %v2450 = vpack.c.b16 %v2424, %v2422
        %v2451 = vpack.c.b16 %v2427, %v2425
        %v2452 = vpack.c.b16 %v2428, %v2426
        %v2453 = vpack.c.b16 %v2431, %v2429
        %v2454 = vpack.c.b16 %v2432, %v2430
        %v2455 = vpack.c.b16 %v2435, %v2433
        %v2456 = vpack.c.b16 %v2436, %v2434
        %v2457 = vpack.c.b16 %v2439, %v2437
        %v2458 = vpack.c.b16 %v2440, %v2438
        %v2459 = vpack.c.b16 %v2443, %v2441
        %v2460 = vpack.c.b16 %v2444, %v2442
        %2477 = vmatprep.subr.bf16.mxu0 %v2460
        %2478 = vmatpush1.bf16.msra.mxu0 %v2459
        %2479 = vmatprep.subr.bf16.mxu0 %v2458
        %2480 = vmatpush1.bf16.msra.mxu0 %v2457
        %2481 = vmatprep.subr.bf16.mxu0 %v2456
        %2482 = vmatpush1.bf16.msra.mxu0 %v2455
        %2483 = vmatprep.subr.bf16.mxu0 %v2454
        %2484 = vmatpush1.bf16.msra.mxu0 %v2453
        %2485 = vmatprep.subr.bf16.mxu0 %v2452
        %2486 = vmatpush1.bf16.msra.mxu0 %v2451
        %2487 = vmatprep.subr.bf16.mxu0 %v2450
        %2488 = vmatpush1.bf16.msra.mxu0 %v2449
        %2489 = vmatprep.subr.bf16.mxu0 %v2448
        %2490 = vmatpush1.bf16.msra.mxu0 %v2447
        %2491 = vmatprep.subr.bf16.mxu0 %v2446
        %2492 = vmatpush1.bf16.msra.mxu0 %v2445
        %2493 = vmatprep.subr.bf16.mxu0 0
        %2494 = vmatpush2.bf16.msra.mxu0 0
        %2495 = vmatprep.subr.bf16.mxu0 0
        %2496 = vmatpush2.bf16.msra.mxu0 0
        %2497 = vmatprep.subr.bf16.mxu0 0
        %2498 = vmatpush2.bf16.msra.mxu0 0
        %2499 = vmatprep.subr.bf16.mxu0 0
        %2500 = vmatpush2.bf16.msra.mxu0 0
        %2501 = vmatprep.subr.bf16.mxu0 0
        %2502 = vmatpush2.bf16.msra.mxu0 0
        %2503 = vmatprep.subr.bf16.mxu0 0
        %2504 = vmatpush2.bf16.msra.mxu0 0
        %2505 = vmatprep.subr.bf16.mxu0 0
        %2506 = vmatpush2.bf16.msra.mxu0 0
        %2507 = vmatprep.subr.bf16.mxu0 0
        %2508 = vmatpush2.bf16.msra.mxu0 0
        %2509 = vmatprep.mubr.bf16.mxu0 0
        %2510 = vmatmul.mubr.bf16.gmra.mxu0 %v2396
        %v2511 = vpop.f32.mrf.mxu0
        %v2512 = vadd.f32 0.0, %v2511
        %v2513 = vpop.f32.mrf.mxu0
        %v2514 = vadd.f32 0.0, %v2513
        %v2515 = vpop.f32.mrf.mxu0
        %v2516 = vadd.f32 0.0, %v2515
        %v2517 = vpop.f32.mrf.mxu0
        %v2518 = vadd.f32 0.0, %v2517
        %2519 = vdwg.mxu0
        %v2536 = vunpack.c.l.b16 %v1959
        %v2537 = vunpack.c.h.b16 %v1959
        %v2538 = vunpack.c.l.b16 %v1960
        %v2539 = vunpack.c.h.b16 %v1960
        %v2540 = vunpack.c.l.b16 %v1961
        %v2541 = vunpack.c.h.b16 %v1961
        %v2542 = vunpack.c.l.b16 %v1962
        %v2543 = vunpack.c.h.b16 %v1962
        %v2544 = vunpack.c.l.b16 %v1963
        %v2545 = vunpack.c.h.b16 %v1963
        %v2546 = vunpack.c.l.b16 %v1964
        %v2547 = vunpack.c.h.b16 %v1964
        %v2548 = vunpack.c.l.b16 %v1965
        %v2549 = vunpack.c.h.b16 %v1965
        %v2550 = vunpack.c.l.b16 %v1966
        %v2551 = vunpack.c.h.b16 %v1966
        %v2552 = vunpack.c.l.b16 %v1967
        %v2553 = vunpack.c.h.b16 %v1967
        %v2554 = vunpack.c.l.b16 %v1968
        %v2555 = vunpack.c.h.b16 %v1968
        %v2556 = vunpack.c.l.b16 %v1969
        %v2557 = vunpack.c.h.b16 %v1969
        %v2558 = vunpack.c.l.b16 %v1970
        %v2559 = vunpack.c.h.b16 %v1970
        %v2560 = vunpack.c.l.b16 %v1971
        %v2561 = vunpack.c.h.b16 %v1971
        %v2562 = vunpack.c.l.b16 %v1972
        %v2563 = vunpack.c.h.b16 %v1972
        %v2564 = vunpack.c.l.b16 %v1973
        %v2565 = vunpack.c.h.b16 %v1973
        %v2566 = vunpack.c.l.b16 %v1974
        %v2567 = vunpack.c.h.b16 %v1974
        %v2568 = vpack.c.b16 %v2538, %v2536
        %v2569 = vpack.c.b16 %v2539, %v2537
        %v2570 = vpack.c.b16 %v2542, %v2540
        %v2571 = vpack.c.b16 %v2543, %v2541
        %v2572 = vpack.c.b16 %v2546, %v2544
        %v2573 = vpack.c.b16 %v2547, %v2545
        %v2574 = vpack.c.b16 %v2550, %v2548
        %v2575 = vpack.c.b16 %v2551, %v2549
        %v2576 = vpack.c.b16 %v2554, %v2552
        %v2577 = vpack.c.b16 %v2555, %v2553
        %v2578 = vpack.c.b16 %v2558, %v2556
        %v2579 = vpack.c.b16 %v2559, %v2557
        %v2580 = vpack.c.b16 %v2562, %v2560
        %v2581 = vpack.c.b16 %v2563, %v2561
        %v2582 = vpack.c.b16 %v2566, %v2564
        %v2583 = vpack.c.b16 %v2567, %v2565
        %2600 = vmatprep.subr.bf16.mxu0 %v2583
        %2601 = vmatpush1.bf16.msra.mxu0 %v2582
        %2602 = vmatprep.subr.bf16.mxu0 %v2581
        %2603 = vmatpush1.bf16.msra.mxu0 %v2580
        %2604 = vmatprep.subr.bf16.mxu0 %v2579
        %2605 = vmatpush1.bf16.msra.mxu0 %v2578
        %2606 = vmatprep.subr.bf16.mxu0 %v2577
        %2607 = vmatpush1.bf16.msra.mxu0 %v2576
        %2608 = vmatprep.subr.bf16.mxu0 %v2575
        %2609 = vmatpush1.bf16.msra.mxu0 %v2574
        %2610 = vmatprep.subr.bf16.mxu0 %v2573
        %2611 = vmatpush1.bf16.msra.mxu0 %v2572
        %2612 = vmatprep.subr.bf16.mxu0 %v2571
        %2613 = vmatpush1.bf16.msra.mxu0 %v2570
        %2614 = vmatprep.subr.bf16.mxu0 %v2569
        %2615 = vmatpush1.bf16.msra.mxu0 %v2568
        %2616 = vmatprep.subr.bf16.mxu0 0
        %2617 = vmatpush2.bf16.msra.mxu0 0
        %2618 = vmatprep.subr.bf16.mxu0 0
        %2619 = vmatpush2.bf16.msra.mxu0 0
        %2620 = vmatprep.subr.bf16.mxu0 0
        %2621 = vmatpush2.bf16.msra.mxu0 0
        %2622 = vmatprep.subr.bf16.mxu0 0
        %2623 = vmatpush2.bf16.msra.mxu0 0
        %2624 = vmatprep.subr.bf16.mxu0 0
        %2625 = vmatpush2.bf16.msra.mxu0 0
        %2626 = vmatprep.subr.bf16.mxu0 0
        %2627 = vmatpush2.bf16.msra.mxu0 0
        %2628 = vmatprep.subr.bf16.mxu0 0
        %2629 = vmatpush2.bf16.msra.mxu0 0
        %2630 = vmatprep.subr.bf16.mxu0 0
        %2631 = vmatpush2.bf16.msra.mxu0 0
        %2632 = vmatprep.mubr.bf16.mxu0 0
        %2633 = vmatmul.mubr.bf16.gmra.mxu0 %v2193
        %v2634 = vpop.f32.mrf.mxu0
        %v2635 = vadd.f32 %v2512, %v2634
        %v2636 = vpop.f32.mrf.mxu0
        %v2637 = vadd.f32 %v2514, %v2636
        %v2638 = vpop.f32.mrf.mxu0
        %v2639 = vadd.f32 %v2516, %v2638
        %v2640 = vpop.f32.mrf.mxu0
        %v2641 = vadd.f32 %v2518, %v2640
        %2642 = vdwg.mxu0
        %v2643 = vmul.f32 %v2278, 0.5
        %v2644 = vmul.f32 %v2279, 0.5
        %2645 = vst.msk [vmem:[%s1166] sm:$0xff] %vm2075, %v2643
        %2646 = vst.msk [vmem:[%s1166 + $0x8] sm:$0xff] %vm2075, %v2644
        %v2647 = vld [vmem:[%s960] sm:$0x3]
        %v2649 = vlaneseq
        %v2650 = vshrl.u32 %v2649, 7
        %v2651 = vsub.s32 0, %v2650
        %v2652 = vrot.slane %v2647, %v2651
        %v2653 = vlaneseq
        %v2654 = vshrl.u32 %v2653, 7
        %v2655 = vsub.s32 1, %v2654
        %v2656 = vrot.slane %v2647, %v2655
        %v2659 = vadd.f32 %v2635, %v2652
        %v2660 = vadd.f32 %v2637, %v2656
        %v2661 = vadd.f32 %v2639, %v2652
        %v2662 = vadd.f32 %v2641, %v2656
        %v2663 = vadd.f32 %v2659, %v1180
        %v2664 = vadd.f32 %v2660, %v1181
        %v2665 = vadd.f32 %v2661, %v1182
        %v2666 = vadd.f32 %v2662, %v1183
        %v2667 = vld [vmem:[%s969] sm:$0x3]
        %v2668 = vld [vmem:[%s978] sm:$0x3]
        %v2669 = vadd.f32 %v2663, %v2664
        %2670 = vadd.xlane.f32.xlu0 %v2669
        %v2671 = vpop.xlane.xlu0 %2670
        %v2672 = vadd.f32 %v2665, %v2666
        %2673 = vadd.xlane.f32.xlu0 %v2672
        %v2674 = vpop.xlane.xlu0 %2673
        %v2675 = vrcp.pop 256.0
        %v2676 = vmul.f32 %v2671, %v2675
        %v2677 = vmul.f32 %v2674, %v2675
        %v2678 = vsub.f32 %v2663, %v2676
        %v2679 = vsub.f32 %v2664, %v2676
        %v2680 = vsub.f32 %v2665, %v2677
        %v2681 = vsub.f32 %v2666, %v2677
        %v2682 = vmul.f32 %v2678, %v2678
        %v2683 = vmul.f32 %v2679, %v2679
        %v2684 = vmul.f32 %v2680, %v2680
        %v2685 = vmul.f32 %v2681, %v2681
        %v2686 = vadd.f32 %v2682, %v2683
        %2687 = vadd.xlane.f32.xlu0 %v2686
        %v2688 = vpop.xlane.xlu0 %2687
        %v2689 = vadd.f32 %v2684, %v2685
        %2690 = vadd.xlane.f32.xlu0 %v2689
        %v2691 = vpop.xlane.xlu0 %2690
        %v2692 = vmul.f32 %v2688, %v2675
        %v2693 = vmul.f32 %v2691, %v2675
        %v2694 = vadd.f32 %v2692, 1e-12
        %v2695 = vadd.f32 %v2693, 1e-12
        %v2696 = vrsqrt.pop %v2694
        %v2697 = vrsqrt.pop %v2695
        %v2698 = vmul.f32 %v2678, %v2696
        %v2699 = vmul.f32 %v2679, %v2696
        %v2700 = vmul.f32 %v2680, %v2697
        %v2701 = vmul.f32 %v2681, %v2697
        %v2703 = vlaneseq
        %v2704 = vshrl.u32 %v2703, 7
        %v2705 = vsub.s32 0, %v2704
        %v2706 = vrot.slane %v2667, %v2705
        %v2707 = vlaneseq
        %v2708 = vshrl.u32 %v2707, 7
        %v2709 = vsub.s32 1, %v2708
        %v2710 = vrot.slane %v2667, %v2709
        %v2713 = vmul.f32 %v2698, %v2706
        %v2714 = vmul.f32 %v2699, %v2710
        %v2715 = vmul.f32 %v2700, %v2706
        %v2716 = vmul.f32 %v2701, %v2710
        %v2718 = vlaneseq
        %v2719 = vshrl.u32 %v2718, 7
        %v2720 = vsub.s32 0, %v2719
        %v2721 = vrot.slane %v2668, %v2720
        %v2722 = vlaneseq
        %v2723 = vshrl.u32 %v2722, 7
        %v2724 = vsub.s32 1, %v2723
        %v2725 = vrot.slane %v2668, %v2724
        %v2728 = vadd.f32 %v2713, %v2721
        %v2729 = vadd.f32 %v2714, %v2725
        %v2730 = vadd.f32 %v2715, %v2721
        %v2731 = vadd.f32 %v2716, %v2725
        %v2732 = vpack.c.bf16 %v2730, %v2728
        %v2733 = vpack.c.bf16 %v2731, %v2729
        %v2734 = vld [vmem:[%s987] sm:$0xff]
        %v2735 = vld [vmem:[%s987 + $0x8] sm:$0xff]
        %v2736 = vld [vmem:[%s987 + $0x10] sm:$0xff]
        %v2737 = vld [vmem:[%s987 + $0x18] sm:$0xff]
        %v2738 = vld [vmem:[%s987 + $0x20] sm:$0xff]
        %v2739 = vld [vmem:[%s987 + $0x28] sm:$0xff]
        %v2740 = vld [vmem:[%s987 + $0x30] sm:$0xff]
        %v2741 = vld [vmem:[%s987 + $0x38] sm:$0xff]
        %v2742 = vld [vmem:[%s987 + $0x40] sm:$0xff]
        %v2743 = vld [vmem:[%s987 + $0x48] sm:$0xff]
        %v2744 = vld [vmem:[%s987 + $0x50] sm:$0xff]
        %v2745 = vld [vmem:[%s987 + $0x58] sm:$0xff]
        %v2746 = vld [vmem:[%s987 + $0x60] sm:$0xff]
        %v2747 = vld [vmem:[%s987 + $0x68] sm:$0xff]
        %v2748 = vld [vmem:[%s987 + $0x70] sm:$0xff]
        %v2749 = vld [vmem:[%s987 + $0x78] sm:$0xff]
        %v2750 = vld [vmem:[%s987 + $0x80] sm:$0xff]
        %v2751 = vld [vmem:[%s987 + $0x88] sm:$0xff]
        %v2752 = vld [vmem:[%s987 + $0x90] sm:$0xff]
        %v2753 = vld [vmem:[%s987 + $0x98] sm:$0xff]
        %v2754 = vld [vmem:[%s987 + $0xa0] sm:$0xff]
        %v2755 = vld [vmem:[%s987 + $0xa8] sm:$0xff]
        %v2756 = vld [vmem:[%s987 + $0xb0] sm:$0xff]
        %v2757 = vld [vmem:[%s987 + $0xb8] sm:$0xff]
        %v2758 = vld [vmem:[%s987 + $0xc0] sm:$0xff]
        %v2759 = vld [vmem:[%s987 + $0xc8] sm:$0xff]
        %v2760 = vld [vmem:[%s987 + $0xd0] sm:$0xff]
        %v2761 = vld [vmem:[%s987 + $0xd8] sm:$0xff]
        %v2762 = vld [vmem:[%s987 + $0xe0] sm:$0xff]
        %v2763 = vld [vmem:[%s987 + $0xe8] sm:$0xff]
        %v2764 = vld [vmem:[%s987 + $0xf0] sm:$0xff]
        %v2765 = vld [vmem:[%s987 + $0xf8] sm:$0xff]
        %v2766 = vld [vmem:[%s987 + $0x100] sm:$0xff]
        %v2767 = vld [vmem:[%s987 + $0x108] sm:$0xff]
        %v2768 = vld [vmem:[%s987 + $0x110] sm:$0xff]
        %v2769 = vld [vmem:[%s987 + $0x118] sm:$0xff]
        %v2770 = vld [vmem:[%s987 + $0x120] sm:$0xff]
        %v2771 = vld [vmem:[%s987 + $0x128] sm:$0xff]
        %v2772 = vld [vmem:[%s987 + $0x130] sm:$0xff]
        %v2773 = vld [vmem:[%s987 + $0x138] sm:$0xff]
        %v2774 = vld [vmem:[%s987 + $0x140] sm:$0xff]
        %v2775 = vld [vmem:[%s987 + $0x148] sm:$0xff]
        %v2776 = vld [vmem:[%s987 + $0x150] sm:$0xff]
        %v2777 = vld [vmem:[%s987 + $0x158] sm:$0xff]
        %v2778 = vld [vmem:[%s987 + $0x160] sm:$0xff]
        %v2779 = vld [vmem:[%s987 + $0x168] sm:$0xff]
        %v2780 = vld [vmem:[%s987 + $0x170] sm:$0xff]
        %v2781 = vld [vmem:[%s987 + $0x178] sm:$0xff]
        %v2782 = vld [vmem:[%s987 + $0x180] sm:$0xff]
        %v2783 = vld [vmem:[%s987 + $0x188] sm:$0xff]
        %v2784 = vld [vmem:[%s987 + $0x190] sm:$0xff]
        %v2785 = vld [vmem:[%s987 + $0x198] sm:$0xff]
        %v2786 = vld [vmem:[%s987 + $0x1a0] sm:$0xff]
        %v2787 = vld [vmem:[%s987 + $0x1a8] sm:$0xff]
        %v2788 = vld [vmem:[%s987 + $0x1b0] sm:$0xff]
        %v2789 = vld [vmem:[%s987 + $0x1b8] sm:$0xff]
        %v2790 = vld [vmem:[%s987 + $0x1c0] sm:$0xff]
        %v2791 = vld [vmem:[%s987 + $0x1c8] sm:$0xff]
        %v2792 = vld [vmem:[%s987 + $0x1d0] sm:$0xff]
        %v2793 = vld [vmem:[%s987 + $0x1d8] sm:$0xff]
        %v2794 = vld [vmem:[%s987 + $0x1e0] sm:$0xff]
        %v2795 = vld [vmem:[%s987 + $0x1e8] sm:$0xff]
        %v2796 = vld [vmem:[%s987 + $0x1f0] sm:$0xff]
        %v2797 = vld [vmem:[%s987 + $0x1f8] sm:$0xff]
        %v2798 = vld [vmem:[%s987 + $0x200] sm:$0xff]
        %v2799 = vld [vmem:[%s987 + $0x208] sm:$0xff]
        %v2800 = vld [vmem:[%s987 + $0x210] sm:$0xff]
        %v2801 = vld [vmem:[%s987 + $0x218] sm:$0xff]
        %v2802 = vld [vmem:[%s987 + $0x220] sm:$0xff]
        %v2803 = vld [vmem:[%s987 + $0x228] sm:$0xff]
        %v2804 = vld [vmem:[%s987 + $0x230] sm:$0xff]
        %v2805 = vld [vmem:[%s987 + $0x238] sm:$0xff]
        %v2806 = vld [vmem:[%s987 + $0x240] sm:$0xff]
        %v2807 = vld [vmem:[%s987 + $0x248] sm:$0xff]
        %v2808 = vld [vmem:[%s987 + $0x250] sm:$0xff]
        %v2809 = vld [vmem:[%s987 + $0x258] sm:$0xff]
        %v2810 = vld [vmem:[%s987 + $0x260] sm:$0xff]
        %v2811 = vld [vmem:[%s987 + $0x268] sm:$0xff]
        %v2812 = vld [vmem:[%s987 + $0x270] sm:$0xff]
        %v2813 = vld [vmem:[%s987 + $0x278] sm:$0xff]
        %v2814 = vld [vmem:[%s987 + $0x280] sm:$0xff]
        %v2815 = vld [vmem:[%s987 + $0x288] sm:$0xff]
        %v2816 = vld [vmem:[%s987 + $0x290] sm:$0xff]
        %v2817 = vld [vmem:[%s987 + $0x298] sm:$0xff]
        %v2818 = vld [vmem:[%s987 + $0x2a0] sm:$0xff]
        %v2819 = vld [vmem:[%s987 + $0x2a8] sm:$0xff]
        %v2820 = vld [vmem:[%s987 + $0x2b0] sm:$0xff]
        %v2821 = vld [vmem:[%s987 + $0x2b8] sm:$0xff]
        %v2822 = vld [vmem:[%s987 + $0x2c0] sm:$0xff]
        %v2823 = vld [vmem:[%s987 + $0x2c8] sm:$0xff]
        %v2824 = vld [vmem:[%s987 + $0x2d0] sm:$0xff]
        %v2825 = vld [vmem:[%s987 + $0x2d8] sm:$0xff]
        %v2826 = vld [vmem:[%s987 + $0x2e0] sm:$0xff]
        %v2827 = vld [vmem:[%s987 + $0x2e8] sm:$0xff]
        %v2828 = vld [vmem:[%s987 + $0x2f0] sm:$0xff]
        %v2829 = vld [vmem:[%s987 + $0x2f8] sm:$0xff]
        %v2830 = vld [vmem:[%s987 + $0x300] sm:$0xff]
        %v2831 = vld [vmem:[%s987 + $0x308] sm:$0xff]
        %v2832 = vld [vmem:[%s987 + $0x310] sm:$0xff]
        %v2833 = vld [vmem:[%s987 + $0x318] sm:$0xff]
        %v2834 = vld [vmem:[%s987 + $0x320] sm:$0xff]
        %v2835 = vld [vmem:[%s987 + $0x328] sm:$0xff]
        %v2836 = vld [vmem:[%s987 + $0x330] sm:$0xff]
        %v2837 = vld [vmem:[%s987 + $0x338] sm:$0xff]
        %v2838 = vld [vmem:[%s987 + $0x340] sm:$0xff]
        %v2839 = vld [vmem:[%s987 + $0x348] sm:$0xff]
        %v2840 = vld [vmem:[%s987 + $0x350] sm:$0xff]
        %v2841 = vld [vmem:[%s987 + $0x358] sm:$0xff]
        %v2842 = vld [vmem:[%s987 + $0x360] sm:$0xff]
        %v2843 = vld [vmem:[%s987 + $0x368] sm:$0xff]
        %v2844 = vld [vmem:[%s987 + $0x370] sm:$0xff]
        %v2845 = vld [vmem:[%s987 + $0x378] sm:$0xff]
        %v2846 = vld [vmem:[%s987 + $0x380] sm:$0xff]
        %v2847 = vld [vmem:[%s987 + $0x388] sm:$0xff]
        %v2848 = vld [vmem:[%s987 + $0x390] sm:$0xff]
        %v2849 = vld [vmem:[%s987 + $0x398] sm:$0xff]
        %v2850 = vld [vmem:[%s987 + $0x3a0] sm:$0xff]
        %v2851 = vld [vmem:[%s987 + $0x3a8] sm:$0xff]
        %v2852 = vld [vmem:[%s987 + $0x3b0] sm:$0xff]
        %v2853 = vld [vmem:[%s987 + $0x3b8] sm:$0xff]
        %v2854 = vld [vmem:[%s987 + $0x3c0] sm:$0xff]
        %v2855 = vld [vmem:[%s987 + $0x3c8] sm:$0xff]
        %v2856 = vld [vmem:[%s987 + $0x3d0] sm:$0xff]
        %v2857 = vld [vmem:[%s987 + $0x3d8] sm:$0xff]
        %v2858 = vld [vmem:[%s987 + $0x3e0] sm:$0xff]
        %v2859 = vld [vmem:[%s987 + $0x3e8] sm:$0xff]
        %v2860 = vld [vmem:[%s987 + $0x3f0] sm:$0xff]
        %v2861 = vld [vmem:[%s987 + $0x3f8] sm:$0xff]
        %v2862 = vld [vmem:[%s1148] sm:$0xff]
        %v2864 = vlaneseq
        %v2865 = vshrl.u32 %v2864, 7
        %v2866 = vsub.s32 0, %v2865
        %v2867 = vrot.slane %v2862, %v2866
        %v2868 = vlaneseq
        %v2869 = vshrl.u32 %v2868, 7
        %v2870 = vsub.s32 1, %v2869
        %v2871 = vrot.slane %v2862, %v2870
        %v2872 = vlaneseq
        %v2873 = vshrl.u32 %v2872, 7
        %v2874 = vsub.s32 2, %v2873
        %v2875 = vrot.slane %v2862, %v2874
        %v2876 = vlaneseq
        %v2877 = vshrl.u32 %v2876, 7
        %v2878 = vsub.s32 3, %v2877
        %v2879 = vrot.slane %v2862, %v2878
        %v2880 = vlaneseq
        %v2881 = vshrl.u32 %v2880, 7
        %v2882 = vsub.s32 4, %v2881
        %v2883 = vrot.slane %v2862, %v2882
        %v2884 = vlaneseq
        %v2885 = vshrl.u32 %v2884, 7
        %v2886 = vsub.s32 5, %v2885
        %v2887 = vrot.slane %v2862, %v2886
        %v2888 = vlaneseq
        %v2889 = vshrl.u32 %v2888, 7
        %v2890 = vsub.s32 6, %v2889
        %v2891 = vrot.slane %v2862, %v2890
        %v2892 = vlaneseq
        %v2893 = vshrl.u32 %v2892, 7
        %v2894 = vsub.s32 7, %v2893
        %v2895 = vrot.slane %v2862, %v2894
        %v3032 = vunpack.c.l.b16 %v2734
        %v3033 = vunpack.c.h.b16 %v2734
        %v3034 = vunpack.c.l.b16 %v2735
        %v3035 = vunpack.c.h.b16 %v2735
        %v3036 = vunpack.c.l.b16 %v2736
        %v3037 = vunpack.c.h.b16 %v2736
        %v3038 = vunpack.c.l.b16 %v2737
        %v3039 = vunpack.c.h.b16 %v2737
        %v3040 = vunpack.c.l.b16 %v2738
        %v3041 = vunpack.c.h.b16 %v2738
        %v3042 = vunpack.c.l.b16 %v2739
        %v3043 = vunpack.c.h.b16 %v2739
        %v3044 = vunpack.c.l.b16 %v2740
        %v3045 = vunpack.c.h.b16 %v2740
        %v3046 = vunpack.c.l.b16 %v2741
        %v3047 = vunpack.c.h.b16 %v2741
        %v3048 = vunpack.c.l.b16 %v2742
        %v3049 = vunpack.c.h.b16 %v2742
        %v3050 = vunpack.c.l.b16 %v2743
        %v3051 = vunpack.c.h.b16 %v2743
        %v3052 = vunpack.c.l.b16 %v2744
        %v3053 = vunpack.c.h.b16 %v2744
        %v3054 = vunpack.c.l.b16 %v2745
        %v3055 = vunpack.c.h.b16 %v2745
        %v3056 = vunpack.c.l.b16 %v2746
        %v3057 = vunpack.c.h.b16 %v2746
        %v3058 = vunpack.c.l.b16 %v2747
        %v3059 = vunpack.c.h.b16 %v2747
        %v3060 = vunpack.c.l.b16 %v2748
        %v3061 = vunpack.c.h.b16 %v2748
        %v3062 = vunpack.c.l.b16 %v2749
        %v3063 = vunpack.c.h.b16 %v2749
        %v3064 = vunpack.c.l.b16 %v2750
        %v3065 = vunpack.c.h.b16 %v2750
        %v3066 = vunpack.c.l.b16 %v2751
        %v3067 = vunpack.c.h.b16 %v2751
        %v3068 = vunpack.c.l.b16 %v2752
        %v3069 = vunpack.c.h.b16 %v2752
        %v3070 = vunpack.c.l.b16 %v2753
        %v3071 = vunpack.c.h.b16 %v2753
        %v3072 = vunpack.c.l.b16 %v2754
        %v3073 = vunpack.c.h.b16 %v2754
        %v3074 = vunpack.c.l.b16 %v2755
        %v3075 = vunpack.c.h.b16 %v2755
        %v3076 = vunpack.c.l.b16 %v2756
        %v3077 = vunpack.c.h.b16 %v2756
        %v3078 = vunpack.c.l.b16 %v2757
        %v3079 = vunpack.c.h.b16 %v2757
        %v3080 = vunpack.c.l.b16 %v2758
        %v3081 = vunpack.c.h.b16 %v2758
        %v3082 = vunpack.c.l.b16 %v2759
        %v3083 = vunpack.c.h.b16 %v2759
        %v3084 = vunpack.c.l.b16 %v2760
        %v3085 = vunpack.c.h.b16 %v2760
        %v3086 = vunpack.c.l.b16 %v2761
        %v3087 = vunpack.c.h.b16 %v2761
        %v3088 = vunpack.c.l.b16 %v2762
        %v3089 = vunpack.c.h.b16 %v2762
        %v3090 = vunpack.c.l.b16 %v2763
        %v3091 = vunpack.c.h.b16 %v2763
        %v3092 = vunpack.c.l.b16 %v2764
        %v3093 = vunpack.c.h.b16 %v2764
        %v3094 = vunpack.c.l.b16 %v2765
        %v3095 = vunpack.c.h.b16 %v2765
        %v3096 = vunpack.c.l.b16 %v2766
        %v3097 = vunpack.c.h.b16 %v2766
        %v3098 = vunpack.c.l.b16 %v2767
        %v3099 = vunpack.c.h.b16 %v2767
        %v3100 = vunpack.c.l.b16 %v2768
        %v3101 = vunpack.c.h.b16 %v2768
        %v3102 = vunpack.c.l.b16 %v2769
        %v3103 = vunpack.c.h.b16 %v2769
        %v3104 = vunpack.c.l.b16 %v2770
        %v3105 = vunpack.c.h.b16 %v2770
        %v3106 = vunpack.c.l.b16 %v2771
        %v3107 = vunpack.c.h.b16 %v2771
        %v3108 = vunpack.c.l.b16 %v2772
        %v3109 = vunpack.c.h.b16 %v2772
        %v3110 = vunpack.c.l.b16 %v2773
        %v3111 = vunpack.c.h.b16 %v2773
        %v3112 = vunpack.c.l.b16 %v2774
        %v3113 = vunpack.c.h.b16 %v2774
        %v3114 = vunpack.c.l.b16 %v2775
        %v3115 = vunpack.c.h.b16 %v2775
        %v3116 = vunpack.c.l.b16 %v2776
        %v3117 = vunpack.c.h.b16 %v2776
        %v3118 = vunpack.c.l.b16 %v2777
        %v3119 = vunpack.c.h.b16 %v2777
        %v3120 = vunpack.c.l.b16 %v2778
        %v3121 = vunpack.c.h.b16 %v2778
        %v3122 = vunpack.c.l.b16 %v2779
        %v3123 = vunpack.c.h.b16 %v2779
        %v3124 = vunpack.c.l.b16 %v2780
        %v3125 = vunpack.c.h.b16 %v2780
        %v3126 = vunpack.c.l.b16 %v2781
        %v3127 = vunpack.c.h.b16 %v2781
        %v3128 = vunpack.c.l.b16 %v2782
        %v3129 = vunpack.c.h.b16 %v2782
        %v3130 = vunpack.c.l.b16 %v2783
        %v3131 = vunpack.c.h.b16 %v2783
        %v3132 = vunpack.c.l.b16 %v2784
        %v3133 = vunpack.c.h.b16 %v2784
        %v3134 = vunpack.c.l.b16 %v2785
        %v3135 = vunpack.c.h.b16 %v2785
        %v3136 = vunpack.c.l.b16 %v2786
        %v3137 = vunpack.c.h.b16 %v2786
        %v3138 = vunpack.c.l.b16 %v2787
        %v3139 = vunpack.c.h.b16 %v2787
        %v3140 = vunpack.c.l.b16 %v2788
        %v3141 = vunpack.c.h.b16 %v2788
        %v3142 = vunpack.c.l.b16 %v2789
        %v3143 = vunpack.c.h.b16 %v2789
        %v3144 = vunpack.c.l.b16 %v2790
        %v3145 = vunpack.c.h.b16 %v2790
        %v3146 = vunpack.c.l.b16 %v2791
        %v3147 = vunpack.c.h.b16 %v2791
        %v3148 = vunpack.c.l.b16 %v2792
        %v3149 = vunpack.c.h.b16 %v2792
        %v3150 = vunpack.c.l.b16 %v2793
        %v3151 = vunpack.c.h.b16 %v2793
        %v3152 = vunpack.c.l.b16 %v2794
        %v3153 = vunpack.c.h.b16 %v2794
        %v3154 = vunpack.c.l.b16 %v2795
        %v3155 = vunpack.c.h.b16 %v2795
        %v3156 = vunpack.c.l.b16 %v2796
        %v3157 = vunpack.c.h.b16 %v2796
        %v3158 = vunpack.c.l.b16 %v2797
        %v3159 = vunpack.c.h.b16 %v2797
        %v3160 = vunpack.c.l.b16 %v2798
        %v3161 = vunpack.c.h.b16 %v2798
        %v3162 = vunpack.c.l.b16 %v2799
        %v3163 = vunpack.c.h.b16 %v2799
        %v3164 = vunpack.c.l.b16 %v2800
        %v3165 = vunpack.c.h.b16 %v2800
        %v3166 = vunpack.c.l.b16 %v2801
        %v3167 = vunpack.c.h.b16 %v2801
        %v3168 = vunpack.c.l.b16 %v2802
        %v3169 = vunpack.c.h.b16 %v2802
        %v3170 = vunpack.c.l.b16 %v2803
        %v3171 = vunpack.c.h.b16 %v2803
        %v3172 = vunpack.c.l.b16 %v2804
        %v3173 = vunpack.c.h.b16 %v2804
        %v3174 = vunpack.c.l.b16 %v2805
        %v3175 = vunpack.c.h.b16 %v2805
        %v3176 = vunpack.c.l.b16 %v2806
        %v3177 = vunpack.c.h.b16 %v2806
        %v3178 = vunpack.c.l.b16 %v2807
        %v3179 = vunpack.c.h.b16 %v2807
        %v3180 = vunpack.c.l.b16 %v2808
        %v3181 = vunpack.c.h.b16 %v2808
        %v3182 = vunpack.c.l.b16 %v2809
        %v3183 = vunpack.c.h.b16 %v2809
        %v3184 = vunpack.c.l.b16 %v2810
        %v3185 = vunpack.c.h.b16 %v2810
        %v3186 = vunpack.c.l.b16 %v2811
        %v3187 = vunpack.c.h.b16 %v2811
        %v3188 = vunpack.c.l.b16 %v2812
        %v3189 = vunpack.c.h.b16 %v2812
        %v3190 = vunpack.c.l.b16 %v2813
        %v3191 = vunpack.c.h.b16 %v2813
        %v3192 = vunpack.c.l.b16 %v2814
        %v3193 = vunpack.c.h.b16 %v2814
        %v3194 = vunpack.c.l.b16 %v2815
        %v3195 = vunpack.c.h.b16 %v2815
        %v3196 = vunpack.c.l.b16 %v2816
        %v3197 = vunpack.c.h.b16 %v2816
        %v3198 = vunpack.c.l.b16 %v2817
        %v3199 = vunpack.c.h.b16 %v2817
        %v3200 = vunpack.c.l.b16 %v2818
        %v3201 = vunpack.c.h.b16 %v2818
        %v3202 = vunpack.c.l.b16 %v2819
        %v3203 = vunpack.c.h.b16 %v2819
        %v3204 = vunpack.c.l.b16 %v2820
        %v3205 = vunpack.c.h.b16 %v2820
        %v3206 = vunpack.c.l.b16 %v2821
        %v3207 = vunpack.c.h.b16 %v2821
        %v3208 = vunpack.c.l.b16 %v2822
        %v3209 = vunpack.c.h.b16 %v2822
        %v3210 = vunpack.c.l.b16 %v2823
        %v3211 = vunpack.c.h.b16 %v2823
        %v3212 = vunpack.c.l.b16 %v2824
        %v3213 = vunpack.c.h.b16 %v2824
        %v3214 = vunpack.c.l.b16 %v2825
        %v3215 = vunpack.c.h.b16 %v2825
        %v3216 = vunpack.c.l.b16 %v2826
        %v3217 = vunpack.c.h.b16 %v2826
        %v3218 = vunpack.c.l.b16 %v2827
        %v3219 = vunpack.c.h.b16 %v2827
        %v3220 = vunpack.c.l.b16 %v2828
        %v3221 = vunpack.c.h.b16 %v2828
        %v3222 = vunpack.c.l.b16 %v2829
        %v3223 = vunpack.c.h.b16 %v2829
        %v3224 = vunpack.c.l.b16 %v2830
        %v3225 = vunpack.c.h.b16 %v2830
        %v3226 = vunpack.c.l.b16 %v2831
        %v3227 = vunpack.c.h.b16 %v2831
        %v3228 = vunpack.c.l.b16 %v2832
        %v3229 = vunpack.c.h.b16 %v2832
        %v3230 = vunpack.c.l.b16 %v2833
        %v3231 = vunpack.c.h.b16 %v2833
        %v3232 = vunpack.c.l.b16 %v2834
        %v3233 = vunpack.c.h.b16 %v2834
        %v3234 = vunpack.c.l.b16 %v2835
        %v3235 = vunpack.c.h.b16 %v2835
        %v3236 = vunpack.c.l.b16 %v2836
        %v3237 = vunpack.c.h.b16 %v2836
        %v3238 = vunpack.c.l.b16 %v2837
        %v3239 = vunpack.c.h.b16 %v2837
        %v3240 = vunpack.c.l.b16 %v2838
        %v3241 = vunpack.c.h.b16 %v2838
        %v3242 = vunpack.c.l.b16 %v2839
        %v3243 = vunpack.c.h.b16 %v2839
        %v3244 = vunpack.c.l.b16 %v2840
        %v3245 = vunpack.c.h.b16 %v2840
        %v3246 = vunpack.c.l.b16 %v2841
        %v3247 = vunpack.c.h.b16 %v2841
        %v3248 = vunpack.c.l.b16 %v2842
        %v3249 = vunpack.c.h.b16 %v2842
        %v3250 = vunpack.c.l.b16 %v2843
        %v3251 = vunpack.c.h.b16 %v2843
        %v3252 = vunpack.c.l.b16 %v2844
        %v3253 = vunpack.c.h.b16 %v2844
        %v3254 = vunpack.c.l.b16 %v2845
        %v3255 = vunpack.c.h.b16 %v2845
        %v3256 = vunpack.c.l.b16 %v2846
        %v3257 = vunpack.c.h.b16 %v2846
        %v3258 = vunpack.c.l.b16 %v2847
        %v3259 = vunpack.c.h.b16 %v2847
        %v3260 = vunpack.c.l.b16 %v2848
        %v3261 = vunpack.c.h.b16 %v2848
        %v3262 = vunpack.c.l.b16 %v2849
        %v3263 = vunpack.c.h.b16 %v2849
        %v3264 = vunpack.c.l.b16 %v2850
        %v3265 = vunpack.c.h.b16 %v2850
        %v3266 = vunpack.c.l.b16 %v2851
        %v3267 = vunpack.c.h.b16 %v2851
        %v3268 = vunpack.c.l.b16 %v2852
        %v3269 = vunpack.c.h.b16 %v2852
        %v3270 = vunpack.c.l.b16 %v2853
        %v3271 = vunpack.c.h.b16 %v2853
        %v3272 = vunpack.c.l.b16 %v2854
        %v3273 = vunpack.c.h.b16 %v2854
        %v3274 = vunpack.c.l.b16 %v2855
        %v3275 = vunpack.c.h.b16 %v2855
        %v3276 = vunpack.c.l.b16 %v2856
        %v3277 = vunpack.c.h.b16 %v2856
        %v3278 = vunpack.c.l.b16 %v2857
        %v3279 = vunpack.c.h.b16 %v2857
        %v3280 = vunpack.c.l.b16 %v2858
        %v3281 = vunpack.c.h.b16 %v2858
        %v3282 = vunpack.c.l.b16 %v2859
        %v3283 = vunpack.c.h.b16 %v2859
        %v3284 = vunpack.c.l.b16 %v2860
        %v3285 = vunpack.c.h.b16 %v2860
        %v3286 = vunpack.c.l.b16 %v2861
        %v3287 = vunpack.c.h.b16 %v2861
        %v3288 = vpack.c.b16 %v3040, %v3032
        %v3289 = vpack.c.b16 %v3041, %v3033
        %v3290 = vpack.c.b16 %v3042, %v3034
        %v3291 = vpack.c.b16 %v3043, %v3035
        %v3292 = vpack.c.b16 %v3044, %v3036
        %v3293 = vpack.c.b16 %v3045, %v3037
        %v3294 = vpack.c.b16 %v3046, %v3038
        %v3295 = vpack.c.b16 %v3047, %v3039
        %v3296 = vpack.c.b16 %v3056, %v3048
        %v3297 = vpack.c.b16 %v3057, %v3049
        %v3298 = vpack.c.b16 %v3058, %v3050
        %v3299 = vpack.c.b16 %v3059, %v3051
        %v3300 = vpack.c.b16 %v3060, %v3052
        %v3301 = vpack.c.b16 %v3061, %v3053
        %v3302 = vpack.c.b16 %v3062, %v3054
        %v3303 = vpack.c.b16 %v3063, %v3055
        %v3304 = vpack.c.b16 %v3072, %v3064
        %v3305 = vpack.c.b16 %v3073, %v3065
        %v3306 = vpack.c.b16 %v3074, %v3066
        %v3307 = vpack.c.b16 %v3075, %v3067
        %v3308 = vpack.c.b16 %v3076, %v3068
        %v3309 = vpack.c.b16 %v3077, %v3069
        %v3310 = vpack.c.b16 %v3078, %v3070
        %v3311 = vpack.c.b16 %v3079, %v3071
        %v3312 = vpack.c.b16 %v3088, %v3080
        %v3313 = vpack.c.b16 %v3089, %v3081
        %v3314 = vpack.c.b16 %v3090, %v3082
        %v3315 = vpack.c.b16 %v3091, %v3083
        %v3316 = vpack.c.b16 %v3092, %v3084
        %v3317 = vpack.c.b16 %v3093, %v3085
        %v3318 = vpack.c.b16 %v3094, %v3086
        %v3319 = vpack.c.b16 %v3095, %v3087
        %v3320 = vpack.c.b16 %v3104, %v3096
        %v3321 = vpack.c.b16 %v3105, %v3097
        %v3322 = vpack.c.b16 %v3106, %v3098
        %v3323 = vpack.c.b16 %v3107, %v3099
        %v3324 = vpack.c.b16 %v3108, %v3100
        %v3325 = vpack.c.b16 %v3109, %v3101
        %v3326 = vpack.c.b16 %v3110, %v3102
        %v3327 = vpack.c.b16 %v3111, %v3103
        %v3328 = vpack.c.b16 %v3120, %v3112
        %v3329 = vpack.c.b16 %v3121, %v3113
        %v3330 = vpack.c.b16 %v3122, %v3114
        %v3331 = vpack.c.b16 %v3123, %v3115
        %v3332 = vpack.c.b16 %v3124, %v3116
        %v3333 = vpack.c.b16 %v3125, %v3117
        %v3334 = vpack.c.b16 %v3126, %v3118
        %v3335 = vpack.c.b16 %v3127, %v3119
        %v3336 = vpack.c.b16 %v3136, %v3128
        %v3337 = vpack.c.b16 %v3137, %v3129
        %v3338 = vpack.c.b16 %v3138, %v3130
        %v3339 = vpack.c.b16 %v3139, %v3131
        %v3340 = vpack.c.b16 %v3140, %v3132
        %v3341 = vpack.c.b16 %v3141, %v3133
        %v3342 = vpack.c.b16 %v3142, %v3134
        %v3343 = vpack.c.b16 %v3143, %v3135
        %v3344 = vpack.c.b16 %v3152, %v3144
        %v3345 = vpack.c.b16 %v3153, %v3145
        %v3346 = vpack.c.b16 %v3154, %v3146
        %v3347 = vpack.c.b16 %v3155, %v3147
        %v3348 = vpack.c.b16 %v3156, %v3148
        %v3349 = vpack.c.b16 %v3157, %v3149
        %v3350 = vpack.c.b16 %v3158, %v3150
        %v3351 = vpack.c.b16 %v3159, %v3151
        %v3352 = vpack.c.b16 %v3168, %v3160
        %v3353 = vpack.c.b16 %v3169, %v3161
        %v3354 = vpack.c.b16 %v3170, %v3162
        %v3355 = vpack.c.b16 %v3171, %v3163
        %v3356 = vpack.c.b16 %v3172, %v3164
        %v3357 = vpack.c.b16 %v3173, %v3165
        %v3358 = vpack.c.b16 %v3174, %v3166
        %v3359 = vpack.c.b16 %v3175, %v3167
        %v3360 = vpack.c.b16 %v3184, %v3176
        %v3361 = vpack.c.b16 %v3185, %v3177
        %v3362 = vpack.c.b16 %v3186, %v3178
        %v3363 = vpack.c.b16 %v3187, %v3179
        %v3364 = vpack.c.b16 %v3188, %v3180
        %v3365 = vpack.c.b16 %v3189, %v3181
        %v3366 = vpack.c.b16 %v3190, %v3182
        %v3367 = vpack.c.b16 %v3191, %v3183
        %v3368 = vpack.c.b16 %v3200, %v3192
        %v3369 = vpack.c.b16 %v3201, %v3193
        %v3370 = vpack.c.b16 %v3202, %v3194
        %v3371 = vpack.c.b16 %v3203, %v3195
        %v3372 = vpack.c.b16 %v3204, %v3196
        %v3373 = vpack.c.b16 %v3205, %v3197
        %v3374 = vpack.c.b16 %v3206, %v3198
        %v3375 = vpack.c.b16 %v3207, %v3199
        %v3376 = vpack.c.b16 %v3216, %v3208
        %v3377 = vpack.c.b16 %v3217, %v3209
        %v3378 = vpack.c.b16 %v3218, %v3210
        %v3379 = vpack.c.b16 %v3219, %v3211
        %v3380 = vpack.c.b16 %v3220, %v3212
        %v3381 = vpack.c.b16 %v3221, %v3213
        %v3382 = vpack.c.b16 %v3222, %v3214
        %v3383 = vpack.c.b16 %v3223, %v3215
        %v3384 = vpack.c.b16 %v3232, %v3224
        %v3385 = vpack.c.b16 %v3233, %v3225
        %v3386 = vpack.c.b16 %v3234, %v3226
        %v3387 = vpack.c.b16 %v3235, %v3227
        %v3388 = vpack.c.b16 %v3236, %v3228
        %v3389 = vpack.c.b16 %v3237, %v3229
        %v3390 = vpack.c.b16 %v3238, %v3230
        %v3391 = vpack.c.b16 %v3239, %v3231
        %v3392 = vpack.c.b16 %v3248, %v3240
        %v3393 = vpack.c.b16 %v3249, %v3241
        %v3394 = vpack.c.b16 %v3250, %v3242
        %v3395 = vpack.c.b16 %v3251, %v3243
        %v3396 = vpack.c.b16 %v3252, %v3244
        %v3397 = vpack.c.b16 %v3253, %v3245
        %v3398 = vpack.c.b16 %v3254, %v3246
        %v3399 = vpack.c.b16 %v3255, %v3247
        %v3400 = vpack.c.b16 %v3264, %v3256
        %v3401 = vpack.c.b16 %v3265, %v3257
        %v3402 = vpack.c.b16 %v3266, %v3258
        %v3403 = vpack.c.b16 %v3267, %v3259
        %v3404 = vpack.c.b16 %v3268, %v3260
        %v3405 = vpack.c.b16 %v3269, %v3261
        %v3406 = vpack.c.b16 %v3270, %v3262
        %v3407 = vpack.c.b16 %v3271, %v3263
        %v3408 = vpack.c.b16 %v3280, %v3272
        %v3409 = vpack.c.b16 %v3281, %v3273
        %v3410 = vpack.c.b16 %v3282, %v3274
        %v3411 = vpack.c.b16 %v3283, %v3275
        %v3412 = vpack.c.b16 %v3284, %v3276
        %v3413 = vpack.c.b16 %v3285, %v3277
        %v3414 = vpack.c.b16 %v3286, %v3278
        %v3415 = vpack.c.b16 %v3287, %v3279
        %3544 = vmatprep.subr.bf16.mxu0 %v3345
        %3545 = vmatpush1.bf16.msra.mxu0 %v3344
        %3546 = vmatprep.subr.bf16.mxu0 %v3337
        %3547 = vmatpush1.bf16.msra.mxu0 %v3336
        %3548 = vmatprep.subr.bf16.mxu0 %v3329
        %3549 = vmatpush1.bf16.msra.mxu0 %v3328
        %3550 = vmatprep.subr.bf16.mxu0 %v3321
        %3551 = vmatpush1.bf16.msra.mxu0 %v3320
        %3552 = vmatprep.subr.bf16.mxu0 %v3313
        %3553 = vmatpush1.bf16.msra.mxu0 %v3312
        %3554 = vmatprep.subr.bf16.mxu0 %v3305
        %3555 = vmatpush1.bf16.msra.mxu0 %v3304
        %3556 = vmatprep.subr.bf16.mxu0 %v3297
        %3557 = vmatpush1.bf16.msra.mxu0 %v3296
        %3558 = vmatprep.subr.bf16.mxu0 %v3289
        %3559 = vmatpush1.bf16.msra.mxu0 %v3288
        %3560 = vmatprep.subr.bf16.mxu0 %v3409
        %3561 = vmatpush2.bf16.msra.mxu0 %v3408
        %3562 = vmatprep.subr.bf16.mxu0 %v3401
        %3563 = vmatpush2.bf16.msra.mxu0 %v3400
        %3564 = vmatprep.subr.bf16.mxu0 %v3393
        %3565 = vmatpush2.bf16.msra.mxu0 %v3392
        %3566 = vmatprep.subr.bf16.mxu0 %v3385
        %3567 = vmatpush2.bf16.msra.mxu0 %v3384
        %3568 = vmatprep.subr.bf16.mxu0 %v3377
        %3569 = vmatpush2.bf16.msra.mxu0 %v3376
        %3570 = vmatprep.subr.bf16.mxu0 %v3369
        %3571 = vmatpush2.bf16.msra.mxu0 %v3368
        %3572 = vmatprep.subr.bf16.mxu0 %v3361
        %3573 = vmatpush2.bf16.msra.mxu0 %v3360
        %3574 = vmatprep.subr.bf16.mxu0 %v3353
        %3575 = vmatpush2.bf16.msra.mxu0 %v3352
        %3576 = vmatprep.mubr.bf16.mxu0 %v2733
        %3577 = vmatmul.mubr.bf16.gmra.mxu0 %v2732
        %v3578 = vpop.f32.mrf.mxu0
        %v3579 = vadd.f32 %v2867, %v3578
        %v3580 = vpop.f32.mrf.mxu0
        %v3581 = vadd.f32 %v2871, %v3580
        %v3582 = vpop.f32.mrf.mxu0
        %v3583 = vadd.f32 %v2867, %v3582
        %v3584 = vpop.f32.mrf.mxu0
        %v3585 = vadd.f32 %v2871, %v3584
        %3586 = vdwg.mxu0
        %3587 = vmatprep.subr.bf16.mxu0 %v3347
        %3588 = vmatpush1.bf16.msra.mxu0 %v3346
        %3589 = vmatprep.subr.bf16.mxu0 %v3339
        %3590 = vmatpush1.bf16.msra.mxu0 %v3338
        %3591 = vmatprep.subr.bf16.mxu0 %v3331
        %3592 = vmatpush1.bf16.msra.mxu0 %v3330
        %3593 = vmatprep.subr.bf16.mxu0 %v3323
        %3594 = vmatpush1.bf16.msra.mxu0 %v3322
        %3595 = vmatprep.subr.bf16.mxu0 %v3315
        %3596 = vmatpush1.bf16.msra.mxu0 %v3314
        %3597 = vmatprep.subr.bf16.mxu0 %v3307
        %3598 = vmatpush1.bf16.msra.mxu0 %v3306
        %3599 = vmatprep.subr.bf16.mxu0 %v3299
        %3600 = vmatpush1.bf16.msra.mxu0 %v3298
        %3601 = vmatprep.subr.bf16.mxu0 %v3291
        %3602 = vmatpush1.bf16.msra.mxu0 %v3290
        %3603 = vmatprep.subr.bf16.mxu0 %v3411
        %3604 = vmatpush2.bf16.msra.mxu0 %v3410
        %3605 = vmatprep.subr.bf16.mxu0 %v3403
        %3606 = vmatpush2.bf16.msra.mxu0 %v3402
        %3607 = vmatprep.subr.bf16.mxu0 %v3395
        %3608 = vmatpush2.bf16.msra.mxu0 %v3394
        %3609 = vmatprep.subr.bf16.mxu0 %v3387
        %3610 = vmatpush2.bf16.msra.mxu0 %v3386
        %3611 = vmatprep.subr.bf16.mxu0 %v3379
        %3612 = vmatpush2.bf16.msra.mxu0 %v3378
        %3613 = vmatprep.subr.bf16.mxu0 %v3371
        %3614 = vmatpush2.bf16.msra.mxu0 %v3370
        %3615 = vmatprep.subr.bf16.mxu0 %v3363
        %3616 = vmatpush2.bf16.msra.mxu0 %v3362
        %3617 = vmatprep.subr.bf16.mxu0 %v3355
        %3618 = vmatpush2.bf16.msra.mxu0 %v3354
        %3619 = vmatprep.mubr.bf16.mxu0 %v2733
        %3620 = vmatmul.mubr.bf16.gmra.mxu0 %v2732
        %v3621 = vpop.f32.mrf.mxu0
        %v3622 = vadd.f32 %v2875, %v3621
        %v3623 = vpop.f32.mrf.mxu0
        %v3624 = vadd.f32 %v2879, %v3623
        %v3625 = vpop.f32.mrf.mxu0
        %v3626 = vadd.f32 %v2875, %v3625
        %v3627 = vpop.f32.mrf.mxu0
        %v3628 = vadd.f32 %v2879, %v3627
        %3629 = vdwg.mxu0
        %3630 = vmatprep.subr.bf16.mxu0 %v3349
        %3631 = vmatpush1.bf16.msra.mxu0 %v3348
        %3632 = vmatprep.subr.bf16.mxu0 %v3341
        %3633 = vmatpush1.bf16.msra.mxu0 %v3340
        %3634 = vmatprep.subr.bf16.mxu0 %v3333
        %3635 = vmatpush1.bf16.msra.mxu0 %v3332
        %3636 = vmatprep.subr.bf16.mxu0 %v3325
        %3637 = vmatpush1.bf16.msra.mxu0 %v3324
        %3638 = vmatprep.subr.bf16.mxu0 %v3317
        %3639 = vmatpush1.bf16.msra.mxu0 %v3316
        %3640 = vmatprep.subr.bf16.mxu0 %v3309
        %3641 = vmatpush1.bf16.msra.mxu0 %v3308
        %3642 = vmatprep.subr.bf16.mxu0 %v3301
        %3643 = vmatpush1.bf16.msra.mxu0 %v3300
        %3644 = vmatprep.subr.bf16.mxu0 %v3293
        %3645 = vmatpush1.bf16.msra.mxu0 %v3292
        %3646 = vmatprep.subr.bf16.mxu0 %v3413
        %3647 = vmatpush2.bf16.msra.mxu0 %v3412
        %3648 = vmatprep.subr.bf16.mxu0 %v3405
        %3649 = vmatpush2.bf16.msra.mxu0 %v3404
        %3650 = vmatprep.subr.bf16.mxu0 %v3397
        %3651 = vmatpush2.bf16.msra.mxu0 %v3396
        %3652 = vmatprep.subr.bf16.mxu0 %v3389
        %3653 = vmatpush2.bf16.msra.mxu0 %v3388
        %3654 = vmatprep.subr.bf16.mxu0 %v3381
        %3655 = vmatpush2.bf16.msra.mxu0 %v3380
        %3656 = vmatprep.subr.bf16.mxu0 %v3373
        %3657 = vmatpush2.bf16.msra.mxu0 %v3372
        %3658 = vmatprep.subr.bf16.mxu0 %v3365
        %3659 = vmatpush2.bf16.msra.mxu0 %v3364
        %3660 = vmatprep.subr.bf16.mxu0 %v3357
        %3661 = vmatpush2.bf16.msra.mxu0 %v3356
        %3662 = vmatprep.mubr.bf16.mxu0 %v2733
        %3663 = vmatmul.mubr.bf16.gmra.mxu0 %v2732
        %v3664 = vpop.f32.mrf.mxu0
        %v3665 = vadd.f32 %v2883, %v3664
        %v3666 = vpop.f32.mrf.mxu0
        %v3667 = vadd.f32 %v2887, %v3666
        %v3668 = vpop.f32.mrf.mxu0
        %v3669 = vadd.f32 %v2883, %v3668
        %v3670 = vpop.f32.mrf.mxu0
        %v3671 = vadd.f32 %v2887, %v3670
        %3672 = vdwg.mxu0
        %3673 = vmatprep.subr.bf16.mxu0 %v3351
        %3674 = vmatpush1.bf16.msra.mxu0 %v3350
        %3675 = vmatprep.subr.bf16.mxu0 %v3343
        %3676 = vmatpush1.bf16.msra.mxu0 %v3342
        %3677 = vmatprep.subr.bf16.mxu0 %v3335
        %3678 = vmatpush1.bf16.msra.mxu0 %v3334
        %3679 = vmatprep.subr.bf16.mxu0 %v3327
        %3680 = vmatpush1.bf16.msra.mxu0 %v3326
        %3681 = vmatprep.subr.bf16.mxu0 %v3319
        %3682 = vmatpush1.bf16.msra.mxu0 %v3318
        %3683 = vmatprep.subr.bf16.mxu0 %v3311
        %3684 = vmatpush1.bf16.msra.mxu0 %v3310
        %3685 = vmatprep.subr.bf16.mxu0 %v3303
        %3686 = vmatpush1.bf16.msra.mxu0 %v3302
        %3687 = vmatprep.subr.bf16.mxu0 %v3295
        %3688 = vmatpush1.bf16.msra.mxu0 %v3294
        %3689 = vmatprep.subr.bf16.mxu0 %v3415
        %3690 = vmatpush2.bf16.msra.mxu0 %v3414
        %3691 = vmatprep.subr.bf16.mxu0 %v3407
        %3692 = vmatpush2.bf16.msra.mxu0 %v3406
        %3693 = vmatprep.subr.bf16.mxu0 %v3399
        %3694 = vmatpush2.bf16.msra.mxu0 %v3398
        %3695 = vmatprep.subr.bf16.mxu0 %v3391
        %3696 = vmatpush2.bf16.msra.mxu0 %v3390
        %3697 = vmatprep.subr.bf16.mxu0 %v3383
        %3698 = vmatpush2.bf16.msra.mxu0 %v3382
        %3699 = vmatprep.subr.bf16.mxu0 %v3375
        %3700 = vmatpush2.bf16.msra.mxu0 %v3374
        %3701 = vmatprep.subr.bf16.mxu0 %v3367
        %3702 = vmatpush2.bf16.msra.mxu0 %v3366
        %3703 = vmatprep.subr.bf16.mxu0 %v3359
        %3704 = vmatpush2.bf16.msra.mxu0 %v3358
        %3705 = vmatprep.mubr.bf16.mxu0 %v2733
        %3706 = vmatmul.mubr.bf16.gmra.mxu0 %v2732
        %v3707 = vpop.f32.mrf.mxu0
        %v3708 = vadd.f32 %v2891, %v3707
        %v3709 = vpop.f32.mrf.mxu0
        %v3710 = vadd.f32 %v2895, %v3709
        %v3711 = vpop.f32.mrf.mxu0
        %v3712 = vadd.f32 %v2891, %v3711
        %v3713 = vpop.f32.mrf.mxu0
        %v3714 = vadd.f32 %v2895, %v3713
        %3715 = vdwg.mxu0
        %v3716 = vmul.f32 %v3579, 0.5
        %v3717 = vmul.f32 %v3581, 0.5
        %v3718 = vmul.f32 %v3622, 0.5
        %v3719 = vmul.f32 %v3624, 0.5
        %v3720 = vmul.f32 %v3665, 0.5
        %v3721 = vmul.f32 %v3667, 0.5
        %v3722 = vmul.f32 %v3708, 0.5
        %v3723 = vmul.f32 %v3710, 0.5
        %v3724 = vmul.f32 %v3583, 0.5
        %v3725 = vmul.f32 %v3585, 0.5
        %v3726 = vmul.f32 %v3626, 0.5
        %v3727 = vmul.f32 %v3628, 0.5
        %v3728 = vmul.f32 %v3669, 0.5
        %v3729 = vmul.f32 %v3671, 0.5
        %v3730 = vmul.f32 %v3712, 0.5
        %v3731 = vmul.f32 %v3714, 0.5
        %v3732 = vmul.f32 %v3579, 0.70710677
        %v3733 = vmul.f32 %v3581, 0.70710677
        %v3734 = vmul.f32 %v3622, 0.70710677
        %v3735 = vmul.f32 %v3624, 0.70710677
        %v3736 = vmul.f32 %v3665, 0.70710677
        %v3737 = vmul.f32 %v3667, 0.70710677
        %v3738 = vmul.f32 %v3708, 0.70710677
        %v3739 = vmul.f32 %v3710, 0.70710677
        %v3740 = vmul.f32 %v3583, 0.70710677
        %v3741 = vmul.f32 %v3585, 0.70710677
        %v3742 = vmul.f32 %v3626, 0.70710677
        %v3743 = vmul.f32 %v3628, 0.70710677
        %v3744 = vmul.f32 %v3669, 0.70710677
        %v3745 = vmul.f32 %v3671, 0.70710677
        %v3746 = vmul.f32 %v3712, 0.70710677
        %v3747 = vmul.f32 %v3714, 0.70710677
        %v3748 = vand.u32 2147483647, %v3732
        %v3749 = vand.u32 2147483647, %v3733
        %v3750 = vand.u32 2147483647, %v3734
        %v3751 = vand.u32 2147483647, %v3735
        %v3752 = vand.u32 2147483647, %v3736
        %v3753 = vand.u32 2147483647, %v3737
        %v3754 = vand.u32 2147483647, %v3738
        %v3755 = vand.u32 2147483647, %v3739
        %v3756 = vand.u32 2147483647, %v3740
        %v3757 = vand.u32 2147483647, %v3741
        %v3758 = vand.u32 2147483647, %v3742
        %v3759 = vand.u32 2147483647, %v3743
        %v3760 = vand.u32 2147483647, %v3744
        %v3761 = vand.u32 2147483647, %v3745
        %v3762 = vand.u32 2147483647, %v3746
        %v3763 = vand.u32 2147483647, %v3747
        %v3764 = vmul.f32 %v3748, 0.3275911
        %v3765 = vmul.f32 %v3749, 0.3275911
        %v3766 = vmul.f32 %v3750, 0.3275911
        %v3767 = vmul.f32 %v3751, 0.3275911
        %v3768 = vmul.f32 %v3752, 0.3275911
        %v3769 = vmul.f32 %v3753, 0.3275911
        %v3770 = vmul.f32 %v3754, 0.3275911
        %v3771 = vmul.f32 %v3755, 0.3275911
        %v3772 = vmul.f32 %v3756, 0.3275911
        %v3773 = vmul.f32 %v3757, 0.3275911
        %v3774 = vmul.f32 %v3758, 0.3275911
        %v3775 = vmul.f32 %v3759, 0.3275911
        %v3776 = vmul.f32 %v3760, 0.3275911
        %v3777 = vmul.f32 %v3761, 0.3275911
        %v3778 = vmul.f32 %v3762, 0.3275911
        %v3779 = vmul.f32 %v3763, 0.3275911
        %v3780 = vadd.f32 %v3764, 1.0
        %v3781 = vadd.f32 %v3765, 1.0
        %v3782 = vadd.f32 %v3766, 1.0
        %v3783 = vadd.f32 %v3767, 1.0
        %v3784 = vadd.f32 %v3768, 1.0
        %v3785 = vadd.f32 %v3769, 1.0
        %v3786 = vadd.f32 %v3770, 1.0
        %v3787 = vadd.f32 %v3771, 1.0
        %v3788 = vadd.f32 %v3772, 1.0
        %v3789 = vadd.f32 %v3773, 1.0
        %v3790 = vadd.f32 %v3774, 1.0
        %v3791 = vadd.f32 %v3775, 1.0
        %v3792 = vadd.f32 %v3776, 1.0
        %v3793 = vadd.f32 %v3777, 1.0
        %v3794 = vadd.f32 %v3778, 1.0
        %v3795 = vadd.f32 %v3779, 1.0
        %v3796 = vrcp.pop %v3780
        %v3797 = vmul.f32 1.0, %v3796
        %v3798 = vrcp.pop %v3781
        %v3799 = vmul.f32 1.0, %v3798
        %v3800 = vrcp.pop %v3782
        %v3801 = vmul.f32 1.0, %v3800
        %v3802 = vrcp.pop %v3783
        %v3803 = vmul.f32 1.0, %v3802
        %v3804 = vrcp.pop %v3784
        %v3805 = vmul.f32 1.0, %v3804
        %v3806 = vrcp.pop %v3785
        %v3807 = vmul.f32 1.0, %v3806
        %v3808 = vrcp.pop %v3786
        %v3809 = vmul.f32 1.0, %v3808
        %v3810 = vrcp.pop %v3787
        %v3811 = vmul.f32 1.0, %v3810
        %v3812 = vrcp.pop %v3788
        %v3813 = vmul.f32 1.0, %v3812
        %v3814 = vrcp.pop %v3789
        %v3815 = vmul.f32 1.0, %v3814
        %v3816 = vrcp.pop %v3790
        %v3817 = vmul.f32 1.0, %v3816
        %v3818 = vrcp.pop %v3791
        %v3819 = vmul.f32 1.0, %v3818
        %v3820 = vrcp.pop %v3792
        %v3821 = vmul.f32 1.0, %v3820
        %v3822 = vrcp.pop %v3793
        %v3823 = vmul.f32 1.0, %v3822
        %v3824 = vrcp.pop %v3794
        %v3825 = vmul.f32 1.0, %v3824
        %v3826 = vrcp.pop %v3795
        %v3827 = vmul.f32 1.0, %v3826
        %v3828 = vmul.f32 %v3797, 1.0614054
        %v3829 = vmul.f32 %v3799, 1.0614054
        %v3830 = vmul.f32 %v3801, 1.0614054
        %v3831 = vmul.f32 %v3803, 1.0614054
        %v3832 = vmul.f32 %v3805, 1.0614054
        %v3833 = vmul.f32 %v3807, 1.0614054
        %v3834 = vmul.f32 %v3809, 1.0614054
        %v3835 = vmul.f32 %v3811, 1.0614054
        %v3836 = vmul.f32 %v3813, 1.0614054
        %v3837 = vmul.f32 %v3815, 1.0614054
        %v3838 = vmul.f32 %v3817, 1.0614054
        %v3839 = vmul.f32 %v3819, 1.0614054
        %v3840 = vmul.f32 %v3821, 1.0614054
        %v3841 = vmul.f32 %v3823, 1.0614054
        %v3842 = vmul.f32 %v3825, 1.0614054
        %v3843 = vmul.f32 %v3827, 1.0614054
        %v3844 = vadd.f32 %v3828, -1.4531521
        %v3845 = vadd.f32 %v3829, -1.4531521
        %v3846 = vadd.f32 %v3830, -1.4531521
        %v3847 = vadd.f32 %v3831, -1.4531521
        %v3848 = vadd.f32 %v3832, -1.4531521
        %v3849 = vadd.f32 %v3833, -1.4531521
        %v3850 = vadd.f32 %v3834, -1.4531521
        %v3851 = vadd.f32 %v3835, -1.4531521
        %v3852 = vadd.f32 %v3836, -1.4531521
        %v3853 = vadd.f32 %v3837, -1.4531521
        %v3854 = vadd.f32 %v3838, -1.4531521
        %v3855 = vadd.f32 %v3839, -1.4531521
        %v3856 = vadd.f32 %v3840, -1.4531521
        %v3857 = vadd.f32 %v3841, -1.4531521
        %v3858 = vadd.f32 %v3842, -1.4531521
        %v3859 = vadd.f32 %v3843, -1.4531521
        %v3860 = vmul.f32 %v3844, %v3797
        %v3861 = vmul.f32 %v3845, %v3799
        %v3862 = vmul.f32 %v3846, %v3801
        %v3863 = vmul.f32 %v3847, %v3803
        %v3864 = vmul.f32 %v3848, %v3805
        %v3865 = vmul.f32 %v3849, %v3807
        %v3866 = vmul.f32 %v3850, %v3809
        %v3867 = vmul.f32 %v3851, %v3811
        %v3868 = vmul.f32 %v3852, %v3813
        %v3869 = vmul.f32 %v3853, %v3815
        %v3870 = vmul.f32 %v3854, %v3817
        %v3871 = vmul.f32 %v3855, %v3819
        %v3872 = vmul.f32 %v3856, %v3821
        %v3873 = vmul.f32 %v3857, %v3823
        %v3874 = vmul.f32 %v3858, %v3825
        %v3875 = vmul.f32 %v3859, %v3827
        %v3876 = vadd.f32 %v3860, 1.4214138
        %v3877 = vadd.f32 %v3861, 1.4214138
        %v3878 = vadd.f32 %v3862, 1.4214138
        %v3879 = vadd.f32 %v3863, 1.4214138
        %v3880 = vadd.f32 %v3864, 1.4214138
        %v3881 = vadd.f32 %v3865, 1.4214138
        %v3882 = vadd.f32 %v3866, 1.4214138
        %v3883 = vadd.f32 %v3867, 1.4214138
        %v3884 = vadd.f32 %v3868, 1.4214138
        %v3885 = vadd.f32 %v3869, 1.4214138
        %v3886 = vadd.f32 %v3870, 1.4214138
        %v3887 = vadd.f32 %v3871, 1.4214138
        %v3888 = vadd.f32 %v3872, 1.4214138
        %v3889 = vadd.f32 %v3873, 1.4214138
        %v3890 = vadd.f32 %v3874, 1.4214138
        %v3891 = vadd.f32 %v3875, 1.4214138
        %v3892 = vmul.f32 %v3876, %v3797
        %v3893 = vmul.f32 %v3877, %v3799
        %v3894 = vmul.f32 %v3878, %v3801
        %v3895 = vmul.f32 %v3879, %v3803
        %v3896 = vmul.f32 %v3880, %v3805
        %v3897 = vmul.f32 %v3881, %v3807
        %v3898 = vmul.f32 %v3882, %v3809
        %v3899 = vmul.f32 %v3883, %v3811
        %v3900 = vmul.f32 %v3884, %v3813
        %v3901 = vmul.f32 %v3885, %v3815
        %v3902 = vmul.f32 %v3886, %v3817
        %v3903 = vmul.f32 %v3887, %v3819
        %v3904 = vmul.f32 %v3888, %v3821
        %v3905 = vmul.f32 %v3889, %v3823
        %v3906 = vmul.f32 %v3890, %v3825
        %v3907 = vmul.f32 %v3891, %v3827
        %v3908 = vadd.f32 %v3892, -0.28449672
        %v3909 = vadd.f32 %v3893, -0.28449672
        %v3910 = vadd.f32 %v3894, -0.28449672
        %v3911 = vadd.f32 %v3895, -0.28449672
        %v3912 = vadd.f32 %v3896, -0.28449672
        %v3913 = vadd.f32 %v3897, -0.28449672
        %v3914 = vadd.f32 %v3898, -0.28449672
        %v3915 = vadd.f32 %v3899, -0.28449672
        %v3916 = vadd.f32 %v3900, -0.28449672
        %v3917 = vadd.f32 %v3901, -0.28449672
        %v3918 = vadd.f32 %v3902, -0.28449672
        %v3919 = vadd.f32 %v3903, -0.28449672
        %v3920 = vadd.f32 %v3904, -0.28449672
        %v3921 = vadd.f32 %v3905, -0.28449672
        %v3922 = vadd.f32 %v3906, -0.28449672
        %v3923 = vadd.f32 %v3907, -0.28449672
        %v3924 = vmul.f32 %v3908, %v3797
        %v3925 = vmul.f32 %v3909, %v3799
        %v3926 = vmul.f32 %v3910, %v3801
        %v3927 = vmul.f32 %v3911, %v3803
        %v3928 = vmul.f32 %v3912, %v3805
        %v3929 = vmul.f32 %v3913, %v3807
        %v3930 = vmul.f32 %v3914, %v3809
        %v3931 = vmul.f32 %v3915, %v3811
        %v3932 = vmul.f32 %v3916, %v3813
        %v3933 = vmul.f32 %v3917, %v3815
        %v3934 = vmul.f32 %v3918, %v3817
        %v3935 = vmul.f32 %v3919, %v3819
        %v3936 = vmul.f32 %v3920, %v3821
        %v3937 = vmul.f32 %v3921, %v3823
        %v3938 = vmul.f32 %v3922, %v3825
        %v3939 = vmul.f32 %v3923, %v3827
        %v3940 = vadd.f32 %v3924, 0.2548296
        %v3941 = vadd.f32 %v3925, 0.2548296
        %v3942 = vadd.f32 %v3926, 0.2548296
        %v3943 = vadd.f32 %v3927, 0.2548296
        %v3944 = vadd.f32 %v3928, 0.2548296
        %v3945 = vadd.f32 %v3929, 0.2548296
        %v3946 = vadd.f32 %v3930, 0.2548296
        %v3947 = vadd.f32 %v3931, 0.2548296
        %v3948 = vadd.f32 %v3932, 0.2548296
        %v3949 = vadd.f32 %v3933, 0.2548296
        %v3950 = vadd.f32 %v3934, 0.2548296
        %v3951 = vadd.f32 %v3935, 0.2548296
        %v3952 = vadd.f32 %v3936, 0.2548296
        %v3953 = vadd.f32 %v3937, 0.2548296
        %v3954 = vadd.f32 %v3938, 0.2548296
        %v3955 = vadd.f32 %v3939, 0.2548296
        %v3956 = vmul.f32 %v3940, %v3797
        %v3957 = vmul.f32 %v3941, %v3799
        %v3958 = vmul.f32 %v3942, %v3801
        %v3959 = vmul.f32 %v3943, %v3803
        %v3960 = vmul.f32 %v3944, %v3805
        %v3961 = vmul.f32 %v3945, %v3807
        %v3962 = vmul.f32 %v3946, %v3809
        %v3963 = vmul.f32 %v3947, %v3811
        %v3964 = vmul.f32 %v3948, %v3813
        %v3965 = vmul.f32 %v3949, %v3815
        %v3966 = vmul.f32 %v3950, %v3817
        %v3967 = vmul.f32 %v3951, %v3819
        %v3968 = vmul.f32 %v3952, %v3821
        %v3969 = vmul.f32 %v3953, %v3823
        %v3970 = vmul.f32 %v3954, %v3825
        %v3971 = vmul.f32 %v3955, %v3827
        %v3972 = vsub.f32 0.0, %v3748
        %v3973 = vsub.f32 0.0, %v3749
        %v3974 = vsub.f32 0.0, %v3750
        %v3975 = vsub.f32 0.0, %v3751
        %v3976 = vsub.f32 0.0, %v3752
        %v3977 = vsub.f32 0.0, %v3753
        %v3978 = vsub.f32 0.0, %v3754
        %v3979 = vsub.f32 0.0, %v3755
        %v3980 = vsub.f32 0.0, %v3756
        %v3981 = vsub.f32 0.0, %v3757
        %v3982 = vsub.f32 0.0, %v3758
        %v3983 = vsub.f32 0.0, %v3759
        %v3984 = vsub.f32 0.0, %v3760
        %v3985 = vsub.f32 0.0, %v3761
        %v3986 = vsub.f32 0.0, %v3762
        %v3987 = vsub.f32 0.0, %v3763
        %v3988 = vmul.f32 %v3972, %v3748
        %v3989 = vmul.f32 %v3973, %v3749
        %v3990 = vmul.f32 %v3974, %v3750
        %v3991 = vmul.f32 %v3975, %v3751
        %v3992 = vmul.f32 %v3976, %v3752
        %v3993 = vmul.f32 %v3977, %v3753
        %v3994 = vmul.f32 %v3978, %v3754
        %v3995 = vmul.f32 %v3979, %v3755
        %v3996 = vmul.f32 %v3980, %v3756
        %v3997 = vmul.f32 %v3981, %v3757
        %v3998 = vmul.f32 %v3982, %v3758
        %v3999 = vmul.f32 %v3983, %v3759
        %v4000 = vmul.f32 %v3984, %v3760
        %v4001 = vmul.f32 %v3985, %v3761
        %v4002 = vmul.f32 %v3986, %v3762
        %v4003 = vmul.f32 %v3987, %v3763
        %v4004 = vmul.f32 %v3988, 1.442695
        %v4005 = vpow.pop %v4004
        %v4006 = vmul.f32 %v3989, 1.442695
        %v4007 = vpow.pop %v4006
        %v4008 = vmul.f32 %v3990, 1.442695
        %v4009 = vpow.pop %v4008
        %v4010 = vmul.f32 %v3991, 1.442695
        %v4011 = vpow.pop %v4010
        %v4012 = vmul.f32 %v3992, 1.442695
        %v4013 = vpow.pop %v4012
        %v4014 = vmul.f32 %v3993, 1.442695
        %v4015 = vpow.pop %v4014
        %v4016 = vmul.f32 %v3994, 1.442695
        %v4017 = vpow.pop %v4016
        %v4018 = vmul.f32 %v3995, 1.442695
        %v4019 = vpow.pop %v4018
        %v4020 = vmul.f32 %v3996, 1.442695
        %v4021 = vpow.pop %v4020
        %v4022 = vmul.f32 %v3997, 1.442695
        %v4023 = vpow.pop %v4022
        %v4024 = vmul.f32 %v3998, 1.442695
        %v4025 = vpow.pop %v4024
        %v4026 = vmul.f32 %v3999, 1.442695
        %v4027 = vpow.pop %v4026
        %v4028 = vmul.f32 %v4000, 1.442695
        %v4029 = vpow.pop %v4028
        %v4030 = vmul.f32 %v4001, 1.442695
        %v4031 = vpow.pop %v4030
        %v4032 = vmul.f32 %v4002, 1.442695
        %v4033 = vpow.pop %v4032
        %v4034 = vmul.f32 %v4003, 1.442695
        %v4035 = vpow.pop %v4034
        %v4036 = vmul.f32 %v3956, %v4005
        %v4037 = vmul.f32 %v3957, %v4007
        %v4038 = vmul.f32 %v3958, %v4009
        %v4039 = vmul.f32 %v3959, %v4011
        %v4040 = vmul.f32 %v3960, %v4013
        %v4041 = vmul.f32 %v3961, %v4015
        %v4042 = vmul.f32 %v3962, %v4017
        %v4043 = vmul.f32 %v3963, %v4019
        %v4044 = vmul.f32 %v3964, %v4021
        %v4045 = vmul.f32 %v3965, %v4023
        %v4046 = vmul.f32 %v3966, %v4025
        %v4047 = vmul.f32 %v3967, %v4027
        %v4048 = vmul.f32 %v3968, %v4029
        %v4049 = vmul.f32 %v3969, %v4031
        %v4050 = vmul.f32 %v3970, %v4033
        %v4051 = vmul.f32 %v3971, %v4035
        %v4052 = vsub.f32 1.0, %v4036
        %v4053 = vsub.f32 1.0, %v4037
        %v4054 = vsub.f32 1.0, %v4038
        %v4055 = vsub.f32 1.0, %v4039
        %v4056 = vsub.f32 1.0, %v4040
        %v4057 = vsub.f32 1.0, %v4041
        %v4058 = vsub.f32 1.0, %v4042
        %v4059 = vsub.f32 1.0, %v4043
        %v4060 = vsub.f32 1.0, %v4044
        %v4061 = vsub.f32 1.0, %v4045
        %v4062 = vsub.f32 1.0, %v4046
        %v4063 = vsub.f32 1.0, %v4047
        %v4064 = vsub.f32 1.0, %v4048
        %v4065 = vsub.f32 1.0, %v4049
        %v4066 = vsub.f32 1.0, %v4050
        %v4067 = vsub.f32 1.0, %v4051
        %vm4068 = vcmp.ge.f32.partialorder %v3732, 0.0
        %vm4069 = vcmp.ge.f32.partialorder %v3733, 0.0
        %vm4070 = vcmp.ge.f32.partialorder %v3734, 0.0
        %vm4071 = vcmp.ge.f32.partialorder %v3735, 0.0
        %vm4072 = vcmp.ge.f32.partialorder %v3736, 0.0
        %vm4073 = vcmp.ge.f32.partialorder %v3737, 0.0
        %vm4074 = vcmp.ge.f32.partialorder %v3738, 0.0
        %vm4075 = vcmp.ge.f32.partialorder %v3739, 0.0
        %vm4076 = vcmp.ge.f32.partialorder %v3740, 0.0
        %vm4077 = vcmp.ge.f32.partialorder %v3741, 0.0
        %vm4078 = vcmp.ge.f32.partialorder %v3742, 0.0
        %vm4079 = vcmp.ge.f32.partialorder %v3743, 0.0
        %vm4080 = vcmp.ge.f32.partialorder %v3744, 0.0
        %vm4081 = vcmp.ge.f32.partialorder %v3745, 0.0
        %vm4082 = vcmp.ge.f32.partialorder %v3746, 0.0
        %vm4083 = vcmp.ge.f32.partialorder %v3747, 0.0
        %v4084 = vsub.f32 0.0, %v4052
        %v4085 = vsub.f32 0.0, %v4053
        %v4086 = vsub.f32 0.0, %v4054
        %v4087 = vsub.f32 0.0, %v4055
        %v4088 = vsub.f32 0.0, %v4056
        %v4089 = vsub.f32 0.0, %v4057
        %v4090 = vsub.f32 0.0, %v4058
        %v4091 = vsub.f32 0.0, %v4059
        %v4092 = vsub.f32 0.0, %v4060
        %v4093 = vsub.f32 0.0, %v4061
        %v4094 = vsub.f32 0.0, %v4062
        %v4095 = vsub.f32 0.0, %v4063
        %v4096 = vsub.f32 0.0, %v4064
        %v4097 = vsub.f32 0.0, %v4065
        %v4098 = vsub.f32 0.0, %v4066
        %v4099 = vsub.f32 0.0, %v4067
        %v4100 = vsel %vm4068, %v4052, %v4084
        %v4101 = vsel %vm4069, %v4053, %v4085
        %v4102 = vsel %vm4070, %v4054, %v4086
        %v4103 = vsel %vm4071, %v4055, %v4087
        %v4104 = vsel %vm4072, %v4056, %v4088
        %v4105 = vsel %vm4073, %v4057, %v4089
        %v4106 = vsel %vm4074, %v4058, %v4090
        %v4107 = vsel %vm4075, %v4059, %v4091
        %v4108 = vsel %vm4076, %v4060, %v4092
        %v4109 = vsel %vm4077, %v4061, %v4093
        %v4110 = vsel %vm4078, %v4062, %v4094
        %v4111 = vsel %vm4079, %v4063, %v4095
        %v4112 = vsel %vm4080, %v4064, %v4096
        %v4113 = vsel %vm4081, %v4065, %v4097
        %v4114 = vsel %vm4082, %v4066, %v4098
        %v4115 = vsel %vm4083, %v4067, %v4099
        %v4116 = vadd.f32 %v4100, 1.0
        %v4117 = vadd.f32 %v4101, 1.0
        %v4118 = vadd.f32 %v4102, 1.0
        %v4119 = vadd.f32 %v4103, 1.0
        %v4120 = vadd.f32 %v4104, 1.0
        %v4121 = vadd.f32 %v4105, 1.0
        %v4122 = vadd.f32 %v4106, 1.0
        %v4123 = vadd.f32 %v4107, 1.0
        %v4124 = vadd.f32 %v4108, 1.0
        %v4125 = vadd.f32 %v4109, 1.0
        %v4126 = vadd.f32 %v4110, 1.0
        %v4127 = vadd.f32 %v4111, 1.0
        %v4128 = vadd.f32 %v4112, 1.0
        %v4129 = vadd.f32 %v4113, 1.0
        %v4130 = vadd.f32 %v4114, 1.0
        %v4131 = vadd.f32 %v4115, 1.0
        %v4132 = vmul.f32 %v3716, %v4116
        %v4133 = vmul.f32 %v3717, %v4117
        %v4134 = vmul.f32 %v3718, %v4118
        %v4135 = vmul.f32 %v3719, %v4119
        %v4136 = vmul.f32 %v3720, %v4120
        %v4137 = vmul.f32 %v3721, %v4121
        %v4138 = vmul.f32 %v3722, %v4122
        %v4139 = vmul.f32 %v3723, %v4123
        %v4140 = vmul.f32 %v3724, %v4124
        %v4141 = vmul.f32 %v3725, %v4125
        %v4142 = vmul.f32 %v3726, %v4126
        %v4143 = vmul.f32 %v3727, %v4127
        %v4144 = vmul.f32 %v3728, %v4128
        %v4145 = vmul.f32 %v3729, %v4129
        %v4146 = vmul.f32 %v3730, %v4130
        %v4147 = vmul.f32 %v3731, %v4131
        %v4148 = vpack.c.bf16 %v4140, %v4132
        %v4149 = vpack.c.bf16 %v4141, %v4133
        %v4150 = vpack.c.bf16 %v4142, %v4134
        %v4151 = vpack.c.bf16 %v4143, %v4135
        %v4152 = vpack.c.bf16 %v4144, %v4136
        %v4153 = vpack.c.bf16 %v4145, %v4137
        %v4154 = vpack.c.bf16 %v4146, %v4138
        %v4155 = vpack.c.bf16 %v4147, %v4139
        %v4156 = vld [vmem:[%s996] sm:$0xff]
        %v4157 = vld [vmem:[%s996 + $0x8] sm:$0xff]
        %v4158 = vld [vmem:[%s996 + $0x10] sm:$0xff]
        %v4159 = vld [vmem:[%s996 + $0x18] sm:$0xff]
        %v4160 = vld [vmem:[%s996 + $0x20] sm:$0xff]
        %v4161 = vld [vmem:[%s996 + $0x28] sm:$0xff]
        %v4162 = vld [vmem:[%s996 + $0x30] sm:$0xff]
        %v4163 = vld [vmem:[%s996 + $0x38] sm:$0xff]
        %v4164 = vld [vmem:[%s996 + $0x40] sm:$0xff]
        %v4165 = vld [vmem:[%s996 + $0x48] sm:$0xff]
        %v4166 = vld [vmem:[%s996 + $0x50] sm:$0xff]
        %v4167 = vld [vmem:[%s996 + $0x58] sm:$0xff]
        %v4168 = vld [vmem:[%s996 + $0x60] sm:$0xff]
        %v4169 = vld [vmem:[%s996 + $0x68] sm:$0xff]
        %v4170 = vld [vmem:[%s996 + $0x70] sm:$0xff]
        %v4171 = vld [vmem:[%s996 + $0x78] sm:$0xff]
        %v4172 = vld [vmem:[%s996 + $0x80] sm:$0xff]
        %v4173 = vld [vmem:[%s996 + $0x88] sm:$0xff]
        %v4174 = vld [vmem:[%s996 + $0x90] sm:$0xff]
        %v4175 = vld [vmem:[%s996 + $0x98] sm:$0xff]
        %v4176 = vld [vmem:[%s996 + $0xa0] sm:$0xff]
        %v4177 = vld [vmem:[%s996 + $0xa8] sm:$0xff]
        %v4178 = vld [vmem:[%s996 + $0xb0] sm:$0xff]
        %v4179 = vld [vmem:[%s996 + $0xb8] sm:$0xff]
        %v4180 = vld [vmem:[%s996 + $0xc0] sm:$0xff]
        %v4181 = vld [vmem:[%s996 + $0xc8] sm:$0xff]
        %v4182 = vld [vmem:[%s996 + $0xd0] sm:$0xff]
        %v4183 = vld [vmem:[%s996 + $0xd8] sm:$0xff]
        %v4184 = vld [vmem:[%s996 + $0xe0] sm:$0xff]
        %v4185 = vld [vmem:[%s996 + $0xe8] sm:$0xff]
        %v4186 = vld [vmem:[%s996 + $0xf0] sm:$0xff]
        %v4187 = vld [vmem:[%s996 + $0xf8] sm:$0xff]
        %v4188 = vld [vmem:[%s996 + $0x100] sm:$0xff]
        %v4189 = vld [vmem:[%s996 + $0x108] sm:$0xff]
        %v4190 = vld [vmem:[%s996 + $0x110] sm:$0xff]
        %v4191 = vld [vmem:[%s996 + $0x118] sm:$0xff]
        %v4192 = vld [vmem:[%s996 + $0x120] sm:$0xff]
        %v4193 = vld [vmem:[%s996 + $0x128] sm:$0xff]
        %v4194 = vld [vmem:[%s996 + $0x130] sm:$0xff]
        %v4195 = vld [vmem:[%s996 + $0x138] sm:$0xff]
        %v4196 = vld [vmem:[%s996 + $0x140] sm:$0xff]
        %v4197 = vld [vmem:[%s996 + $0x148] sm:$0xff]
        %v4198 = vld [vmem:[%s996 + $0x150] sm:$0xff]
        %v4199 = vld [vmem:[%s996 + $0x158] sm:$0xff]
        %v4200 = vld [vmem:[%s996 + $0x160] sm:$0xff]
        %v4201 = vld [vmem:[%s996 + $0x168] sm:$0xff]
        %v4202 = vld [vmem:[%s996 + $0x170] sm:$0xff]
        %v4203 = vld [vmem:[%s996 + $0x178] sm:$0xff]
        %v4204 = vld [vmem:[%s996 + $0x180] sm:$0xff]
        %v4205 = vld [vmem:[%s996 + $0x188] sm:$0xff]
        %v4206 = vld [vmem:[%s996 + $0x190] sm:$0xff]
        %v4207 = vld [vmem:[%s996 + $0x198] sm:$0xff]
        %v4208 = vld [vmem:[%s996 + $0x1a0] sm:$0xff]
        %v4209 = vld [vmem:[%s996 + $0x1a8] sm:$0xff]
        %v4210 = vld [vmem:[%s996 + $0x1b0] sm:$0xff]
        %v4211 = vld [vmem:[%s996 + $0x1b8] sm:$0xff]
        %v4212 = vld [vmem:[%s996 + $0x1c0] sm:$0xff]
        %v4213 = vld [vmem:[%s996 + $0x1c8] sm:$0xff]
        %v4214 = vld [vmem:[%s996 + $0x1d0] sm:$0xff]
        %v4215 = vld [vmem:[%s996 + $0x1d8] sm:$0xff]
        %v4216 = vld [vmem:[%s996 + $0x1e0] sm:$0xff]
        %v4217 = vld [vmem:[%s996 + $0x1e8] sm:$0xff]
        %v4218 = vld [vmem:[%s996 + $0x1f0] sm:$0xff]
        %v4219 = vld [vmem:[%s996 + $0x1f8] sm:$0xff]
        %v4220 = vld [vmem:[%s996 + $0x200] sm:$0xff]
        %v4221 = vld [vmem:[%s996 + $0x208] sm:$0xff]
        %v4222 = vld [vmem:[%s996 + $0x210] sm:$0xff]
        %v4223 = vld [vmem:[%s996 + $0x218] sm:$0xff]
        %v4224 = vld [vmem:[%s996 + $0x220] sm:$0xff]
        %v4225 = vld [vmem:[%s996 + $0x228] sm:$0xff]
        %v4226 = vld [vmem:[%s996 + $0x230] sm:$0xff]
        %v4227 = vld [vmem:[%s996 + $0x238] sm:$0xff]
        %v4228 = vld [vmem:[%s996 + $0x240] sm:$0xff]
        %v4229 = vld [vmem:[%s996 + $0x248] sm:$0xff]
        %v4230 = vld [vmem:[%s996 + $0x250] sm:$0xff]
        %v4231 = vld [vmem:[%s996 + $0x258] sm:$0xff]
        %v4232 = vld [vmem:[%s996 + $0x260] sm:$0xff]
        %v4233 = vld [vmem:[%s996 + $0x268] sm:$0xff]
        %v4234 = vld [vmem:[%s996 + $0x270] sm:$0xff]
        %v4235 = vld [vmem:[%s996 + $0x278] sm:$0xff]
        %v4236 = vld [vmem:[%s996 + $0x280] sm:$0xff]
        %v4237 = vld [vmem:[%s996 + $0x288] sm:$0xff]
        %v4238 = vld [vmem:[%s996 + $0x290] sm:$0xff]
        %v4239 = vld [vmem:[%s996 + $0x298] sm:$0xff]
        %v4240 = vld [vmem:[%s996 + $0x2a0] sm:$0xff]
        %v4241 = vld [vmem:[%s996 + $0x2a8] sm:$0xff]
        %v4242 = vld [vmem:[%s996 + $0x2b0] sm:$0xff]
        %v4243 = vld [vmem:[%s996 + $0x2b8] sm:$0xff]
        %v4244 = vld [vmem:[%s996 + $0x2c0] sm:$0xff]
        %v4245 = vld [vmem:[%s996 + $0x2c8] sm:$0xff]
        %v4246 = vld [vmem:[%s996 + $0x2d0] sm:$0xff]
        %v4247 = vld [vmem:[%s996 + $0x2d8] sm:$0xff]
        %v4248 = vld [vmem:[%s996 + $0x2e0] sm:$0xff]
        %v4249 = vld [vmem:[%s996 + $0x2e8] sm:$0xff]
        %v4250 = vld [vmem:[%s996 + $0x2f0] sm:$0xff]
        %v4251 = vld [vmem:[%s996 + $0x2f8] sm:$0xff]
        %v4252 = vld [vmem:[%s996 + $0x300] sm:$0xff]
        %v4253 = vld [vmem:[%s996 + $0x308] sm:$0xff]
        %v4254 = vld [vmem:[%s996 + $0x310] sm:$0xff]
        %v4255 = vld [vmem:[%s996 + $0x318] sm:$0xff]
        %v4256 = vld [vmem:[%s996 + $0x320] sm:$0xff]
        %v4257 = vld [vmem:[%s996 + $0x328] sm:$0xff]
        %v4258 = vld [vmem:[%s996 + $0x330] sm:$0xff]
        %v4259 = vld [vmem:[%s996 + $0x338] sm:$0xff]
        %v4260 = vld [vmem:[%s996 + $0x340] sm:$0xff]
        %v4261 = vld [vmem:[%s996 + $0x348] sm:$0xff]
        %v4262 = vld [vmem:[%s996 + $0x350] sm:$0xff]
        %v4263 = vld [vmem:[%s996 + $0x358] sm:$0xff]
        %v4264 = vld [vmem:[%s996 + $0x360] sm:$0xff]
        %v4265 = vld [vmem:[%s996 + $0x368] sm:$0xff]
        %v4266 = vld [vmem:[%s996 + $0x370] sm:$0xff]
        %v4267 = vld [vmem:[%s996 + $0x378] sm:$0xff]
        %v4268 = vld [vmem:[%s996 + $0x380] sm:$0xff]
        %v4269 = vld [vmem:[%s996 + $0x388] sm:$0xff]
        %v4270 = vld [vmem:[%s996 + $0x390] sm:$0xff]
        %v4271 = vld [vmem:[%s996 + $0x398] sm:$0xff]
        %v4272 = vld [vmem:[%s996 + $0x3a0] sm:$0xff]
        %v4273 = vld [vmem:[%s996 + $0x3a8] sm:$0xff]
        %v4274 = vld [vmem:[%s996 + $0x3b0] sm:$0xff]
        %v4275 = vld [vmem:[%s996 + $0x3b8] sm:$0xff]
        %v4276 = vld [vmem:[%s996 + $0x3c0] sm:$0xff]
        %v4277 = vld [vmem:[%s996 + $0x3c8] sm:$0xff]
        %v4278 = vld [vmem:[%s996 + $0x3d0] sm:$0xff]
        %v4279 = vld [vmem:[%s996 + $0x3d8] sm:$0xff]
        %v4280 = vld [vmem:[%s996 + $0x3e0] sm:$0xff]
        %v4281 = vld [vmem:[%s996 + $0x3e8] sm:$0xff]
        %v4282 = vld [vmem:[%s996 + $0x3f0] sm:$0xff]
        %v4283 = vld [vmem:[%s996 + $0x3f8] sm:$0xff]
        %v4284 = vld [vmem:[%s1152] sm:$0x3]
        %v4286 = vlaneseq
        %v4287 = vshrl.u32 %v4286, 7
        %v4288 = vsub.s32 0, %v4287
        %v4289 = vrot.slane %v4284, %v4288
        %v4290 = vlaneseq
        %v4291 = vshrl.u32 %v4290, 7
        %v4292 = vsub.s32 1, %v4291
        %v4293 = vrot.slane %v4284, %v4292
        %v4424 = vunpack.c.l.b16 %v4156
        %v4425 = vunpack.c.h.b16 %v4156
        %v4426 = vunpack.c.l.b16 %v4157
        %v4427 = vunpack.c.h.b16 %v4157
        %v4428 = vunpack.c.l.b16 %v4158
        %v4429 = vunpack.c.h.b16 %v4158
        %v4430 = vunpack.c.l.b16 %v4159
        %v4431 = vunpack.c.h.b16 %v4159
        %v4432 = vunpack.c.l.b16 %v4160
        %v4433 = vunpack.c.h.b16 %v4160
        %v4434 = vunpack.c.l.b16 %v4161
        %v4435 = vunpack.c.h.b16 %v4161
        %v4436 = vunpack.c.l.b16 %v4162
        %v4437 = vunpack.c.h.b16 %v4162
        %v4438 = vunpack.c.l.b16 %v4163
        %v4439 = vunpack.c.h.b16 %v4163
        %v4440 = vunpack.c.l.b16 %v4164
        %v4441 = vunpack.c.h.b16 %v4164
        %v4442 = vunpack.c.l.b16 %v4165
        %v4443 = vunpack.c.h.b16 %v4165
        %v4444 = vunpack.c.l.b16 %v4166
        %v4445 = vunpack.c.h.b16 %v4166
        %v4446 = vunpack.c.l.b16 %v4167
        %v4447 = vunpack.c.h.b16 %v4167
        %v4448 = vunpack.c.l.b16 %v4168
        %v4449 = vunpack.c.h.b16 %v4168
        %v4450 = vunpack.c.l.b16 %v4169
        %v4451 = vunpack.c.h.b16 %v4169
        %v4452 = vunpack.c.l.b16 %v4170
        %v4453 = vunpack.c.h.b16 %v4170
        %v4454 = vunpack.c.l.b16 %v4171
        %v4455 = vunpack.c.h.b16 %v4171
        %v4456 = vunpack.c.l.b16 %v4172
        %v4457 = vunpack.c.h.b16 %v4172
        %v4458 = vunpack.c.l.b16 %v4173
        %v4459 = vunpack.c.h.b16 %v4173
        %v4460 = vunpack.c.l.b16 %v4174
        %v4461 = vunpack.c.h.b16 %v4174
        %v4462 = vunpack.c.l.b16 %v4175
        %v4463 = vunpack.c.h.b16 %v4175
        %v4464 = vunpack.c.l.b16 %v4176
        %v4465 = vunpack.c.h.b16 %v4176
        %v4466 = vunpack.c.l.b16 %v4177
        %v4467 = vunpack.c.h.b16 %v4177
        %v4468 = vunpack.c.l.b16 %v4178
        %v4469 = vunpack.c.h.b16 %v4178
        %v4470 = vunpack.c.l.b16 %v4179
        %v4471 = vunpack.c.h.b16 %v4179
        %v4472 = vunpack.c.l.b16 %v4180
        %v4473 = vunpack.c.h.b16 %v4180
        %v4474 = vunpack.c.l.b16 %v4181
        %v4475 = vunpack.c.h.b16 %v4181
        %v4476 = vunpack.c.l.b16 %v4182
        %v4477 = vunpack.c.h.b16 %v4182
        %v4478 = vunpack.c.l.b16 %v4183
        %v4479 = vunpack.c.h.b16 %v4183
        %v4480 = vunpack.c.l.b16 %v4184
        %v4481 = vunpack.c.h.b16 %v4184
        %v4482 = vunpack.c.l.b16 %v4185
        %v4483 = vunpack.c.h.b16 %v4185
        %v4484 = vunpack.c.l.b16 %v4186
        %v4485 = vunpack.c.h.b16 %v4186
        %v4486 = vunpack.c.l.b16 %v4187
        %v4487 = vunpack.c.h.b16 %v4187
        %v4488 = vunpack.c.l.b16 %v4188
        %v4489 = vunpack.c.h.b16 %v4188
        %v4490 = vunpack.c.l.b16 %v4189
        %v4491 = vunpack.c.h.b16 %v4189
        %v4492 = vunpack.c.l.b16 %v4190
        %v4493 = vunpack.c.h.b16 %v4190
        %v4494 = vunpack.c.l.b16 %v4191
        %v4495 = vunpack.c.h.b16 %v4191
        %v4496 = vunpack.c.l.b16 %v4192
        %v4497 = vunpack.c.h.b16 %v4192
        %v4498 = vunpack.c.l.b16 %v4193
        %v4499 = vunpack.c.h.b16 %v4193
        %v4500 = vunpack.c.l.b16 %v4194
        %v4501 = vunpack.c.h.b16 %v4194
        %v4502 = vunpack.c.l.b16 %v4195
        %v4503 = vunpack.c.h.b16 %v4195
        %v4504 = vunpack.c.l.b16 %v4196
        %v4505 = vunpack.c.h.b16 %v4196
        %v4506 = vunpack.c.l.b16 %v4197
        %v4507 = vunpack.c.h.b16 %v4197
        %v4508 = vunpack.c.l.b16 %v4198
        %v4509 = vunpack.c.h.b16 %v4198
        %v4510 = vunpack.c.l.b16 %v4199
        %v4511 = vunpack.c.h.b16 %v4199
        %v4512 = vunpack.c.l.b16 %v4200
        %v4513 = vunpack.c.h.b16 %v4200
        %v4514 = vunpack.c.l.b16 %v4201
        %v4515 = vunpack.c.h.b16 %v4201
        %v4516 = vunpack.c.l.b16 %v4202
        %v4517 = vunpack.c.h.b16 %v4202
        %v4518 = vunpack.c.l.b16 %v4203
        %v4519 = vunpack.c.h.b16 %v4203
        %v4520 = vunpack.c.l.b16 %v4204
        %v4521 = vunpack.c.h.b16 %v4204
        %v4522 = vunpack.c.l.b16 %v4205
        %v4523 = vunpack.c.h.b16 %v4205
        %v4524 = vunpack.c.l.b16 %v4206
        %v4525 = vunpack.c.h.b16 %v4206
        %v4526 = vunpack.c.l.b16 %v4207
        %v4527 = vunpack.c.h.b16 %v4207
        %v4528 = vunpack.c.l.b16 %v4208
        %v4529 = vunpack.c.h.b16 %v4208
        %v4530 = vunpack.c.l.b16 %v4209
        %v4531 = vunpack.c.h.b16 %v4209
        %v4532 = vunpack.c.l.b16 %v4210
        %v4533 = vunpack.c.h.b16 %v4210
        %v4534 = vunpack.c.l.b16 %v4211
        %v4535 = vunpack.c.h.b16 %v4211
        %v4536 = vunpack.c.l.b16 %v4212
        %v4537 = vunpack.c.h.b16 %v4212
        %v4538 = vunpack.c.l.b16 %v4213
        %v4539 = vunpack.c.h.b16 %v4213
        %v4540 = vunpack.c.l.b16 %v4214
        %v4541 = vunpack.c.h.b16 %v4214
        %v4542 = vunpack.c.l.b16 %v4215
        %v4543 = vunpack.c.h.b16 %v4215
        %v4544 = vunpack.c.l.b16 %v4216
        %v4545 = vunpack.c.h.b16 %v4216
        %v4546 = vunpack.c.l.b16 %v4217
        %v4547 = vunpack.c.h.b16 %v4217
        %v4548 = vunpack.c.l.b16 %v4218
        %v4549 = vunpack.c.h.b16 %v4218
        %v4550 = vunpack.c.l.b16 %v4219
        %v4551 = vunpack.c.h.b16 %v4219
        %v4552 = vunpack.c.l.b16 %v4220
        %v4553 = vunpack.c.h.b16 %v4220
        %v4554 = vunpack.c.l.b16 %v4221
        %v4555 = vunpack.c.h.b16 %v4221
        %v4556 = vunpack.c.l.b16 %v4222
        %v4557 = vunpack.c.h.b16 %v4222
        %v4558 = vunpack.c.l.b16 %v4223
        %v4559 = vunpack.c.h.b16 %v4223
        %v4560 = vunpack.c.l.b16 %v4224
        %v4561 = vunpack.c.h.b16 %v4224
        %v4562 = vunpack.c.l.b16 %v4225
        %v4563 = vunpack.c.h.b16 %v4225
        %v4564 = vunpack.c.l.b16 %v4226
        %v4565 = vunpack.c.h.b16 %v4226
        %v4566 = vunpack.c.l.b16 %v4227
        %v4567 = vunpack.c.h.b16 %v4227
        %v4568 = vunpack.c.l.b16 %v4228
        %v4569 = vunpack.c.h.b16 %v4228
        %v4570 = vunpack.c.l.b16 %v4229
        %v4571 = vunpack.c.h.b16 %v4229
        %v4572 = vunpack.c.l.b16 %v4230
        %v4573 = vunpack.c.h.b16 %v4230
        %v4574 = vunpack.c.l.b16 %v4231
        %v4575 = vunpack.c.h.b16 %v4231
        %v4576 = vunpack.c.l.b16 %v4232
        %v4577 = vunpack.c.h.b16 %v4232
        %v4578 = vunpack.c.l.b16 %v4233
        %v4579 = vunpack.c.h.b16 %v4233
        %v4580 = vunpack.c.l.b16 %v4234
        %v4581 = vunpack.c.h.b16 %v4234
        %v4582 = vunpack.c.l.b16 %v4235
        %v4583 = vunpack.c.h.b16 %v4235
        %v4584 = vunpack.c.l.b16 %v4236
        %v4585 = vunpack.c.h.b16 %v4236
        %v4586 = vunpack.c.l.b16 %v4237
        %v4587 = vunpack.c.h.b16 %v4237
        %v4588 = vunpack.c.l.b16 %v4238
        %v4589 = vunpack.c.h.b16 %v4238
        %v4590 = vunpack.c.l.b16 %v4239
        %v4591 = vunpack.c.h.b16 %v4239
        %v4592 = vunpack.c.l.b16 %v4240
        %v4593 = vunpack.c.h.b16 %v4240
        %v4594 = vunpack.c.l.b16 %v4241
        %v4595 = vunpack.c.h.b16 %v4241
        %v4596 = vunpack.c.l.b16 %v4242
        %v4597 = vunpack.c.h.b16 %v4242
        %v4598 = vunpack.c.l.b16 %v4243
        %v4599 = vunpack.c.h.b16 %v4243
        %v4600 = vunpack.c.l.b16 %v4244
        %v4601 = vunpack.c.h.b16 %v4244
        %v4602 = vunpack.c.l.b16 %v4245
        %v4603 = vunpack.c.h.b16 %v4245
        %v4604 = vunpack.c.l.b16 %v4246
        %v4605 = vunpack.c.h.b16 %v4246
        %v4606 = vunpack.c.l.b16 %v4247
        %v4607 = vunpack.c.h.b16 %v4247
        %v4608 = vunpack.c.l.b16 %v4248
        %v4609 = vunpack.c.h.b16 %v4248
        %v4610 = vunpack.c.l.b16 %v4249
        %v4611 = vunpack.c.h.b16 %v4249
        %v4612 = vunpack.c.l.b16 %v4250
        %v4613 = vunpack.c.h.b16 %v4250
        %v4614 = vunpack.c.l.b16 %v4251
        %v4615 = vunpack.c.h.b16 %v4251
        %v4616 = vunpack.c.l.b16 %v4252
        %v4617 = vunpack.c.h.b16 %v4252
        %v4618 = vunpack.c.l.b16 %v4253
        %v4619 = vunpack.c.h.b16 %v4253
        %v4620 = vunpack.c.l.b16 %v4254
        %v4621 = vunpack.c.h.b16 %v4254
        %v4622 = vunpack.c.l.b16 %v4255
        %v4623 = vunpack.c.h.b16 %v4255
        %v4624 = vunpack.c.l.b16 %v4256
        %v4625 = vunpack.c.h.b16 %v4256
        %v4626 = vunpack.c.l.b16 %v4257
        %v4627 = vunpack.c.h.b16 %v4257
        %v4628 = vunpack.c.l.b16 %v4258
        %v4629 = vunpack.c.h.b16 %v4258
        %v4630 = vunpack.c.l.b16 %v4259
        %v4631 = vunpack.c.h.b16 %v4259
        %v4632 = vunpack.c.l.b16 %v4260
        %v4633 = vunpack.c.h.b16 %v4260
        %v4634 = vunpack.c.l.b16 %v4261
        %v4635 = vunpack.c.h.b16 %v4261
        %v4636 = vunpack.c.l.b16 %v4262
        %v4637 = vunpack.c.h.b16 %v4262
        %v4638 = vunpack.c.l.b16 %v4263
        %v4639 = vunpack.c.h.b16 %v4263
        %v4640 = vunpack.c.l.b16 %v4264
        %v4641 = vunpack.c.h.b16 %v4264
        %v4642 = vunpack.c.l.b16 %v4265
        %v4643 = vunpack.c.h.b16 %v4265
        %v4644 = vunpack.c.l.b16 %v4266
        %v4645 = vunpack.c.h.b16 %v4266
        %v4646 = vunpack.c.l.b16 %v4267
        %v4647 = vunpack.c.h.b16 %v4267
        %v4648 = vunpack.c.l.b16 %v4268
        %v4649 = vunpack.c.h.b16 %v4268
        %v4650 = vunpack.c.l.b16 %v4269
        %v4651 = vunpack.c.h.b16 %v4269
        %v4652 = vunpack.c.l.b16 %v4270
        %v4653 = vunpack.c.h.b16 %v4270
        %v4654 = vunpack.c.l.b16 %v4271
        %v4655 = vunpack.c.h.b16 %v4271
        %v4656 = vunpack.c.l.b16 %v4272
        %v4657 = vunpack.c.h.b16 %v4272
        %v4658 = vunpack.c.l.b16 %v4273
        %v4659 = vunpack.c.h.b16 %v4273
        %v4660 = vunpack.c.l.b16 %v4274
        %v4661 = vunpack.c.h.b16 %v4274
        %v4662 = vunpack.c.l.b16 %v4275
        %v4663 = vunpack.c.h.b16 %v4275
        %v4664 = vunpack.c.l.b16 %v4276
        %v4665 = vunpack.c.h.b16 %v4276
        %v4666 = vunpack.c.l.b16 %v4277
        %v4667 = vunpack.c.h.b16 %v4277
        %v4668 = vunpack.c.l.b16 %v4278
        %v4669 = vunpack.c.h.b16 %v4278
        %v4670 = vunpack.c.l.b16 %v4279
        %v4671 = vunpack.c.h.b16 %v4279
        %v4672 = vunpack.c.l.b16 %v4280
        %v4673 = vunpack.c.h.b16 %v4280
        %v4674 = vunpack.c.l.b16 %v4281
        %v4675 = vunpack.c.h.b16 %v4281
        %v4676 = vunpack.c.l.b16 %v4282
        %v4677 = vunpack.c.h.b16 %v4282
        %v4678 = vunpack.c.l.b16 %v4283
        %v4679 = vunpack.c.h.b16 %v4283
        %v4680 = vpack.c.b16 %v4426, %v4424
        %v4681 = vpack.c.b16 %v4427, %v4425
        %v4682 = vpack.c.b16 %v4430, %v4428
        %v4683 = vpack.c.b16 %v4431, %v4429
        %v4684 = vpack.c.b16 %v4434, %v4432
        %v4685 = vpack.c.b16 %v4435, %v4433
        %v4686 = vpack.c.b16 %v4438, %v4436
        %v4687 = vpack.c.b16 %v4439, %v4437
        %v4688 = vpack.c.b16 %v4442, %v4440
        %v4689 = vpack.c.b16 %v4443, %v4441
        %v4690 = vpack.c.b16 %v4446, %v4444
        %v4691 = vpack.c.b16 %v4447, %v4445
        %v4692 = vpack.c.b16 %v4450, %v4448
        %v4693 = vpack.c.b16 %v4451, %v4449
        %v4694 = vpack.c.b16 %v4454, %v4452
        %v4695 = vpack.c.b16 %v4455, %v4453
        %v4696 = vpack.c.b16 %v4458, %v4456
        %v4697 = vpack.c.b16 %v4459, %v4457
        %v4698 = vpack.c.b16 %v4462, %v4460
        %v4699 = vpack.c.b16 %v4463, %v4461
        %v4700 = vpack.c.b16 %v4466, %v4464
        %v4701 = vpack.c.b16 %v4467, %v4465
        %v4702 = vpack.c.b16 %v4470, %v4468
        %v4703 = vpack.c.b16 %v4471, %v4469
        %v4704 = vpack.c.b16 %v4474, %v4472
        %v4705 = vpack.c.b16 %v4475, %v4473
        %v4706 = vpack.c.b16 %v4478, %v4476
        %v4707 = vpack.c.b16 %v4479, %v4477
        %v4708 = vpack.c.b16 %v4482, %v4480
        %v4709 = vpack.c.b16 %v4483, %v4481
        %v4710 = vpack.c.b16 %v4486, %v4484
        %v4711 = vpack.c.b16 %v4487, %v4485
        %v4712 = vpack.c.b16 %v4490, %v4488
        %v4713 = vpack.c.b16 %v4491, %v4489
        %v4714 = vpack.c.b16 %v4494, %v4492
        %v4715 = vpack.c.b16 %v4495, %v4493
        %v4716 = vpack.c.b16 %v4498, %v4496
        %v4717 = vpack.c.b16 %v4499, %v4497
        %v4718 = vpack.c.b16 %v4502, %v4500
        %v4719 = vpack.c.b16 %v4503, %v4501
        %v4720 = vpack.c.b16 %v4506, %v4504
        %v4721 = vpack.c.b16 %v4507, %v4505
        %v4722 = vpack.c.b16 %v4510, %v4508
        %v4723 = vpack.c.b16 %v4511, %v4509
        %v4724 = vpack.c.b16 %v4514, %v4512
        %v4725 = vpack.c.b16 %v4515, %v4513
        %v4726 = vpack.c.b16 %v4518, %v4516
        %v4727 = vpack.c.b16 %v4519, %v4517
        %v4728 = vpack.c.b16 %v4522, %v4520
        %v4729 = vpack.c.b16 %v4523, %v4521
        %v4730 = vpack.c.b16 %v4526, %v4524
        %v4731 = vpack.c.b16 %v4527, %v4525
        %v4732 = vpack.c.b16 %v4530, %v4528
        %v4733 = vpack.c.b16 %v4531, %v4529
        %v4734 = vpack.c.b16 %v4534, %v4532
        %v4735 = vpack.c.b16 %v4535, %v4533
        %v4736 = vpack.c.b16 %v4538, %v4536
        %v4737 = vpack.c.b16 %v4539, %v4537
        %v4738 = vpack.c.b16 %v4542, %v4540
        %v4739 = vpack.c.b16 %v4543, %v4541
        %v4740 = vpack.c.b16 %v4546, %v4544
        %v4741 = vpack.c.b16 %v4547, %v4545
        %v4742 = vpack.c.b16 %v4550, %v4548
        %v4743 = vpack.c.b16 %v4551, %v4549
        %v4744 = vpack.c.b16 %v4554, %v4552
        %v4745 = vpack.c.b16 %v4555, %v4553
        %v4746 = vpack.c.b16 %v4558, %v4556
        %v4747 = vpack.c.b16 %v4559, %v4557
        %v4748 = vpack.c.b16 %v4562, %v4560
        %v4749 = vpack.c.b16 %v4563, %v4561
        %v4750 = vpack.c.b16 %v4566, %v4564
        %v4751 = vpack.c.b16 %v4567, %v4565
        %v4752 = vpack.c.b16 %v4570, %v4568
        %v4753 = vpack.c.b16 %v4571, %v4569
        %v4754 = vpack.c.b16 %v4574, %v4572
        %v4755 = vpack.c.b16 %v4575, %v4573
        %v4756 = vpack.c.b16 %v4578, %v4576
        %v4757 = vpack.c.b16 %v4579, %v4577
        %v4758 = vpack.c.b16 %v4582, %v4580
        %v4759 = vpack.c.b16 %v4583, %v4581
        %v4760 = vpack.c.b16 %v4586, %v4584
        %v4761 = vpack.c.b16 %v4587, %v4585
        %v4762 = vpack.c.b16 %v4590, %v4588
        %v4763 = vpack.c.b16 %v4591, %v4589
        %v4764 = vpack.c.b16 %v4594, %v4592
        %v4765 = vpack.c.b16 %v4595, %v4593
        %v4766 = vpack.c.b16 %v4598, %v4596
        %v4767 = vpack.c.b16 %v4599, %v4597
        %v4768 = vpack.c.b16 %v4602, %v4600
        %v4769 = vpack.c.b16 %v4603, %v4601
        %v4770 = vpack.c.b16 %v4606, %v4604
        %v4771 = vpack.c.b16 %v4607, %v4605
        %v4772 = vpack.c.b16 %v4610, %v4608
        %v4773 = vpack.c.b16 %v4611, %v4609
        %v4774 = vpack.c.b16 %v4614, %v4612
        %v4775 = vpack.c.b16 %v4615, %v4613
        %v4776 = vpack.c.b16 %v4618, %v4616
        %v4777 = vpack.c.b16 %v4619, %v4617
        %v4778 = vpack.c.b16 %v4622, %v4620
        %v4779 = vpack.c.b16 %v4623, %v4621
        %v4780 = vpack.c.b16 %v4626, %v4624
        %v4781 = vpack.c.b16 %v4627, %v4625
        %v4782 = vpack.c.b16 %v4630, %v4628
        %v4783 = vpack.c.b16 %v4631, %v4629
        %v4784 = vpack.c.b16 %v4634, %v4632
        %v4785 = vpack.c.b16 %v4635, %v4633
        %v4786 = vpack.c.b16 %v4638, %v4636
        %v4787 = vpack.c.b16 %v4639, %v4637
        %v4788 = vpack.c.b16 %v4642, %v4640
        %v4789 = vpack.c.b16 %v4643, %v4641
        %v4790 = vpack.c.b16 %v4646, %v4644
        %v4791 = vpack.c.b16 %v4647, %v4645
        %v4792 = vpack.c.b16 %v4650, %v4648
        %v4793 = vpack.c.b16 %v4651, %v4649
        %v4794 = vpack.c.b16 %v4654, %v4652
        %v4795 = vpack.c.b16 %v4655, %v4653
        %v4796 = vpack.c.b16 %v4658, %v4656
        %v4797 = vpack.c.b16 %v4659, %v4657
        %v4798 = vpack.c.b16 %v4662, %v4660
        %v4799 = vpack.c.b16 %v4663, %v4661
        %v4800 = vpack.c.b16 %v4666, %v4664
        %v4801 = vpack.c.b16 %v4667, %v4665
        %v4802 = vpack.c.b16 %v4670, %v4668
        %v4803 = vpack.c.b16 %v4671, %v4669
        %v4804 = vpack.c.b16 %v4674, %v4672
        %v4805 = vpack.c.b16 %v4675, %v4673
        %v4806 = vpack.c.b16 %v4678, %v4676
        %v4807 = vpack.c.b16 %v4679, %v4677
        %4936 = vmatprep.subr.bf16.mxu0 %v4695
        %4937 = vmatpush1.bf16.msra.mxu0 %v4694
        %4938 = vmatprep.subr.bf16.mxu0 %v4693
        %4939 = vmatpush1.bf16.msra.mxu0 %v4692
        %4940 = vmatprep.subr.bf16.mxu0 %v4691
        %4941 = vmatpush1.bf16.msra.mxu0 %v4690
        %4942 = vmatprep.subr.bf16.mxu0 %v4689
        %4943 = vmatpush1.bf16.msra.mxu0 %v4688
        %4944 = vmatprep.subr.bf16.mxu0 %v4687
        %4945 = vmatpush1.bf16.msra.mxu0 %v4686
        %4946 = vmatprep.subr.bf16.mxu0 %v4685
        %4947 = vmatpush1.bf16.msra.mxu0 %v4684
        %4948 = vmatprep.subr.bf16.mxu0 %v4683
        %4949 = vmatpush1.bf16.msra.mxu0 %v4682
        %4950 = vmatprep.subr.bf16.mxu0 %v4681
        %4951 = vmatpush1.bf16.msra.mxu0 %v4680
        %4952 = vmatprep.subr.bf16.mxu0 %v4711
        %4953 = vmatpush2.bf16.msra.mxu0 %v4710
        %4954 = vmatprep.subr.bf16.mxu0 %v4709
        %4955 = vmatpush2.bf16.msra.mxu0 %v4708
        %4956 = vmatprep.subr.bf16.mxu0 %v4707
        %4957 = vmatpush2.bf16.msra.mxu0 %v4706
        %4958 = vmatprep.subr.bf16.mxu0 %v4705
        %4959 = vmatpush2.bf16.msra.mxu0 %v4704
        %4960 = vmatprep.subr.bf16.mxu0 %v4703
        %4961 = vmatpush2.bf16.msra.mxu0 %v4702
        %4962 = vmatprep.subr.bf16.mxu0 %v4701
        %4963 = vmatpush2.bf16.msra.mxu0 %v4700
        %4964 = vmatprep.subr.bf16.mxu0 %v4699
        %4965 = vmatpush2.bf16.msra.mxu0 %v4698
        %4966 = vmatprep.subr.bf16.mxu0 %v4697
        %4967 = vmatpush2.bf16.msra.mxu0 %v4696
        %4968 = vmatprep.mubr.bf16.mxu0 %v4149
        %4969 = vmatmul.mubr.bf16.gmra.mxu0 %v4148
        %v4970 = vpop.f32.mrf.mxu0
        %v4971 = vadd.f32 %v4289, %v4970
        %v4972 = vpop.f32.mrf.mxu0
        %v4973 = vadd.f32 %v4293, %v4972
        %v4974 = vpop.f32.mrf.mxu0
        %v4975 = vadd.f32 %v4289, %v4974
        %v4976 = vpop.f32.mrf.mxu0
        %v4977 = vadd.f32 %v4293, %v4976
        %4978 = vdwg.mxu0
        %4979 = vmatprep.subr.bf16.mxu0 %v4727
        %4980 = vmatpush1.bf16.msra.mxu0 %v4726
        %4981 = vmatprep.subr.bf16.mxu0 %v4725
        %4982 = vmatpush1.bf16.msra.mxu0 %v4724
        %4983 = vmatprep.subr.bf16.mxu0 %v4723
        %4984 = vmatpush1.bf16.msra.mxu0 %v4722
        %4985 = vmatprep.subr.bf16.mxu0 %v4721
        %4986 = vmatpush1.bf16.msra.mxu0 %v4720
        %4987 = vmatprep.subr.bf16.mxu0 %v4719
        %4988 = vmatpush1.bf16.msra.mxu0 %v4718
        %4989 = vmatprep.subr.bf16.mxu0 %v4717
        %4990 = vmatpush1.bf16.msra.mxu0 %v4716
        %4991 = vmatprep.subr.bf16.mxu0 %v4715
        %4992 = vmatpush1.bf16.msra.mxu0 %v4714
        %4993 = vmatprep.subr.bf16.mxu0 %v4713
        %4994 = vmatpush1.bf16.msra.mxu0 %v4712
        %4995 = vmatprep.subr.bf16.mxu0 %v4743
        %4996 = vmatpush2.bf16.msra.mxu0 %v4742
        %4997 = vmatprep.subr.bf16.mxu0 %v4741
        %4998 = vmatpush2.bf16.msra.mxu0 %v4740
        %4999 = vmatprep.subr.bf16.mxu0 %v4739
        %5000 = vmatpush2.bf16.msra.mxu0 %v4738
        %5001 = vmatprep.subr.bf16.mxu0 %v4737
        %5002 = vmatpush2.bf16.msra.mxu0 %v4736
        %5003 = vmatprep.subr.bf16.mxu0 %v4735
        %5004 = vmatpush2.bf16.msra.mxu0 %v4734
        %5005 = vmatprep.subr.bf16.mxu0 %v4733
        %5006 = vmatpush2.bf16.msra.mxu0 %v4732
        %5007 = vmatprep.subr.bf16.mxu0 %v4731
        %5008 = vmatpush2.bf16.msra.mxu0 %v4730
        %5009 = vmatprep.subr.bf16.mxu0 %v4729
        %5010 = vmatpush2.bf16.msra.mxu0 %v4728
        %5011 = vmatprep.mubr.bf16.mxu0 %v4151
        %5012 = vmatmul.mubr.bf16.gmra.mxu0 %v4150
        %v5013 = vpop.f32.mrf.mxu0
        %v5014 = vadd.f32 %v4971, %v5013
        %v5015 = vpop.f32.mrf.mxu0
        %v5016 = vadd.f32 %v4973, %v5015
        %v5017 = vpop.f32.mrf.mxu0
        %v5018 = vadd.f32 %v4975, %v5017
        %v5019 = vpop.f32.mrf.mxu0
        %v5020 = vadd.f32 %v4977, %v5019
        %5021 = vdwg.mxu0
        %5022 = vmatprep.subr.bf16.mxu0 %v4759
        %5023 = vmatpush1.bf16.msra.mxu0 %v4758
        %5024 = vmatprep.subr.bf16.mxu0 %v4757
        %5025 = vmatpush1.bf16.msra.mxu0 %v4756
        %5026 = vmatprep.subr.bf16.mxu0 %v4755
        %5027 = vmatpush1.bf16.msra.mxu0 %v4754
        %5028 = vmatprep.subr.bf16.mxu0 %v4753
        %5029 = vmatpush1.bf16.msra.mxu0 %v4752
        %5030 = vmatprep.subr.bf16.mxu0 %v4751
        %5031 = vmatpush1.bf16.msra.mxu0 %v4750
        %5032 = vmatprep.subr.bf16.mxu0 %v4749
        %5033 = vmatpush1.bf16.msra.mxu0 %v4748
        %5034 = vmatprep.subr.bf16.mxu0 %v4747
        %5035 = vmatpush1.bf16.msra.mxu0 %v4746
        %5036 = vmatprep.subr.bf16.mxu0 %v4745
        %5037 = vmatpush1.bf16.msra.mxu0 %v4744
        %5038 = vmatprep.subr.bf16.mxu0 %v4775
        %5039 = vmatpush2.bf16.msra.mxu0 %v4774
        %5040 = vmatprep.subr.bf16.mxu0 %v4773
        %5041 = vmatpush2.bf16.msra.mxu0 %v4772
        %5042 = vmatprep.subr.bf16.mxu0 %v4771
        %5043 = vmatpush2.bf16.msra.mxu0 %v4770
        %5044 = vmatprep.subr.bf16.mxu0 %v4769
        %5045 = vmatpush2.bf16.msra.mxu0 %v4768
        %5046 = vmatprep.subr.bf16.mxu0 %v4767
        %5047 = vmatpush2.bf16.msra.mxu0 %v4766
        %5048 = vmatprep.subr.bf16.mxu0 %v4765
        %5049 = vmatpush2.bf16.msra.mxu0 %v4764
        %5050 = vmatprep.subr.bf16.mxu0 %v4763
        %5051 = vmatpush2.bf16.msra.mxu0 %v4762
        %5052 = vmatprep.subr.bf16.mxu0 %v4761
        %5053 = vmatpush2.bf16.msra.mxu0 %v4760
        %5054 = vmatprep.mubr.bf16.mxu0 %v4153
        %5055 = vmatmul.mubr.bf16.gmra.mxu0 %v4152
        %v5056 = vpop.f32.mrf.mxu0
        %v5057 = vadd.f32 %v5014, %v5056
        %v5058 = vpop.f32.mrf.mxu0
        %v5059 = vadd.f32 %v5016, %v5058
        %v5060 = vpop.f32.mrf.mxu0
        %v5061 = vadd.f32 %v5018, %v5060
        %v5062 = vpop.f32.mrf.mxu0
        %v5063 = vadd.f32 %v5020, %v5062
        %5064 = vdwg.mxu0
        %5065 = vmatprep.subr.bf16.mxu0 %v4791
        %5066 = vmatpush1.bf16.msra.mxu0 %v4790
        %5067 = vmatprep.subr.bf16.mxu0 %v4789
        %5068 = vmatpush1.bf16.msra.mxu0 %v4788
        %5069 = vmatprep.subr.bf16.mxu0 %v4787
        %5070 = vmatpush1.bf16.msra.mxu0 %v4786
        %5071 = vmatprep.subr.bf16.mxu0 %v4785
        %5072 = vmatpush1.bf16.msra.mxu0 %v4784
        %5073 = vmatprep.subr.bf16.mxu0 %v4783
        %5074 = vmatpush1.bf16.msra.mxu0 %v4782
        %5075 = vmatprep.subr.bf16.mxu0 %v4781
        %5076 = vmatpush1.bf16.msra.mxu0 %v4780
        %5077 = vmatprep.subr.bf16.mxu0 %v4779
        %5078 = vmatpush1.bf16.msra.mxu0 %v4778
        %5079 = vmatprep.subr.bf16.mxu0 %v4777
        %5080 = vmatpush1.bf16.msra.mxu0 %v4776
        %5081 = vmatprep.subr.bf16.mxu0 %v4807
        %5082 = vmatpush2.bf16.msra.mxu0 %v4806
        %5083 = vmatprep.subr.bf16.mxu0 %v4805
        %5084 = vmatpush2.bf16.msra.mxu0 %v4804
        %5085 = vmatprep.subr.bf16.mxu0 %v4803
        %5086 = vmatpush2.bf16.msra.mxu0 %v4802
        %5087 = vmatprep.subr.bf16.mxu0 %v4801
        %5088 = vmatpush2.bf16.msra.mxu0 %v4800
        %5089 = vmatprep.subr.bf16.mxu0 %v4799
        %5090 = vmatpush2.bf16.msra.mxu0 %v4798
        %5091 = vmatprep.subr.bf16.mxu0 %v4797
        %5092 = vmatpush2.bf16.msra.mxu0 %v4796
        %5093 = vmatprep.subr.bf16.mxu0 %v4795
        %5094 = vmatpush2.bf16.msra.mxu0 %v4794
        %5095 = vmatprep.subr.bf16.mxu0 %v4793
        %5096 = vmatpush2.bf16.msra.mxu0 %v4792
        %5097 = vmatprep.mubr.bf16.mxu0 %v4155
        %5098 = vmatmul.mubr.bf16.gmra.mxu0 %v4154
        %v5099 = vpop.f32.mrf.mxu0
        %v5100 = vadd.f32 %v5057, %v5099
        %v5101 = vpop.f32.mrf.mxu0
        %v5102 = vadd.f32 %v5059, %v5101
        %v5103 = vpop.f32.mrf.mxu0
        %v5104 = vadd.f32 %v5061, %v5103
        %v5105 = vpop.f32.mrf.mxu0
        %v5106 = vadd.f32 %v5063, %v5105
        %5107 = vdwg.mxu0
        %v5108 = vadd.f32 %v5100, %v2728
        %v5109 = vadd.f32 %v5102, %v2729
        %v5110 = vadd.f32 %v5104, %v2730
        %v5111 = vadd.f32 %v5106, %v2731
        %v5112 = vld [vmem:[%s1005] sm:$0x3]
        %v5113 = vld [vmem:[%s1156] sm:$0x3]
        %v5114 = vadd.f32 %v5108, %v5109
        %5115 = vadd.xlane.f32.xlu0 %v5114
        %v5116 = vpop.xlane.xlu0 %5115
        %v5117 = vadd.f32 %v5110, %v5111
        %5118 = vadd.xlane.f32.xlu0 %v5117
        %v5119 = vpop.xlane.xlu0 %5118
        %v5120 = vmul.f32 %v5116, %v2675
        %v5121 = vmul.f32 %v5119, %v2675
        %v5122 = vsub.f32 %v5108, %v5120
        %v5123 = vsub.f32 %v5109, %v5120
        %v5124 = vsub.f32 %v5110, %v5121
        %v5125 = vsub.f32 %v5111, %v5121
        %v5126 = vmul.f32 %v5122, %v5122
        %v5127 = vmul.f32 %v5123, %v5123
        %v5128 = vmul.f32 %v5124, %v5124
        %v5129 = vmul.f32 %v5125, %v5125
        %v5130 = vadd.f32 %v5126, %v5127
        %5131 = vadd.xlane.f32.xlu0 %v5130
        %v5132 = vpop.xlane.xlu0 %5131
        %v5133 = vadd.f32 %v5128, %v5129
        %5134 = vadd.xlane.f32.xlu0 %v5133
        %v5135 = vpop.xlane.xlu0 %5134
        %v5136 = vmul.f32 %v5132, %v2675
        %v5137 = vmul.f32 %v5135, %v2675
        %v5138 = vadd.f32 %v5136, 1e-12
        %v5139 = vadd.f32 %v5137, 1e-12
        %v5140 = vrsqrt.pop %v5138
        %v5141 = vrsqrt.pop %v5139
        %v5142 = vmul.f32 %v5122, %v5140
        %v5143 = vmul.f32 %v5123, %v5140
        %v5144 = vmul.f32 %v5124, %v5141
        %v5145 = vmul.f32 %v5125, %v5141
        %v5147 = vlaneseq
        %v5148 = vshrl.u32 %v5147, 7
        %v5149 = vsub.s32 0, %v5148
        %v5150 = vrot.slane %v5112, %v5149
        %v5151 = vlaneseq
        %v5152 = vshrl.u32 %v5151, 7
        %v5153 = vsub.s32 1, %v5152
        %v5154 = vrot.slane %v5112, %v5153
        %v5157 = vmul.f32 %v5142, %v5150
        %v5158 = vmul.f32 %v5143, %v5154
        %v5159 = vmul.f32 %v5144, %v5150
        %v5160 = vmul.f32 %v5145, %v5154
        %v5162 = vlaneseq
        %v5163 = vshrl.u32 %v5162, 7
        %v5164 = vsub.s32 0, %v5163
        %v5165 = vrot.slane %v5113, %v5164
        %v5166 = vlaneseq
        %v5167 = vshrl.u32 %v5166, 7
        %v5168 = vsub.s32 1, %v5167
        %v5169 = vrot.slane %v5113, %v5168
        %v5172 = vadd.f32 %v5157, %v5165
        %v5173 = vadd.f32 %v5158, %v5169
        %v5174 = vadd.f32 %v5159, %v5165
        %v5175 = vadd.f32 %v5160, %v5169
        %5176 = vst [vmem:[#allocation2] sm:$0xff] %v5172
        %5177 = vst [vmem:[#allocation2 + $0x8] sm:$0xff] %v5173
        %5178 = vst [vmem:[#allocation2 + $0x10] sm:$0xff] %v5174
        %5179 = vst [vmem:[#allocation2 + $0x18] sm:$0xff] %v5175
        %5180 = vst [vmem:[%s1161] sm:$0xff] %v5172
        %5181 = vst [vmem:[%s1161 + $0x8] sm:$0xff] %v5173
        %5182 = vst [vmem:[%s1161 + $0x10] sm:$0xff] %v5174
        %5183 = vst [vmem:[%s1161 + $0x18] sm:$0xff] %v5175
        %p5184 = scmp.lt.s32.totalorder %s52, 1
        %s5185 = scalar_select %p5184, %s52, 1
        %s5186 = smul.addr %s5185, 4
        %s5187 = smul.addr %s5186, 8
        %s5188 = scalar_lea.vmem %s19, %s5187
        %p5189 = scmp.lt.s32.totalorder %s52, 1
        %s5190 = scalar_select %p5189, %s52, 1
        %s5191 = smul.addr %s5190, 2
        %s5192 = smul.addr %s5191, 8
        %s5193 = scalar_lea.vmem %s20, %s5192
        // Predicated region
        $region157: #{bert_cross_encoder_attn_map.1} parent=95 // pred_check
          %p5194 = pneg %p549
        $region158: #{bert_cross_encoder_attn_map.1} parent=95 // pred_check_branch
          %5196 = sbr.rel (%p5194) target = $region160
        $region159: #{bert_cross_encoder_attn_map.1} parent=95 // pred_region
          _
        $region160: #{bert_cross_encoder_attn_map.1} parent=95 // pred_fallthru
          _
        // Predicated region
        $region161: #{bert_cross_encoder_attn_map.1} parent=95 // pred_check
          %p5197 = pneg %p575
        $region162: #{bert_cross_encoder_attn_map.1} parent=95 // pred_check_branch
          %5199 = sbr.rel (%p5197) target = $region164
        $region163: #{bert_cross_encoder_attn_map.1} parent=95 // pred_region
          _
        $region164: #{bert_cross_encoder_attn_map.1} parent=95 // pred_fallthru
          _
      $region96: #{bert_cross_encoder_attn_map.1} parent=5 // pred_fallthru
        _
      %p5200 = scmp.le.s32.totalorder 2, %s47
      // Predicated region
      $region165: #{bert_cross_encoder_attn_map.1} parent=5 // pred_check
        %p5201 = pneg %p5200
      $region166: #{bert_cross_encoder_attn_map.1} parent=5 // pred_check_branch
        %5203 = sbr.rel (%p5201) target = $region168
      $region167: #{bert_cross_encoder_attn_map.1} parent=5 // pred_region
        %s5204 = ssub.s32 %s47, 2
        // Predicated region
        $region169: #{bert_cross_encoder_attn_map.1} parent=167 // pred_check
          %p5205 = pneg %p555
        $region170: #{bert_cross_encoder_attn_map.1} parent=167 // pred_check_branch
          %5207 = sbr.rel (%p5205) target = $region172
        $region171: #{bert_cross_encoder_attn_map.1} parent=167 // pred_region
          %p5208 = scmp.lt.s32.totalorder %s53, 1
          %s5209 = scalar_select %p5208, %s53, 1
          %s5210 = smul.addr %s5209, 4
          %s5211 = smul.addr %s5210, 8
          %s5212 = scalar_lea.vmem %s19, %s5211
        $region172: #{bert_cross_encoder_attn_map.1} parent=167 // pred_fallthru
          _
        // Predicated region
        $region173: #{bert_cross_encoder_attn_map.1} parent=167 // pred_check
          %p5213 = pneg %p581
        $region174: #{bert_cross_encoder_attn_map.1} parent=167 // pred_check_branch
          %5215 = sbr.rel (%p5213) target = $region176
        $region175: #{bert_cross_encoder_attn_map.1} parent=167 // pred_region
          %p5216 = scmp.lt.s32.totalorder %s53, 1
          %s5217 = scalar_select %p5216, %s53, 1
          %s5218 = smul.addr %s5217, 2
          %s5219 = smul.addr %s5218, 8
          %s5220 = scalar_lea.vmem %s20, %s5219
        $region176: #{bert_cross_encoder_attn_map.1} parent=167 // pred_fallthru
          _
      $region168: #{bert_cross_encoder_attn_map.1} parent=5 // pred_fallthru
        _
    $region6: #{bert_cross_encoder_attn_map.1} parent=1 // loop_footer
      %s51 = sadd.s32 1, %s47
    $region7: #{bert_cross_encoder_attn_map.1} parent=1 // loop_footer_branch
      %46 = sbr.rel target = $region3
    $region8: #{bert_cross_encoder_attn_map.1} parent=1 // loop_exit
      _
    %5221 = vsyncpa [#allocation4], 1
    %s5222 = scalar_lea.sflag [#allocation4], 1
    %5223 = vsyncpa %s5222, 1
    %5224 = vsyncpa [#allocation6], 1
    %5225 = vsyncpa [#allocation9], 1
    %s5226 = scalar_lea.sflag [#allocation9], 1
    %5227 = vsyncpa %s5226, 1
    %5228 = vsyncpa [#allocation12], 1
    %s5229 = scalar_lea.sflag [#allocation12], 1
    %5230 = vsyncpa %s5229, 1
    %5231 = vsyncpa [#allocation15], 1
    %s5232 = scalar_lea.sflag [#allocation15], 1
    %5233 = vsyncpa %s5232, 1
    %5234 = vsyncpa [#allocation18], 1
    %s5235 = scalar_lea.sflag [#allocation18], 1
    %5236 = vsyncpa %s5235, 1
    %5237 = vsyncpa [#allocation21], 1
    %s5238 = scalar_lea.sflag [#allocation21], 1
    %5239 = vsyncpa %s5238, 1
    %5240 = vsyncpa [#allocation24], 1
    %s5241 = scalar_lea.sflag [#allocation24], 1
    %5242 = vsyncpa %s5241, 1

</llo_original>
